<compile_context>
chip_gen: v6e
topology: v6e:2x2x1
jax: 0.10.0
libtpu: 0.0.40
codegen_flags: <defaults>
</compile_context>

<pallas_src>
import functools
import math

import jax
import jax.numpy as jnp
from jax.experimental import pallas as pl
from jax.experimental.pallas import tpu as pltpu

EPS = 1e-6
F32 = jnp.float32
BF16 = jnp.bfloat16


def _layernorm(x, *, approx_recip=False):
    """alpha*(x-mean)/(std+eps)+bias with alpha=1, bias=0, UNBIASED std (ddof=1),
    eps added to the std (not the variance) -- faithful to the PyTorch module."""
    d = x.shape[-1]
    mean = jnp.mean(x, axis=-1, keepdims=True)
    var = jnp.sum((x - mean) ** 2, axis=-1, keepdims=True) * (1.0 / (d - 1))
    denom = jnp.sqrt(var) + EPS
    if approx_recip:
        return (x - mean) * pl.reciprocal(denom, approx=True)
    return (x - mean) / denom


def encoder_block_kernel(x_ref,
                         wqkv_ref, bqkv_ref,
                         w0_ref, b0_ref,
                         w1_ref, b1_ref, w2_ref, b2_ref,
                         o_ref,
                         *, h, fuse_heads, dff_tile):
    """One block of `bb` batch elements per grid step.

    Host-prepared operand layouts:
      fuse_heads=True : wqkv (D, 3D) bf16, bqkv (1, 3D) f32
      fuse_heads=False: wqkv (h, D, 3*d_k) bf16, bqkv (h, 1, 3*d_k) f32
      w0: (D, D)   bf16   b0: (1, D)   f32
      w1: (D, DFF) bf16   b1: (1, DFF) f32
      w2: (DFF, D) bf16   b2: (1, D)   f32
    """
    bb, s, d_model = x_ref.shape
    d_k = d_model // h
    m = bb * s
    inv_sqrt_dk = 1.0 / math.sqrt(d_k)

    x = x_ref[...].reshape(m, d_model)                    # (M, D) f32

    # ---- residual 1: x + W0(SelfAttention(LayerNorm(x))) --------------------
    # Exact divide here: LN1 output feeds the floor()'d attention scores.
    nx = _layernorm(x)
    nxb = nx.astype(BF16)

    if fuse_heads:
        # One full-width QKV matmul; per-head slices below are lane-aligned.
        qkv = jnp.dot(nxb, wqkv_ref[...], preferred_element_type=F32) + bqkv_ref[...]

    ctx_parts = []
    for hd in range(h):                                   # static unroll over heads
        if fuse_heads:
            q = qkv[:, hd * d_k:(hd + 1) * d_k]
            k = qkv[:, d_model + hd * d_k:d_model + (hd + 1) * d_k]
            v = qkv[:, 2 * d_model + hd * d_k:2 * d_model + (hd + 1) * d_k]
        else:
            # One fused (M,D)x(D,3*d_k) matmul per head (was 3 N=d_k matmuls).
            qkv_h = jnp.dot(nxb, wqkv_ref[hd], preferred_element_type=F32) + bqkv_ref[hd]
            q = qkv_h[:, :d_k]
            k = qkv_h[:, d_k:2 * d_k]
            v = qkv_h[:, 2 * d_k:]

        q3 = q.reshape(bb, s, d_k).astype(BF16)
        k3 = k.reshape(bb, s, d_k).astype(BF16)
        v3 = v.reshape(bb, s, d_k).astype(BF16)

        # scores = floor((q @ k^T) * (1/sqrt(d_k)))  (PyTorch // floor-division)
        sc = jnp.einsum('bqc,bkc->bqk', q3, k3, preferred_element_type=F32)
        sc = jnp.floor(sc * inv_sqrt_dk)
        # src_mask intentionally ignored: the PyTorch module calls the
        # NON-in-place masked_fill and discards its result.
        smax = jnp.max(sc, axis=-1, keepdims=True)
        p = jnp.exp(sc - smax)
        p = p * pl.reciprocal(jnp.sum(p, axis=-1, keepdims=True), approx=True)

        ctx = jnp.einsum('bqk,bkc->bqc', p.astype(BF16), v3,
                         preferred_element_type=F32)      # (bb, s, d_k)
        ctx_parts.append(ctx.reshape(m, d_k).astype(BF16))

    # Head-contiguous order matches PyTorch .transpose(1,2).view(B,S,h*d_k).
    ctx_all = ctx_parts[0] if h == 1 else jnp.concatenate(ctx_parts, axis=-1)
    # Single full-depth (M,D)x(D,D) out-projection (K = D, not d_k).
    attn = jnp.dot(ctx_all, w0_ref[...], preferred_element_type=F32)
    x1 = x + attn + b0_ref[...]                           # dropout p=0 -> identity

    # ---- residual 2: x1 + FeedForward(LayerNorm(x1)) ------------------------
    nx2b = _layernorm(x1, approx_recip=True).astype(BF16)
    dff = w1_ref.shape[1]
    ff = None
    for c0 in range(0, dff, dff_tile):                    # chunk DFF: bounds live hidden
        c1 = min(c0 + dff_tile, dff)
        hid = jnp.maximum(
            jnp.dot(nx2b, w1_ref[:, c0:c1], preferred_element_type=F32)
            + b1_ref[:, c0:c1], 0.0)
        part = jnp.dot(hid.astype(BF16), w2_ref[c0:c1, :],
                       preferred_element_type=F32)
        ff = part if ff is None else ff + part
    ff = ff + b2_ref[...]

    o_ref[...] = (x1 + ff).reshape(bb, s, d_model)


def _pick_block_b(B, S):
    """Largest divisor of B with M = BB*S near ~2048 rows (fills MXU M,
    amortizes the ~0.35us/step overhead), a cap on the (BB,S,S) score tensor,
    and >= 2 grid steps whenever B > 1 (v7x megacore sharding)."""
    rows_target = 2048
    score_cap = max(1, (8 * 1024 * 1024) // (4 * S * S))
    target = max(1, min(rows_target // max(S, 1), score_cap))
    if B > 1:
        target = max(1, min(target, B // 2))
    best = 1
    for cand in range(1, B + 1):
        if B % cand == 0 and cand <= target:
            best = cand
    return best


def _vmem_limit_bytes():
    try:
        cap = int(pltpu.get_tpu_info().vmem_capacity_bytes)
    except Exception:
        cap = 64 * 1024 * 1024
    # Use most of v5e/v6e's 128 MiB; stay comfortably under v7x's 64 MiB.
    return max(32 * 1024 * 1024, min(100 * 1024 * 1024, (cap * 3) // 4))


def encoder_block(x, params, src_mask=None, *, h, block_b=None, dff_tile=1024):
    """params in torch nn.Linear layout: weights (out, in), biases (1, out).
    src_mask is accepted but unused (matches the PyTorch module's behavior)."""
    del src_mask
    B, S, D = x.shape
    assert D % h == 0
    d_k = D // h
    wq, bq, wk, bk, wv, bv, w0, b0, w1, b1, w2, b2 = params
    DFF = w1.shape[0]

    fuse_heads = (d_k % 128 == 0)
    if fuse_heads:
        # Columns: [all q heads | all k heads | all v heads], torch head order.
        wqkv = jnp.concatenate([wq.T, wk.T, wv.T], axis=1).astype(BF16)      # (D, 3D)
        bqkv = jnp.concatenate([bq, bk, bv], axis=1).reshape(1, 3 * D).astype(F32)
    else:
        def hsplit(w):                       # torch (out,in) -> (h, D, d_k)
            return w.T.reshape(D, h, d_k).transpose(1, 0, 2)
        wqkv = jnp.concatenate([hsplit(wq), hsplit(wk), hsplit(wv)],
                               axis=2).astype(BF16)                          # (h, D, 3dk)
        bqkv = jnp.concatenate([bq.reshape(h, 1, d_k), bk.reshape(h, 1, d_k),
                                bv.reshape(h, 1, d_k)], axis=2).astype(F32)  # (h, 1, 3dk)

    kparams = (
        wqkv, bqkv,
        w0.T.astype(BF16), b0.reshape(1, D).astype(F32),
        w1.T.astype(BF16), b1.reshape(1, DFF).astype(F32),
        w2.T.astype(BF16), b2.reshape(1, D).astype(F32),
    )

    if block_b is None:
        block_b = _pick_block_b(B, S)
    assert B % block_b == 0
    grid = (B // block_b,)

    dff_tile_eff = DFF if DFF <= dff_tile else dff_tile   # multiple of 128 or full DFF

    kernel = functools.partial(encoder_block_kernel, h=h,
                               fuse_heads=fuse_heads, dff_tile=dff_tile_eff)

    M = B * S
    flops = 8 * M * D * D + 4 * B * S * S * D + 4 * M * D * DFF
    transcendentals = B * h * S * S + 2 * M
    bytes_accessed = (2 * M * D * 4
                      + sum(int(p.size) * p.dtype.itemsize for p in kparams))
    vmem_limit = _vmem_limit_bytes()

    def run(single_buffer_weights):
        in_specs = [pl.BlockSpec((block_b, S, D), lambda b: (b, 0, 0))]
        for p in kparams:
            zeros = (0,) * p.ndim
            if single_buffer_weights:
                # Constant block across grid steps -> single-buffer to halve
                # resident weight VMEM (critical on v7x's 64 MiB).
                in_specs.append(pl.BlockSpec(p.shape, lambda b, _z=zeros: _z,
                                             pipeline_mode=pl.Buffered(1)))
            else:
                in_specs.append(pl.BlockSpec(p.shape, lambda b, _z=zeros: _z))

        return pl.pallas_call(
            kernel,
            out_shape=jax.ShapeDtypeStruct((B, S, D), jnp.float32),
            grid_spec=pltpu.PrefetchScalarGridSpec(
                num_scalar_prefetch=0,
                grid=grid,
                in_specs=in_specs,
                out_specs=pl.BlockSpec((block_b, S, D), lambda b: (b, 0, 0)),
            ),
            compiler_params=pltpu.CompilerParams(
                dimension_semantics=("parallel",),
                vmem_limit_bytes=int(vmem_limit),
            ),
            cost_estimate=pl.CostEstimate(
                flops=int(flops),
                transcendentals=int(transcendentals),
                bytes_accessed=int(bytes_accessed)),
        )(x.astype(jnp.float32), *kparams)

    try:
        return run(True)
    except Exception:
        # Fallback if this jax version rejects pipeline_mode=pl.Buffered(1).
        return run(False)


def encoder_block_ref(x, params, h):
    """Pure-JAX reference mirroring the PyTorch forward, with the same
    bf16-in / f32-accumulate matmul strategy as the kernel."""
    wq, bq, wk, bk, wv, bv, w0, b0, w1, b1, w2, b2 = params
    B, S, D = x.shape
    d_k = D // h
    inv_sqrt_dk = 1.0 / math.sqrt(d_k)

    def ln(t):
        d = t.shape[-1]
        mean = jnp.mean(t, axis=-1, keepdims=True)
        std = jnp.sqrt(jnp.sum((t - mean) ** 2, axis=-1, keepdims=True) / (d - 1))
        return (t - mean) / (std + EPS)

    def mm(a, w_t):
        return jnp.einsum('...i,io->...o', a.astype(BF16), w_t.astype(BF16),
                          preferred_element_type=F32)

    nx = ln(x)
    q = mm(nx, wq.T) + bq
    k = mm(nx, wk.T) + bk
    v = mm(nx, wv.T) + bv
    qh = q.reshape(B, S, h, d_k).transpose(0, 2, 1, 3)
    kh = k.reshape(B, S, h, d_k).transpose(0, 2, 1, 3)
    vh = v.reshape(B, S, h, d_k).transpose(0, 2, 1, 3)
    s = jnp.floor(jnp.einsum('bhqc,bhkc->bhqk', qh.astype(BF16), kh.astype(BF16),
                             preferred_element_type=F32) * inv_sqrt_dk)
    p = jax.nn.softmax(s, axis=-1)   # mask ignored (module discards masked_fill)
    ctx = jnp.einsum('bhqk,bhkc->bhqc', p.astype(BF16), vh.astype(BF16),
                     preferred_element_type=F32)
    ctx = ctx.transpose(0, 2, 1, 3).reshape(B, S, D)
    x1 = x + mm(ctx, w0.T) + b0
    nx2 = ln(x1)
    hid = jnp.maximum(mm(nx2, w1.T) + b1, 0.0)
    ff = mm(hid, w2.T) + b2
    return x1 + ff


if __name__ == "__main__":
    B, S, D, H, DFF = 2, 8, 32, 4, 64
    key = jax.random.PRNGKey(0)
    keys = jax.random.split(key, 13)
    x = jax.random.normal(keys[0], (B, S, D), jnp.float32)
    src_mask = jnp.ones((B, 1, S, S), jnp.float32)  # unused (see module quirk)

    def linear_init(kw, kb, out_f, in_f):
        lim = 1.0 / math.sqrt(in_f)
        w = jax.random.uniform(kw, (out_f, in_f), jnp.float32, -lim, lim)
        b = jax.random.uniform(kb, (1, out_f), jnp.float32, -lim, lim)
        return w, b

    wq, bq = linear_init(keys[1], keys[2], D, D)
    wk, bk = linear_init(keys[3], keys[4], D, D)
    wv, bv = linear_init(keys[5], keys[6], D, D)
    w0, b0 = linear_init(keys[7], keys[8], D, D)
    w1, b1 = linear_init(keys[9], keys[10], DFF, D)
    w2, b2 = linear_init(keys[11], keys[12], D, DFF)
    params = (wq, bq, wk, bk, wv, bv, w0, b0, w1, b1, w2, b2)

    out = encoder_block(x, params, src_mask, h=H)
    out = jax.block_until_ready(out)

    ref = encoder_block_ref(x, params, H)
    assert out.shape == (B, S, D) and out.dtype == jnp.float32
    err = float(jnp.max(jnp.abs(out - ref)))
    assert err < 5e-3, err
    print("KERNEL_OK")
</pallas_src>

<mosaic_0001>
module attributes {stable_mosaic.version = 11 : i64} {
  func.func @encoder_block_kernel(%arg0: i32, %arg1: memref<1x8x32xf32, #tpu.memory_space<vmem>>, %arg2: memref<4x32x24xbf16, #tpu.memory_space<vmem>>, %arg3: memref<4x1x24xf32, #tpu.memory_space<vmem>>, %arg4: memref<32x32xbf16, #tpu.memory_space<vmem>>, %arg5: memref<1x32xf32, #tpu.memory_space<vmem>>, %arg6: memref<32x64xbf16, #tpu.memory_space<vmem>>, %arg7: memref<1x64xf32, #tpu.memory_space<vmem>>, %arg8: memref<64x32xbf16, #tpu.memory_space<vmem>>, %arg9: memref<1x32xf32, #tpu.memory_space<vmem>>, %arg10: memref<1x8x32xf32, #tpu.memory_space<vmem>>) attributes {dimension_semantics = [#tpu.dimension_semantics<parallel>], iteration_bounds = array<i64: 2>, scalar_prefetch = 0 : i64, scratch_operands = 0 : i64, tpu.core_type = #tpu.core_type<tc>, window_params = [{transform_indices = @transform_0, window_bounds = array<i64: 1, 8, 32>}, {pipeline_mode = #tpu.pipeline_mode<synchronous>, transform_indices = @transform_1, window_bounds = array<i64: 4, 32, 24>}, {pipeline_mode = #tpu.pipeline_mode<synchronous>, transform_indices = @transform_2, window_bounds = array<i64: 4, 1, 24>}, {pipeline_mode = #tpu.pipeline_mode<synchronous>, transform_indices = @transform_3, window_bounds = array<i64: 32, 32>}, {pipeline_mode = #tpu.pipeline_mode<synchronous>, transform_indices = @transform_4, window_bounds = array<i64: 1, 32>}, {pipeline_mode = #tpu.pipeline_mode<synchronous>, transform_indices = @transform_5, window_bounds = array<i64: 32, 64>}, {pipeline_mode = #tpu.pipeline_mode<synchronous>, transform_indices = @transform_6, window_bounds = array<i64: 1, 64>}, {pipeline_mode = #tpu.pipeline_mode<synchronous>, transform_indices = @transform_7, window_bounds = array<i64: 64, 32>}, {pipeline_mode = #tpu.pipeline_mode<synchronous>, transform_indices = @transform_8, window_bounds = array<i64: 1, 32>}, {transform_indices = @transform_9, window_bounds = array<i64: 1, 8, 32>}]} {
    %c0 = arith.constant 0 : index
    %c0_0 = arith.constant 0 : index
    %c0_1 = arith.constant 0 : index
    %0 = vector.load %arg1[%c0, %c0_0, %c0_1] : memref<1x8x32xf32, #tpu.memory_space<vmem>>, vector<1x8x32xf32>
    %1 = vector.shape_cast %0 : vector<1x8x32xf32> to vector<8x32xf32>
    %cst = arith.constant dense<0.000000e+00> : vector<8xf32>
    %2 = vector.multi_reduction <add>, %1, %cst [1] : vector<8x32xf32> to vector<8xf32>
    %3 = vector.shape_cast %2 : vector<8xf32> to vector<8x1xf32>
    %cst_2 = arith.constant 3.200000e+01 : f32
    %4 = vector.broadcast %cst_2 : f32 to vector<8x1xf32>
    %5 = arith.divf %3, %4 : vector<8x1xf32>
    %6 = vector.broadcast %5 : vector<8x1xf32> to vector<8x32xf32>
    %7 = arith.subf %1, %6 : vector<8x32xf32>
    %8 = arith.mulf %7, %7 : vector<8x32xf32>
    %cst_3 = arith.constant dense<0.000000e+00> : vector<8xf32>
    %9 = vector.multi_reduction <add>, %8, %cst_3 [1] : vector<8x32xf32> to vector<8xf32>
    %10 = vector.shape_cast %9 : vector<8xf32> to vector<8x1xf32>
    %cst_4 = arith.constant 0.0322580636 : f32
    %11 = vector.broadcast %cst_4 : f32 to vector<8x1xf32>
    %12 = arith.mulf %10, %11 : vector<8x1xf32>
    %13 = math.sqrt %12 : vector<8x1xf32>
    %cst_5 = arith.constant 9.99999997E-7 : f32
    %14 = vector.broadcast %cst_5 : f32 to vector<8x1xf32>
    %15 = arith.addf %13, %14 : vector<8x1xf32>
    %16 = vector.broadcast %5 : vector<8x1xf32> to vector<8x32xf32>
    %17 = arith.subf %1, %16 : vector<8x32xf32>
    %18 = vector.broadcast %15 : vector<8x1xf32> to vector<8x32xf32>
    %19 = arith.divf %17, %18 : vector<8x32xf32>
    %20 = arith.truncf %19 : vector<8x32xf32> to vector<8x32xbf16>
    %c0_6 = arith.constant 0 : index
    %c0_7 = arith.constant 0 : index
    %c0_8 = arith.constant 0 : index
    %21 = vector.load %arg2[%c0_6, %c0_7, %c0_8] : memref<4x32x24xbf16, #tpu.memory_space<vmem>>, vector<1x32x24xbf16>
    %22 = vector.shape_cast %21 : vector<1x32x24xbf16> to vector<32x24xbf16>
    %cst_9 = arith.constant dense<0.000000e+00> : vector<8x24xf32>
    %23 = tpu.matmul %20, %22, %cst_9 {dimension_numbers = #tpu.dot_dimension_numbers<[1], [0], [0], [1], [0, 0, 1, 1], [], []>} : vector<8x32xbf16>, vector<32x24xbf16>, vector<8x24xf32> -> vector<8x24xf32>
    %c0_10 = arith.constant 0 : index
    %c0_11 = arith.constant 0 : index
    %c0_12 = arith.constant 0 : index
    %24 = vector.load %arg3[%c0_10, %c0_11, %c0_12] : memref<4x1x24xf32, #tpu.memory_space<vmem>>, vector<1x1x24xf32>
    %25 = vector.shape_cast %24 : vector<1x1x24xf32> to vector<1x24xf32>
    %26 = vector.broadcast %25 : vector<1x24xf32> to vector<8x24xf32>
    %27 = arith.addf %23, %26 : vector<8x24xf32>
    %28 = vector.extract_strided_slice %27 {offsets = [0, 0], sizes = [8, 8], strides = [1, 1]} : vector<8x24xf32> to vector<8x8xf32>
    %29 = vector.extract_strided_slice %27 {offsets = [0, 8], sizes = [8, 8], strides = [1, 1]} : vector<8x24xf32> to vector<8x8xf32>
    %30 = vector.extract_strided_slice %27 {offsets = [0, 16], sizes = [8, 8], strides = [1, 1]} : vector<8x24xf32> to vector<8x8xf32>
    %31 = vector.shape_cast %28 : vector<8x8xf32> to vector<1x8x8xf32>
    %32 = arith.truncf %31 : vector<1x8x8xf32> to vector<1x8x8xbf16>
    %33 = vector.shape_cast %29 : vector<8x8xf32> to vector<1x8x8xf32>
    %34 = arith.truncf %33 : vector<1x8x8xf32> to vector<1x8x8xbf16>
    %35 = vector.shape_cast %30 : vector<8x8xf32> to vector<1x8x8xf32>
    %36 = arith.truncf %35 : vector<1x8x8xf32> to vector<1x8x8xbf16>
    "tpu.trace_start"() <{level = 10 : i32, message = "bqc,bkc->bqk"}> : () -> ()
    %cst_13 = arith.constant dense<0.000000e+00> : vector<1x8x8xf32>
    %37 = tpu.matmul %32, %34, %cst_13 {dimension_numbers = #tpu.dot_dimension_numbers<[2], [2], [1], [1], [0, 0, 0, 1, 1, 1], [0], [0]>} : vector<1x8x8xbf16>, vector<1x8x8xbf16>, vector<1x8x8xf32> -> vector<1x8x8xf32>
    "tpu.trace_stop"() : () -> ()
    %cst_14 = arith.constant 0.353553385 : f32
    %38 = vector.broadcast %cst_14 : f32 to vector<1x8x8xf32>
    %39 = arith.mulf %37, %38 : vector<1x8x8xf32>
    %40 = math.floor %39 : vector<1x8x8xf32>
    %cst_15 = arith.constant dense<0xFF800000> : vector<1x8xf32>
    %41 = vector.multi_reduction <maximumf>, %40, %cst_15 [2] : vector<1x8x8xf32> to vector<1x8xf32>
    %42 = vector.shape_cast %41 : vector<1x8xf32> to vector<1x8x1xf32>
    %43 = vector.broadcast %42 : vector<1x8x1xf32> to vector<1x8x8xf32>
    %44 = arith.subf %40, %43 : vector<1x8x8xf32>
    %45 = math.exp %44 : vector<1x8x8xf32>
    %cst_16 = arith.constant dense<0.000000e+00> : vector<1x8xf32>
    %46 = vector.multi_reduction <add>, %45, %cst_16 [2] : vector<1x8x8xf32> to vector<1x8xf32>
    %47 = vector.shape_cast %46 : vector<1x8xf32> to vector<1x8x1xf32>
    %48 = tpu.reciprocal %47 {approx = true} : vector<1x8x1xf32> -> vector<1x8x1xf32>
    %49 = vector.broadcast %48 : vector<1x8x1xf32> to vector<1x8x8xf32>
    %50 = arith.mulf %45, %49 : vector<1x8x8xf32>
    %51 = arith.truncf %50 : vector<1x8x8xf32> to vector<1x8x8xbf16>
    "tpu.trace_start"() <{level = 10 : i32, message = "bqk,bkc->bqc"}> : () -> ()
    %cst_17 = arith.constant dense<0.000000e+00> : vector<1x8x8xf32>
    %52 = tpu.matmul %51, %36, %cst_17 {dimension_numbers = #tpu.dot_dimension_numbers<[2], [1], [1], [2], [0, 0, 0, 1, 1, 2], [0], [0]>} : vector<1x8x8xbf16>, vector<1x8x8xbf16>, vector<1x8x8xf32> -> vector<1x8x8xf32>
    "tpu.trace_stop"() : () -> ()
    %53 = vector.shape_cast %52 : vector<1x8x8xf32> to vector<8x8xf32>
    %54 = arith.truncf %53 : vector<8x8xf32> to vector<8x8xbf16>
    %c1 = arith.constant 1 : index
    %c0_18 = arith.constant 0 : index
    %c0_19 = arith.constant 0 : index
    %55 = vector.load %arg2[%c1, %c0_18, %c0_19] : memref<4x32x24xbf16, #tpu.memory_space<vmem>>, vector<1x32x24xbf16>
    %56 = vector.shape_cast %55 : vector<1x32x24xbf16> to vector<32x24xbf16>
    %cst_20 = arith.constant dense<0.000000e+00> : vector<8x24xf32>
    %57 = tpu.matmul %20, %56, %cst_20 {dimension_numbers = #tpu.dot_dimension_numbers<[1], [0], [0], [1], [0, 0, 1, 1], [], []>} : vector<8x32xbf16>, vector<32x24xbf16>, vector<8x24xf32> -> vector<8x24xf32>
    %c1_21 = arith.constant 1 : index
    %c0_22 = arith.constant 0 : index
    %c0_23 = arith.constant 0 : index
    %58 = vector.load %arg3[%c1_21, %c0_22, %c0_23] : memref<4x1x24xf32, #tpu.memory_space<vmem>>, vector<1x1x24xf32>
    %59 = vector.shape_cast %58 : vector<1x1x24xf32> to vector<1x24xf32>
    %60 = vector.broadcast %59 : vector<1x24xf32> to vector<8x24xf32>
    %61 = arith.addf %57, %60 : vector<8x24xf32>
    %62 = vector.extract_strided_slice %61 {offsets = [0, 0], sizes = [8, 8], strides = [1, 1]} : vector<8x24xf32> to vector<8x8xf32>
    %63 = vector.extract_strided_slice %61 {offsets = [0, 8], sizes = [8, 8], strides = [1, 1]} : vector<8x24xf32> to vector<8x8xf32>
    %64 = vector.extract_strided_slice %61 {offsets = [0, 16], sizes = [8, 8], strides = [1, 1]} : vector<8x24xf32> to vector<8x8xf32>
    %65 = vector.shape_cast %62 : vector<8x8xf32> to vector<1x8x8xf32>
    %66 = arith.truncf %65 : vector<1x8x8xf32> to vector<1x8x8xbf16>
    %67 = vector.shape_cast %63 : vector<8x8xf32> to vector<1x8x8xf32>
    %68 = arith.truncf %67 : vector<1x8x8xf32> to vector<1x8x8xbf16>
    %69 = vector.shape_cast %64 : vector<8x8xf32> to vector<1x8x8xf32>
    %70 = arith.truncf %69 : vector<1x8x8xf32> to vector<1x8x8xbf16>
    "tpu.trace_start"() <{level = 10 : i32, message = "bqc,bkc->bqk"}> : () -> ()
    %cst_24 = arith.constant dense<0.000000e+00> : vector<1x8x8xf32>
    %71 = tpu.matmul %66, %68, %cst_24 {dimension_numbers = #tpu.dot_dimension_numbers<[2], [2], [1], [1], [0, 0, 0, 1, 1, 1], [0], [0]>} : vector<1x8x8xbf16>, vector<1x8x8xbf16>, vector<1x8x8xf32> -> vector<1x8x8xf32>
    "tpu.trace_stop"() : () -> ()
    %cst_25 = arith.constant 0.353553385 : f32
    %72 = vector.broadcast %cst_25 : f32 to vector<1x8x8xf32>
    %73 = arith.mulf %71, %72 : vector<1x8x8xf32>
    %74 = math.floor %73 : vector<1x8x8xf32>
    %cst_26 = arith.constant dense<0xFF800000> : vector<1x8xf32>
    %75 = vector.multi_reduction <maximumf>, %74, %cst_26 [2] : vector<1x8x8xf32> to vector<1x8xf32>
    %76 = vector.shape_cast %75 : vector<1x8xf32> to vector<1x8x1xf32>
    %77 = vector.broadcast %76 : vector<1x8x1xf32> to vector<1x8x8xf32>
    %78 = arith.subf %74, %77 : vector<1x8x8xf32>
    %79 = math.exp %78 : vector<1x8x8xf32>
    %cst_27 = arith.constant dense<0.000000e+00> : vector<1x8xf32>
    %80 = vector.multi_reduction <add>, %79, %cst_27 [2] : vector<1x8x8xf32> to vector<1x8xf32>
    %81 = vector.shape_cast %80 : vector<1x8xf32> to vector<1x8x1xf32>
    %82 = tpu.reciprocal %81 {approx = true} : vector<1x8x1xf32> -> vector<1x8x1xf32>
    %83 = vector.broadcast %82 : vector<1x8x1xf32> to vector<1x8x8xf32>
    %84 = arith.mulf %79, %83 : vector<1x8x8xf32>
    %85 = arith.truncf %84 : vector<1x8x8xf32> to vector<1x8x8xbf16>
    "tpu.trace_start"() <{level = 10 : i32, message = "bqk,bkc->bqc"}> : () -> ()
    %cst_28 = arith.constant dense<0.000000e+00> : vector<1x8x8xf32>
    %86 = tpu.matmul %85, %70, %cst_28 {dimension_numbers = #tpu.dot_dimension_numbers<[2], [1], [1], [2], [0, 0, 0, 1, 1, 2], [0], [0]>} : vector<1x8x8xbf16>, vector<1x8x8xbf16>, vector<1x8x8xf32> -> vector<1x8x8xf32>
    "tpu.trace_stop"() : () -> ()
    %87 = vector.shape_cast %86 : vector<1x8x8xf32> to vector<8x8xf32>
    %88 = arith.truncf %87 : vector<8x8xf32> to vector<8x8xbf16>
    %c2 = arith.constant 2 : index
    %c0_29 = arith.constant 0 : index
    %c0_30 = arith.constant 0 : index
    %89 = vector.load %arg2[%c2, %c0_29, %c0_30] : memref<4x32x24xbf16, #tpu.memory_space<vmem>>, vector<1x32x24xbf16>
    %90 = vector.shape_cast %89 : vector<1x32x24xbf16> to vector<32x24xbf16>
    %cst_31 = arith.constant dense<0.000000e+00> : vector<8x24xf32>
    %91 = tpu.matmul %20, %90, %cst_31 {dimension_numbers = #tpu.dot_dimension_numbers<[1], [0], [0], [1], [0, 0, 1, 1], [], []>} : vector<8x32xbf16>, vector<32x24xbf16>, vector<8x24xf32> -> vector<8x24xf32>
    %c2_32 = arith.constant 2 : index
    %c0_33 = arith.constant 0 : index
    %c0_34 = arith.constant 0 : index
    %92 = vector.load %arg3[%c2_32, %c0_33, %c0_34] : memref<4x1x24xf32, #tpu.memory_space<vmem>>, vector<1x1x24xf32>
    %93 = vector.shape_cast %92 : vector<1x1x24xf32> to vector<1x24xf32>
    %94 = vector.broadcast %93 : vector<1x24xf32> to vector<8x24xf32>
    %95 = arith.addf %91, %94 : vector<8x24xf32>
    %96 = vector.extract_strided_slice %95 {offsets = [0, 0], sizes = [8, 8], strides = [1, 1]} : vector<8x24xf32> to vector<8x8xf32>
    %97 = vector.extract_strided_slice %95 {offsets = [0, 8], sizes = [8, 8], strides = [1, 1]} : vector<8x24xf32> to vector<8x8xf32>
    %98 = vector.extract_strided_slice %95 {offsets = [0, 16], sizes = [8, 8], strides = [1, 1]} : vector<8x24xf32> to vector<8x8xf32>
    %99 = vector.shape_cast %96 : vector<8x8xf32> to vector<1x8x8xf32>
    %100 = arith.truncf %99 : vector<1x8x8xf32> to vector<1x8x8xbf16>
    %101 = vector.shape_cast %97 : vector<8x8xf32> to vector<1x8x8xf32>
    %102 = arith.truncf %101 : vector<1x8x8xf32> to vector<1x8x8xbf16>
    %103 = vector.shape_cast %98 : vector<8x8xf32> to vector<1x8x8xf32>
    %104 = arith.truncf %103 : vector<1x8x8xf32> to vector<1x8x8xbf16>
    "tpu.trace_start"() <{level = 10 : i32, message = "bqc,bkc->bqk"}> : () -> ()
    %cst_35 = arith.constant dense<0.000000e+00> : vector<1x8x8xf32>
    %105 = tpu.matmul %100, %102, %cst_35 {dimension_numbers = #tpu.dot_dimension_numbers<[2], [2], [1], [1], [0, 0, 0, 1, 1, 1], [0], [0]>} : vector<1x8x8xbf16>, vector<1x8x8xbf16>, vector<1x8x8xf32> -> vector<1x8x8xf32>
    "tpu.trace_stop"() : () -> ()
    %cst_36 = arith.constant 0.353553385 : f32
    %106 = vector.broadcast %cst_36 : f32 to vector<1x8x8xf32>
    %107 = arith.mulf %105, %106 : vector<1x8x8xf32>
    %108 = math.floor %107 : vector<1x8x8xf32>
    %cst_37 = arith.constant dense<0xFF800000> : vector<1x8xf32>
    %109 = vector.multi_reduction <maximumf>, %108, %cst_37 [2] : vector<1x8x8xf32> to vector<1x8xf32>
    %110 = vector.shape_cast %109 : vector<1x8xf32> to vector<1x8x1xf32>
    %111 = vector.broadcast %110 : vector<1x8x1xf32> to vector<1x8x8xf32>
    %112 = arith.subf %108, %111 : vector<1x8x8xf32>
    %113 = math.exp %112 : vector<1x8x8xf32>
    %cst_38 = arith.constant dense<0.000000e+00> : vector<1x8xf32>
    %114 = vector.multi_reduction <add>, %113, %cst_38 [2] : vector<1x8x8xf32> to vector<1x8xf32>
    %115 = vector.shape_cast %114 : vector<1x8xf32> to vector<1x8x1xf32>
    %116 = tpu.reciprocal %115 {approx = true} : vector<1x8x1xf32> -> vector<1x8x1xf32>
    %117 = vector.broadcast %116 : vector<1x8x1xf32> to vector<1x8x8xf32>
    %118 = arith.mulf %113, %117 : vector<1x8x8xf32>
    %119 = arith.truncf %118 : vector<1x8x8xf32> to vector<1x8x8xbf16>
    "tpu.trace_start"() <{level = 10 : i32, message = "bqk,bkc->bqc"}> : () -> ()
    %cst_39 = arith.constant dense<0.000000e+00> : vector<1x8x8xf32>
    %120 = tpu.matmul %119, %104, %cst_39 {dimension_numbers = #tpu.dot_dimension_numbers<[2], [1], [1], [2], [0, 0, 0, 1, 1, 2], [0], [0]>} : vector<1x8x8xbf16>, vector<1x8x8xbf16>, vector<1x8x8xf32> -> vector<1x8x8xf32>
    "tpu.trace_stop"() : () -> ()
    %121 = vector.shape_cast %120 : vector<1x8x8xf32> to vector<8x8xf32>
    %122 = arith.truncf %121 : vector<8x8xf32> to vector<8x8xbf16>
    %c3 = arith.constant 3 : index
    %c0_40 = arith.constant 0 : index
    %c0_41 = arith.constant 0 : index
    %123 = vector.load %arg2[%c3, %c0_40, %c0_41] : memref<4x32x24xbf16, #tpu.memory_space<vmem>>, vector<1x32x24xbf16>
    %124 = vector.shape_cast %123 : vector<1x32x24xbf16> to vector<32x24xbf16>
    %cst_42 = arith.constant dense<0.000000e+00> : vector<8x24xf32>
    %125 = tpu.matmul %20, %124, %cst_42 {dimension_numbers = #tpu.dot_dimension_numbers<[1], [0], [0], [1], [0, 0, 1, 1], [], []>} : vector<8x32xbf16>, vector<32x24xbf16>, vector<8x24xf32> -> vector<8x24xf32>
    %c3_43 = arith.constant 3 : index
    %c0_44 = arith.constant 0 : index
    %c0_45 = arith.constant 0 : index
    %126 = vector.load %arg3[%c3_43, %c0_44, %c0_45] : memref<4x1x24xf32, #tpu.memory_space<vmem>>, vector<1x1x24xf32>
    %127 = vector.shape_cast %126 : vector<1x1x24xf32> to vector<1x24xf32>
    %128 = vector.broadcast %127 : vector<1x24xf32> to vector<8x24xf32>
    %129 = arith.addf %125, %128 : vector<8x24xf32>
    %130 = vector.extract_strided_slice %129 {offsets = [0, 0], sizes = [8, 8], strides = [1, 1]} : vector<8x24xf32> to vector<8x8xf32>
    %131 = vector.extract_strided_slice %129 {offsets = [0, 8], sizes = [8, 8], strides = [1, 1]} : vector<8x24xf32> to vector<8x8xf32>
    %132 = vector.extract_strided_slice %129 {offsets = [0, 16], sizes = [8, 8], strides = [1, 1]} : vector<8x24xf32> to vector<8x8xf32>
    %133 = vector.shape_cast %130 : vector<8x8xf32> to vector<1x8x8xf32>
    %134 = arith.truncf %133 : vector<1x8x8xf32> to vector<1x8x8xbf16>
    %135 = vector.shape_cast %131 : vector<8x8xf32> to vector<1x8x8xf32>
    %136 = arith.truncf %135 : vector<1x8x8xf32> to vector<1x8x8xbf16>
    %137 = vector.shape_cast %132 : vector<8x8xf32> to vector<1x8x8xf32>
    %138 = arith.truncf %137 : vector<1x8x8xf32> to vector<1x8x8xbf16>
    "tpu.trace_start"() <{level = 10 : i32, message = "bqc,bkc->bqk"}> : () -> ()
    %cst_46 = arith.constant dense<0.000000e+00> : vector<1x8x8xf32>
    %139 = tpu.matmul %134, %136, %cst_46 {dimension_numbers = #tpu.dot_dimension_numbers<[2], [2], [1], [1], [0, 0, 0, 1, 1, 1], [0], [0]>} : vector<1x8x8xbf16>, vector<1x8x8xbf16>, vector<1x8x8xf32> -> vector<1x8x8xf32>
    "tpu.trace_stop"() : () -> ()
    %cst_47 = arith.constant 0.353553385 : f32
    %140 = vector.broadcast %cst_47 : f32 to vector<1x8x8xf32>
    %141 = arith.mulf %139, %140 : vector<1x8x8xf32>
    %142 = math.floor %141 : vector<1x8x8xf32>
    %cst_48 = arith.constant dense<0xFF800000> : vector<1x8xf32>
    %143 = vector.multi_reduction <maximumf>, %142, %cst_48 [2] : vector<1x8x8xf32> to vector<1x8xf32>
    %144 = vector.shape_cast %143 : vector<1x8xf32> to vector<1x8x1xf32>
    %145 = vector.broadcast %144 : vector<1x8x1xf32> to vector<1x8x8xf32>
    %146 = arith.subf %142, %145 : vector<1x8x8xf32>
    %147 = math.exp %146 : vector<1x8x8xf32>
    %cst_49 = arith.constant dense<0.000000e+00> : vector<1x8xf32>
    %148 = vector.multi_reduction <add>, %147, %cst_49 [2] : vector<1x8x8xf32> to vector<1x8xf32>
    %149 = vector.shape_cast %148 : vector<1x8xf32> to vector<1x8x1xf32>
    %150 = tpu.reciprocal %149 {approx = true} : vector<1x8x1xf32> -> vector<1x8x1xf32>
    %151 = vector.broadcast %150 : vector<1x8x1xf32> to vector<1x8x8xf32>
    %152 = arith.mulf %147, %151 : vector<1x8x8xf32>
    %153 = arith.truncf %152 : vector<1x8x8xf32> to vector<1x8x8xbf16>
    "tpu.trace_start"() <{level = 10 : i32, message = "bqk,bkc->bqc"}> : () -> ()
    %cst_50 = arith.constant dense<0.000000e+00> : vector<1x8x8xf32>
    %154 = tpu.matmul %153, %138, %cst_50 {dimension_numbers = #tpu.dot_dimension_numbers<[2], [1], [1], [2], [0, 0, 0, 1, 1, 2], [0], [0]>} : vector<1x8x8xbf16>, vector<1x8x8xbf16>, vector<1x8x8xf32> -> vector<1x8x8xf32>
    "tpu.trace_stop"() : () -> ()
    %155 = vector.shape_cast %154 : vector<1x8x8xf32> to vector<8x8xf32>
    %156 = arith.truncf %155 : vector<8x8xf32> to vector<8x8xbf16>
    %157 = tpu.concatenate %54, %88, %122, %156 in 1 : vector<8x8xbf16>, vector<8x8xbf16>, vector<8x8xbf16>, vector<8x8xbf16> -> vector<8x32xbf16>
    %c0_51 = arith.constant 0 : index
    %c0_52 = arith.constant 0 : index
    %158 = vector.load %arg4[%c0_51, %c0_52] : memref<32x32xbf16, #tpu.memory_space<vmem>>, vector<32x32xbf16>
    %cst_53 = arith.constant dense<0.000000e+00> : vector<8x32xf32>
    %159 = tpu.matmul %157, %158, %cst_53 {dimension_numbers = #tpu.dot_dimension_numbers<[1], [0], [0], [1], [0, 0, 1, 1], [], []>} : vector<8x32xbf16>, vector<32x32xbf16>, vector<8x32xf32> -> vector<8x32xf32>
    %160 = arith.addf %1, %159 : vector<8x32xf32>
    %c0_54 = arith.constant 0 : index
    %c0_55 = arith.constant 0 : index
    %161 = vector.load %arg5[%c0_54, %c0_55] : memref<1x32xf32, #tpu.memory_space<vmem>>, vector<1x32xf32>
    %162 = vector.broadcast %161 : vector<1x32xf32> to vector<8x32xf32>
    %163 = arith.addf %160, %162 : vector<8x32xf32>
    %cst_56 = arith.constant dense<0.000000e+00> : vector<8xf32>
    %164 = vector.multi_reduction <add>, %163, %cst_56 [1] : vector<8x32xf32> to vector<8xf32>
    %165 = vector.shape_cast %164 : vector<8xf32> to vector<8x1xf32>
    %cst_57 = arith.constant 3.200000e+01 : f32
    %166 = vector.broadcast %cst_57 : f32 to vector<8x1xf32>
    %167 = arith.divf %165, %166 : vector<8x1xf32>
    %168 = vector.broadcast %167 : vector<8x1xf32> to vector<8x32xf32>
    %169 = arith.subf %163, %168 : vector<8x32xf32>
    %170 = arith.mulf %169, %169 : vector<8x32xf32>
    %cst_58 = arith.constant dense<0.000000e+00> : vector<8xf32>
    %171 = vector.multi_reduction <add>, %170, %cst_58 [1] : vector<8x32xf32> to vector<8xf32>
    %172 = vector.shape_cast %171 : vector<8xf32> to vector<8x1xf32>
    %cst_59 = arith.constant 0.0322580636 : f32
    %173 = vector.broadcast %cst_59 : f32 to vector<8x1xf32>
    %174 = arith.mulf %172, %173 : vector<8x1xf32>
    %175 = math.sqrt %174 : vector<8x1xf32>
    %cst_60 = arith.constant 9.99999997E-7 : f32
    %176 = vector.broadcast %cst_60 : f32 to vector<8x1xf32>
    %177 = arith.addf %175, %176 : vector<8x1xf32>
    %178 = vector.broadcast %167 : vector<8x1xf32> to vector<8x32xf32>
    %179 = arith.subf %163, %178 : vector<8x32xf32>
    %180 = tpu.reciprocal %177 {approx = true} : vector<8x1xf32> -> vector<8x1xf32>
    %181 = vector.broadcast %180 : vector<8x1xf32> to vector<8x32xf32>
    %182 = arith.mulf %179, %181 : vector<8x32xf32>
    %183 = arith.truncf %182 : vector<8x32xf32> to vector<8x32xbf16>
    %c0_61 = arith.constant 0 : index
    %c0_62 = arith.constant 0 : index
    %184 = vector.load %arg6[%c0_61, %c0_62] : memref<32x64xbf16, #tpu.memory_space<vmem>>, vector<32x64xbf16>
    %cst_63 = arith.constant dense<0.000000e+00> : vector<8x64xf32>
    %185 = tpu.matmul %183, %184, %cst_63 {dimension_numbers = #tpu.dot_dimension_numbers<[1], [0], [0], [1], [0, 0, 1, 1], [], []>} : vector<8x32xbf16>, vector<32x64xbf16>, vector<8x64xf32> -> vector<8x64xf32>
    %c0_64 = arith.constant 0 : index
    %c0_65 = arith.constant 0 : index
    %186 = vector.load %arg7[%c0_64, %c0_65] : memref<1x64xf32, #tpu.memory_space<vmem>>, vector<1x64xf32>
    %187 = vector.broadcast %186 : vector<1x64xf32> to vector<8x64xf32>
    %188 = arith.addf %185, %187 : vector<8x64xf32>
    %cst_66 = arith.constant 0.000000e+00 : f32
    %189 = vector.broadcast %cst_66 : f32 to vector<8x64xf32>
    %190 = arith.maximumf %188, %189 : vector<8x64xf32>
    %191 = arith.truncf %190 : vector<8x64xf32> to vector<8x64xbf16>
    %c0_67 = arith.constant 0 : index
    %c0_68 = arith.constant 0 : index
    %192 = vector.load %arg8[%c0_67, %c0_68] : memref<64x32xbf16, #tpu.memory_space<vmem>>, vector<64x32xbf16>
    %cst_69 = arith.constant dense<0.000000e+00> : vector<8x32xf32>
    %193 = tpu.matmul %191, %192, %cst_69 {dimension_numbers = #tpu.dot_dimension_numbers<[1], [0], [0], [1], [0, 0, 1, 1], [], []>} : vector<8x64xbf16>, vector<64x32xbf16>, vector<8x32xf32> -> vector<8x32xf32>
    %c0_70 = arith.constant 0 : index
    %c0_71 = arith.constant 0 : index
    %194 = vector.load %arg9[%c0_70, %c0_71] : memref<1x32xf32, #tpu.memory_space<vmem>>, vector<1x32xf32>
    %195 = vector.broadcast %194 : vector<1x32xf32> to vector<8x32xf32>
    %196 = arith.addf %193, %195 : vector<8x32xf32>
    %197 = arith.addf %163, %196 : vector<8x32xf32>
    %198 = vector.shape_cast %197 : vector<8x32xf32> to vector<1x8x32xf32>
    %c0_72 = arith.constant 0 : index
    %c0_73 = arith.constant 0 : index
    %c0_74 = arith.constant 0 : index
    %199 = vector.load %arg10[%c0_72, %c0_73, %c0_74] : memref<1x8x32xf32, #tpu.memory_space<vmem>>, vector<1x8x32xf32>
    tpu.vector_store %arg10[%c0_72, %c0_73, %c0_74], %198 {strides = array<i32>} : memref<1x8x32xf32, #tpu.memory_space<vmem>>, vector<1x8x32xf32>,
    return
  }
  func.func @transform_0(%arg0: i32) -> (i32, i32, i32) {
    %c0_i32 = arith.constant 0 : i32
    %c0_i32_0 = arith.constant 0 : i32
    %c0_i32_1 = arith.constant 0 : i32
    return %arg0, %c0_i32, %c0_i32_0 : i32, i32, i32
  }
  func.func @transform_1(%arg0: i32) -> (i32, i32, i32) {
    %c0_i32 = arith.constant 0 : i32
    %c0_i32_0 = arith.constant 0 : i32
    %c0_i32_1 = arith.constant 0 : i32
    %c0_i32_2 = arith.constant 0 : i32
    return %c0_i32, %c0_i32_0, %c0_i32_1 : i32, i32, i32
  }
  func.func @transform_2(%arg0: i32) -> (i32, i32, i32) {
    %c0_i32 = arith.constant 0 : i32
    %c0_i32_0 = arith.constant 0 : i32
    %c0_i32_1 = arith.constant 0 : i32
    %c0_i32_2 = arith.constant 0 : i32
    return %c0_i32, %c0_i32_0, %c0_i32_1 : i32, i32, i32
  }
  func.func @transform_3(%arg0: i32) -> (i32, i32) {
    %c0_i32 = arith.constant 0 : i32
    %c0_i32_0 = arith.constant 0 : i32
    %c0_i32_1 = arith.constant 0 : i32
    return %c0_i32, %c0_i32_0 : i32, i32
  }
  func.func @transform_4(%arg0: i32) -> (i32, i32) {
    %c0_i32 = arith.constant 0 : i32
    %c0_i32_0 = arith.constant 0 : i32
    %c0_i32_1 = arith.constant 0 : i32
    return %c0_i32, %c0_i32_0 : i32, i32
  }
  func.func @transform_5(%arg0: i32) -> (i32, i32) {
    %c0_i32 = arith.constant 0 : i32
    %c0_i32_0 = arith.constant 0 : i32
    %c0_i32_1 = arith.constant 0 : i32
    return %c0_i32, %c0_i32_0 : i32, i32
  }
  func.func @transform_6(%arg0: i32) -> (i32, i32) {
    %c0_i32 = arith.constant 0 : i32
    %c0_i32_0 = arith.constant 0 : i32
    %c0_i32_1 = arith.constant 0 : i32
    return %c0_i32, %c0_i32_0 : i32, i32
  }
  func.func @transform_7(%arg0: i32) -> (i32, i32) {
    %c0_i32 = arith.constant 0 : i32
    %c0_i32_0 = arith.constant 0 : i32
    %c0_i32_1 = arith.constant 0 : i32
    return %c0_i32, %c0_i32_0 : i32, i32
  }
  func.func @transform_8(%arg0: i32) -> (i32, i32) {
    %c0_i32 = arith.constant 0 : i32
    %c0_i32_0 = arith.constant 0 : i32
    %c0_i32_1 = arith.constant 0 : i32
    return %c0_i32, %c0_i32_0 : i32, i32
  }
  func.func @transform_9(%arg0: i32) -> (i32, i32, i32) {
    %c0_i32 = arith.constant 0 : i32
    %c0_i32_0 = arith.constant 0 : i32
    %c0_i32_1 = arith.constant 0 : i32
    return %arg0, %c0_i32, %c0_i32_0 : i32, i32, i32
  }
}

module attributes {stable_mosaic.version = 11 : i64} {
  func.func @encoder_block_kernel(%arg0: i32, %arg1: memref<1x8x32xf32, #tpu.memory_space<vmem>>, %arg2: memref<4x32x24xbf16, #tpu.memory_space<vmem>>, %arg3: memref<4x1x24xf32, #tpu.memory_space<vmem>>, %arg4: memref<32x32xbf16, #tpu.memory_space<vmem>>, %arg5: memref<1x32xf32, #tpu.memory_space<vmem>>, %arg6: memref<32x64xbf16, #tpu.memory_space<vmem>>, %arg7: memref<1x64xf32, #tpu.memory_space<vmem>>, %arg8: memref<64x32xbf16, #tpu.memory_space<vmem>>, %arg9: memref<1x32xf32, #tpu.memory_space<vmem>>, %arg10: memref<1x8x32xf32, #tpu.memory_space<vmem>>) attributes {dimension_semantics = [#tpu.dimension_semantics<parallel>], iteration_bounds = array<i64: 2>, scalar_prefetch = 0 : i64, scratch_operands = 0 : i64, tpu.core_type = #tpu.core_type<tc>, window_params = [{transform_indices = @transform_0, window_bounds = array<i64: 1, 8, 32>}, {pipeline_mode = #tpu.pipeline_mode<synchronous>, transform_indices = @transform_1, window_bounds = array<i64: 4, 32, 24>}, {pipeline_mode = #tpu.pipeline_mode<synchronous>, transform_indices = @transform_2, window_bounds = array<i64: 4, 1, 24>}, {pipeline_mode = #tpu.pipeline_mode<synchronous>, transform_indices = @transform_3, window_bounds = array<i64: 32, 32>}, {pipeline_mode = #tpu.pipeline_mode<synchronous>, transform_indices = @transform_4, window_bounds = array<i64: 1, 32>}, {pipeline_mode = #tpu.pipeline_mode<synchronous>, transform_indices = @transform_5, window_bounds = array<i64: 32, 64>}, {pipeline_mode = #tpu.pipeline_mode<synchronous>, transform_indices = @transform_6, window_bounds = array<i64: 1, 64>}, {pipeline_mode = #tpu.pipeline_mode<synchronous>, transform_indices = @transform_7, window_bounds = array<i64: 64, 32>}, {pipeline_mode = #tpu.pipeline_mode<synchronous>, transform_indices = @transform_8, window_bounds = array<i64: 1, 32>}, {transform_indices = @transform_9, window_bounds = array<i64: 1, 8, 32>}]} {
    %c0 = arith.constant 0 : index
    %c0_0 = arith.constant 0 : index
    %c0_1 = arith.constant 0 : index
    %0 = vector.load %arg1[%c0, %c0_0, %c0_1] : memref<1x8x32xf32, #tpu.memory_space<vmem>>, vector<1x8x32xf32>
    %1 = vector.shape_cast %0 : vector<1x8x32xf32> to vector<8x32xf32>
    %cst = arith.constant dense<0.000000e+00> : vector<8xf32>
    %2 = vector.multi_reduction <add>, %1, %cst [1] : vector<8x32xf32> to vector<8xf32>
    %3 = vector.shape_cast %2 : vector<8xf32> to vector<8x1xf32>
    %cst_2 = arith.constant 3.200000e+01 : f32
    %4 = vector.broadcast %cst_2 : f32 to vector<8x1xf32>
    %5 = arith.divf %3, %4 : vector<8x1xf32>
    %6 = vector.broadcast %5 : vector<8x1xf32> to vector<8x32xf32>
    %7 = arith.subf %1, %6 : vector<8x32xf32>
    %8 = arith.mulf %7, %7 : vector<8x32xf32>
    %cst_3 = arith.constant dense<0.000000e+00> : vector<8xf32>
    %9 = vector.multi_reduction <add>, %8, %cst_3 [1] : vector<8x32xf32> to vector<8xf32>
    %10 = vector.shape_cast %9 : vector<8xf32> to vector<8x1xf32>
    %cst_4 = arith.constant 0.0322580636 : f32
    %11 = vector.broadcast %cst_4 : f32 to vector<8x1xf32>
    %12 = arith.mulf %10, %11 : vector<8x1xf32>
    %13 = math.sqrt %12 : vector<8x1xf32>
    %cst_5 = arith.constant 9.99999997E-7 : f32
    %14 = vector.broadcast %cst_5 : f32 to vector<8x1xf32>
    %15 = arith.addf %13, %14 : vector<8x1xf32>
    %16 = vector.broadcast %5 : vector<8x1xf32> to vector<8x32xf32>
    %17 = arith.subf %1, %16 : vector<8x32xf32>
    %18 = vector.broadcast %15 : vector<8x1xf32> to vector<8x32xf32>
    %19 = arith.divf %17, %18 : vector<8x32xf32>
    %20 = arith.truncf %19 : vector<8x32xf32> to vector<8x32xbf16>
    %c0_6 = arith.constant 0 : index
    %c0_7 = arith.constant 0 : index
    %c0_8 = arith.constant 0 : index
    %21 = vector.load %arg2[%c0_6, %c0_7, %c0_8] : memref<4x32x24xbf16, #tpu.memory_space<vmem>>, vector<1x32x24xbf16>
    %22 = vector.shape_cast %21 : vector<1x32x24xbf16> to vector<32x24xbf16>
    %cst_9 = arith.constant dense<0.000000e+00> : vector<8x24xf32>
    %23 = tpu.matmul %20, %22, %cst_9 {dimension_numbers = #tpu.dot_dimension_numbers<[1], [0], [0], [1], [0, 0, 1, 1], [], []>} : vector<8x32xbf16>, vector<32x24xbf16>, vector<8x24xf32> -> vector<8x24xf32>
    %c0_10 = arith.constant 0 : index
    %c0_11 = arith.constant 0 : index
    %c0_12 = arith.constant 0 : index
    %24 = vector.load %arg3[%c0_10, %c0_11, %c0_12] : memref<4x1x24xf32, #tpu.memory_space<vmem>>, vector<1x1x24xf32>
    %25 = vector.shape_cast %24 : vector<1x1x24xf32> to vector<1x24xf32>
    %26 = vector.broadcast %25 : vector<1x24xf32> to vector<8x24xf32>
    %27 = arith.addf %23, %26 : vector<8x24xf32>
    %28 = vector.extract_strided_slice %27 {offsets = [0, 0], sizes = [8, 8], strides = [1, 1]} : vector<8x24xf32> to vector<8x8xf32>
    %29 = vector.extract_strided_slice %27 {offsets = [0, 8], sizes = [8, 8], strides = [1, 1]} : vector<8x24xf32> to vector<8x8xf32>
    %30 = vector.extract_strided_slice %27 {offsets = [0, 16], sizes = [8, 8], strides = [1, 1]} : vector<8x24xf32> to vector<8x8xf32>
    %31 = vector.shape_cast %28 : vector<8x8xf32> to vector<1x8x8xf32>
    %32 = arith.truncf %31 : vector<1x8x8xf32> to vector<1x8x8xbf16>
    %33 = vector.shape_cast %29 : vector<8x8xf32> to vector<1x8x8xf32>
    %34 = arith.truncf %33 : vector<1x8x8xf32> to vector<1x8x8xbf16>
    %35 = vector.shape_cast %30 : vector<8x8xf32> to vector<1x8x8xf32>
    %36 = arith.truncf %35 : vector<1x8x8xf32> to vector<1x8x8xbf16>
    "tpu.trace_start"() <{level = 10 : i32, message = "bqc,bkc->bqk"}> : () -> ()
    %cst_13 = arith.constant dense<0.000000e+00> : vector<1x8x8xf32>
    %37 = tpu.matmul %32, %34, %cst_13 {dimension_numbers = #tpu.dot_dimension_numbers<[2], [2], [1], [1], [0, 0, 0, 1, 1, 1], [0], [0]>} : vector<1x8x8xbf16>, vector<1x8x8xbf16>, vector<1x8x8xf32> -> vector<1x8x8xf32>
    "tpu.trace_stop"() : () -> ()
    %cst_14 = arith.constant 0.353553385 : f32
    %38 = vector.broadcast %cst_14 : f32 to vector<1x8x8xf32>
    %39 = arith.mulf %37, %38 : vector<1x8x8xf32>
    %40 = math.floor %39 : vector<1x8x8xf32>
    %cst_15 = arith.constant dense<0xFF800000> : vector<1x8xf32>
    %41 = vector.multi_reduction <maximumf>, %40, %cst_15 [2] : vector<1x8x8xf32> to vector<1x8xf32>
    %42 = vector.shape_cast %41 : vector<1x8xf32> to vector<1x8x1xf32>
    %43 = vector.broadcast %42 : vector<1x8x1xf32> to vector<1x8x8xf32>
    %44 = arith.subf %40, %43 : vector<1x8x8xf32>
    %45 = math.exp %44 : vector<1x8x8xf32>
    %cst_16 = arith.constant dense<0.000000e+00> : vector<1x8xf32>
    %46 = vector.multi_reduction <add>, %45, %cst_16 [2] : vector<1x8x8xf32> to vector<1x8xf32>
    %47 = vector.shape_cast %46 : vector<1x8xf32> to vector<1x8x1xf32>
    %48 = tpu.reciprocal %47 {approx = true} : vector<1x8x1xf32> -> vector<1x8x1xf32>
    %49 = vector.broadcast %48 : vector<1x8x1xf32> to vector<1x8x8xf32>
    %50 = arith.mulf %45, %49 : vector<1x8x8xf32>
    %51 = arith.truncf %50 : vector<1x8x8xf32> to vector<1x8x8xbf16>
    "tpu.trace_start"() <{level = 10 : i32, message = "bqk,bkc->bqc"}> : () -> ()
    %cst_17 = arith.constant dense<0.000000e+00> : vector<1x8x8xf32>
    %52 = tpu.matmul %51, %36, %cst_17 {dimension_numbers = #tpu.dot_dimension_numbers<[2], [1], [1], [2], [0, 0, 0, 1, 1, 2], [0], [0]>} : vector<1x8x8xbf16>, vector<1x8x8xbf16>, vector<1x8x8xf32> -> vector<1x8x8xf32>
    "tpu.trace_stop"() : () -> ()
    %53 = vector.shape_cast %52 : vector<1x8x8xf32> to vector<8x8xf32>
    %54 = arith.truncf %53 : vector<8x8xf32> to vector<8x8xbf16>
    %c1 = arith.constant 1 : index
    %c0_18 = arith.constant 0 : index
    %c0_19 = arith.constant 0 : index
    %55 = vector.load %arg2[%c1, %c0_18, %c0_19] : memref<4x32x24xbf16, #tpu.memory_space<vmem>>, vector<1x32x24xbf16>
    %56 = vector.shape_cast %55 : vector<1x32x24xbf16> to vector<32x24xbf16>
    %cst_20 = arith.constant dense<0.000000e+00> : vector<8x24xf32>
    %57 = tpu.matmul %20, %56, %cst_20 {dimension_numbers = #tpu.dot_dimension_numbers<[1], [0], [0], [1], [0, 0, 1, 1], [], []>} : vector<8x32xbf16>, vector<32x24xbf16>, vector<8x24xf32> -> vector<8x24xf32>
    %c1_21 = arith.constant 1 : index
    %c0_22 = arith.constant 0 : index
    %c0_23 = arith.constant 0 : index
    %58 = vector.load %arg3[%c1_21, %c0_22, %c0_23] : memref<4x1x24xf32, #tpu.memory_space<vmem>>, vector<1x1x24xf32>
    %59 = vector.shape_cast %58 : vector<1x1x24xf32> to vector<1x24xf32>
    %60 = vector.broadcast %59 : vector<1x24xf32> to vector<8x24xf32>
    %61 = arith.addf %57, %60 : vector<8x24xf32>
    %62 = vector.extract_strided_slice %61 {offsets = [0, 0], sizes = [8, 8], strides = [1, 1]} : vector<8x24xf32> to vector<8x8xf32>
    %63 = vector.extract_strided_slice %61 {offsets = [0, 8], sizes = [8, 8], strides = [1, 1]} : vector<8x24xf32> to vector<8x8xf32>
    %64 = vector.extract_strided_slice %61 {offsets = [0, 16], sizes = [8, 8], strides = [1, 1]} : vector<8x24xf32> to vector<8x8xf32>
    %65 = vector.shape_cast %62 : vector<8x8xf32> to vector<1x8x8xf32>
    %66 = arith.truncf %65 : vector<1x8x8xf32> to vector<1x8x8xbf16>
    %67 = vector.shape_cast %63 : vector<8x8xf32> to vector<1x8x8xf32>
    %68 = arith.truncf %67 : vector<1x8x8xf32> to vector<1x8x8xbf16>
    %69 = vector.shape_cast %64 : vector<8x8xf32> to vector<1x8x8xf32>
    %70 = arith.truncf %69 : vector<1x8x8xf32> to vector<1x8x8xbf16>
    "tpu.trace_start"() <{level = 10 : i32, message = "bqc,bkc->bqk"}> : () -> ()
    %cst_24 = arith.constant dense<0.000000e+00> : vector<1x8x8xf32>
    %71 = tpu.matmul %66, %68, %cst_24 {dimension_numbers = #tpu.dot_dimension_numbers<[2], [2], [1], [1], [0, 0, 0, 1, 1, 1], [0], [0]>} : vector<1x8x8xbf16>, vector<1x8x8xbf16>, vector<1x8x8xf32> -> vector<1x8x8xf32>
    "tpu.trace_stop"() : () -> ()
    %cst_25 = arith.constant 0.353553385 : f32
    %72 = vector.broadcast %cst_25 : f32 to vector<1x8x8xf32>
    %73 = arith.mulf %71, %72 : vector<1x8x8xf32>
    %74 = math.floor %73 : vector<1x8x8xf32>
    %cst_26 = arith.constant dense<0xFF800000> : vector<1x8xf32>
    %75 = vector.multi_reduction <maximumf>, %74, %cst_26 [2] : vector<1x8x8xf32> to vector<1x8xf32>
    %76 = vector.shape_cast %75 : vector<1x8xf32> to vector<1x8x1xf32>
    %77 = vector.broadcast %76 : vector<1x8x1xf32> to vector<1x8x8xf32>
    %78 = arith.subf %74, %77 : vector<1x8x8xf32>
    %79 = math.exp %78 : vector<1x8x8xf32>
    %cst_27 = arith.constant dense<0.000000e+00> : vector<1x8xf32>
    %80 = vector.multi_reduction <add>, %79, %cst_27 [2] : vector<1x8x8xf32> to vector<1x8xf32>
    %81 = vector.shape_cast %80 : vector<1x8xf32> to vector<1x8x1xf32>
    %82 = tpu.reciprocal %81 {approx = true} : vector<1x8x1xf32> -> vector<1x8x1xf32>
    %83 = vector.broadcast %82 : vector<1x8x1xf32> to vector<1x8x8xf32>
    %84 = arith.mulf %79, %83 : vector<1x8x8xf32>
    %85 = arith.truncf %84 : vector<1x8x8xf32> to vector<1x8x8xbf16>
    "tpu.trace_start"() <{level = 10 : i32, message = "bqk,bkc->bqc"}> : () -> ()
    %cst_28 = arith.constant dense<0.000000e+00> : vector<1x8x8xf32>
    %86 = tpu.matmul %85, %70, %cst_28 {dimension_numbers = #tpu.dot_dimension_numbers<[2], [1], [1], [2], [0, 0, 0, 1, 1, 2], [0], [0]>} : vector<1x8x8xbf16>, vector<1x8x8xbf16>, vector<1x8x8xf32> -> vector<1x8x8xf32>
    "tpu.trace_stop"() : () -> ()
    %87 = vector.shape_cast %86 : vector<1x8x8xf32> to vector<8x8xf32>
    %88 = arith.truncf %87 : vector<8x8xf32> to vector<8x8xbf16>
    %c2 = arith.constant 2 : index
    %c0_29 = arith.constant 0 : index
    %c0_30 = arith.constant 0 : index
    %89 = vector.load %arg2[%c2, %c0_29, %c0_30] : memref<4x32x24xbf16, #tpu.memory_space<vmem>>, vector<1x32x24xbf16>
    %90 = vector.shape_cast %89 : vector<1x32x24xbf16> to vector<32x24xbf16>
    %cst_31 = arith.constant dense<0.000000e+00> : vector<8x24xf32>
    %91 = tpu.matmul %20, %90, %cst_31 {dimension_numbers = #tpu.dot_dimension_numbers<[1], [0], [0], [1], [0, 0, 1, 1], [], []>} : vector<8x32xbf16>, vector<32x24xbf16>, vector<8x24xf32> -> vector<8x24xf32>
    %c2_32 = arith.constant 2 : index
    %c0_33 = arith.constant 0 : index
    %c0_34 = arith.constant 0 : index
    %92 = vector.load %arg3[%c2_32, %c0_33, %c0_34] : memref<4x1x24xf32, #tpu.memory_space<vmem>>, vector<1x1x24xf32>
    %93 = vector.shape_cast %92 : vector<1x1x24xf32> to vector<1x24xf32>
    %94 = vector.broadcast %93 : vector<1x24xf32> to vector<8x24xf32>
    %95 = arith.addf %91, %94 : vector<8x24xf32>
    %96 = vector.extract_strided_slice %95 {offsets = [0, 0], sizes = [8, 8], strides = [1, 1]} : vector<8x24xf32> to vector<8x8xf32>
    %97 = vector.extract_strided_slice %95 {offsets = [0, 8], sizes = [8, 8], strides = [1, 1]} : vector<8x24xf32> to vector<8x8xf32>
    %98 = vector.extract_strided_slice %95 {offsets = [0, 16], sizes = [8, 8], strides = [1, 1]} : vector<8x24xf32> to vector<8x8xf32>
    %99 = vector.shape_cast %96 : vector<8x8xf32> to vector<1x8x8xf32>
    %100 = arith.truncf %99 : vector<1x8x8xf32> to vector<1x8x8xbf16>
    %101 = vector.shape_cast %97 : vector<8x8xf32> to vector<1x8x8xf32>
    %102 = arith.truncf %101 : vector<1x8x8xf32> to vector<1x8x8xbf16>
    %103 = vector.shape_cast %98 : vector<8x8xf32> to vector<1x8x8xf32>
    %104 = arith.truncf %103 : vector<1x8x8xf32> to vector<1x8x8xbf16>
    "tpu.trace_start"() <{level = 10 : i32, message = "bqc,bkc->bqk"}> : () -> ()
    %cst_35 = arith.constant dense<0.000000e+00> : vector<1x8x8xf32>
    %105 = tpu.matmul %100, %102, %cst_35 {dimension_numbers = #tpu.dot_dimension_numbers<[2], [2], [1], [1], [0, 0, 0, 1, 1, 1], [0], [0]>} : vector<1x8x8xbf16>, vector<1x8x8xbf16>, vector<1x8x8xf32> -> vector<1x8x8xf32>
    "tpu.trace_stop"() : () -> ()
    %cst_36 = arith.constant 0.353553385 : f32
    %106 = vector.broadcast %cst_36 : f32 to vector<1x8x8xf32>
    %107 = arith.mulf %105, %106 : vector<1x8x8xf32>
    %108 = math.floor %107 : vector<1x8x8xf32>
    %cst_37 = arith.constant dense<0xFF800000> : vector<1x8xf32>
    %109 = vector.multi_reduction <maximumf>, %108, %cst_37 [2] : vector<1x8x8xf32> to vector<1x8xf32>
    %110 = vector.shape_cast %109 : vector<1x8xf32> to vector<1x8x1xf32>
    %111 = vector.broadcast %110 : vector<1x8x1xf32> to vector<1x8x8xf32>
    %112 = arith.subf %108, %111 : vector<1x8x8xf32>
    %113 = math.exp %112 : vector<1x8x8xf32>
    %cst_38 = arith.constant dense<0.000000e+00> : vector<1x8xf32>
    %114 = vector.multi_reduction <add>, %113, %cst_38 [2] : vector<1x8x8xf32> to vector<1x8xf32>
    %115 = vector.shape_cast %114 : vector<1x8xf32> to vector<1x8x1xf32>
    %116 = tpu.reciprocal %115 {approx = true} : vector<1x8x1xf32> -> vector<1x8x1xf32>
    %117 = vector.broadcast %116 : vector<1x8x1xf32> to vector<1x8x8xf32>
    %118 = arith.mulf %113, %117 : vector<1x8x8xf32>
    %119 = arith.truncf %118 : vector<1x8x8xf32> to vector<1x8x8xbf16>
    "tpu.trace_start"() <{level = 10 : i32, message = "bqk,bkc->bqc"}> : () -> ()
    %cst_39 = arith.constant dense<0.000000e+00> : vector<1x8x8xf32>
    %120 = tpu.matmul %119, %104, %cst_39 {dimension_numbers = #tpu.dot_dimension_numbers<[2], [1], [1], [2], [0, 0, 0, 1, 1, 2], [0], [0]>} : vector<1x8x8xbf16>, vector<1x8x8xbf16>, vector<1x8x8xf32> -> vector<1x8x8xf32>
    "tpu.trace_stop"() : () -> ()
    %121 = vector.shape_cast %120 : vector<1x8x8xf32> to vector<8x8xf32>
    %122 = arith.truncf %121 : vector<8x8xf32> to vector<8x8xbf16>
    %c3 = arith.constant 3 : index
    %c0_40 = arith.constant 0 : index
    %c0_41 = arith.constant 0 : index
    %123 = vector.load %arg2[%c3, %c0_40, %c0_41] : memref<4x32x24xbf16, #tpu.memory_space<vmem>>, vector<1x32x24xbf16>
    %124 = vector.shape_cast %123 : vector<1x32x24xbf16> to vector<32x24xbf16>
    %cst_42 = arith.constant dense<0.000000e+00> : vector<8x24xf32>
    %125 = tpu.matmul %20, %124, %cst_42 {dimension_numbers = #tpu.dot_dimension_numbers<[1], [0], [0], [1], [0, 0, 1, 1], [], []>} : vector<8x32xbf16>, vector<32x24xbf16>, vector<8x24xf32> -> vector<8x24xf32>
    %c3_43 = arith.constant 3 : index
    %c0_44 = arith.constant 0 : index
    %c0_45 = arith.constant 0 : index
    %126 = vector.load %arg3[%c3_43, %c0_44, %c0_45] : memref<4x1x24xf32, #tpu.memory_space<vmem>>, vector<1x1x24xf32>
    %127 = vector.shape_cast %126 : vector<1x1x24xf32> to vector<1x24xf32>
    %128 = vector.broadcast %127 : vector<1x24xf32> to vector<8x24xf32>
    %129 = arith.addf %125, %128 : vector<8x24xf32>
    %130 = vector.extract_strided_slice %129 {offsets = [0, 0], sizes = [8, 8], strides = [1, 1]} : vector<8x24xf32> to vector<8x8xf32>
    %131 = vector.extract_strided_slice %129 {offsets = [0, 8], sizes = [8, 8], strides = [1, 1]} : vector<8x24xf32> to vector<8x8xf32>
    %132 = vector.extract_strided_slice %129 {offsets = [0, 16], sizes = [8, 8], strides = [1, 1]} : vector<8x24xf32> to vector<8x8xf32>
    %133 = vector.shape_cast %130 : vector<8x8xf32> to vector<1x8x8xf32>
    %134 = arith.truncf %133 : vector<1x8x8xf32> to vector<1x8x8xbf16>
    %135 = vector.shape_cast %131 : vector<8x8xf32> to vector<1x8x8xf32>
    %136 = arith.truncf %135 : vector<1x8x8xf32> to vector<1x8x8xbf16>
    %137 = vector.shape_cast %132 : vector<8x8xf32> to vector<1x8x8xf32>
    %138 = arith.truncf %137 : vector<1x8x8xf32> to vector<1x8x8xbf16>
    "tpu.trace_start"() <{level = 10 : i32, message = "bqc,bkc->bqk"}> : () -> ()
    %cst_46 = arith.constant dense<0.000000e+00> : vector<1x8x8xf32>
    %139 = tpu.matmul %134, %136, %cst_46 {dimension_numbers = #tpu.dot_dimension_numbers<[2], [2], [1], [1], [0, 0, 0, 1, 1, 1], [0], [0]>} : vector<1x8x8xbf16>, vector<1x8x8xbf16>, vector<1x8x8xf32> -> vector<1x8x8xf32>
    "tpu.trace_stop"() : () -> ()
    %cst_47 = arith.constant 0.353553385 : f32
    %140 = vector.broadcast %cst_47 : f32 to vector<1x8x8xf32>
    %141 = arith.mulf %139, %140 : vector<1x8x8xf32>
    %142 = math.floor %141 : vector<1x8x8xf32>
    %cst_48 = arith.constant dense<0xFF800000> : vector<1x8xf32>
    %143 = vector.multi_reduction <maximumf>, %142, %cst_48 [2] : vector<1x8x8xf32> to vector<1x8xf32>
    %144 = vector.shape_cast %143 : vector<1x8xf32> to vector<1x8x1xf32>
    %145 = vector.broadcast %144 : vector<1x8x1xf32> to vector<1x8x8xf32>
    %146 = arith.subf %142, %145 : vector<1x8x8xf32>
    %147 = math.exp %146 : vector<1x8x8xf32>
    %cst_49 = arith.constant dense<0.000000e+00> : vector<1x8xf32>
    %148 = vector.multi_reduction <add>, %147, %cst_49 [2] : vector<1x8x8xf32> to vector<1x8xf32>
    %149 = vector.shape_cast %148 : vector<1x8xf32> to vector<1x8x1xf32>
    %150 = tpu.reciprocal %149 {approx = true} : vector<1x8x1xf32> -> vector<1x8x1xf32>
    %151 = vector.broadcast %150 : vector<1x8x1xf32> to vector<1x8x8xf32>
    %152 = arith.mulf %147, %151 : vector<1x8x8xf32>
    %153 = arith.truncf %152 : vector<1x8x8xf32> to vector<1x8x8xbf16>
    "tpu.trace_start"() <{level = 10 : i32, message = "bqk,bkc->bqc"}> : () -> ()
    %cst_50 = arith.constant dense<0.000000e+00> : vector<1x8x8xf32>
    %154 = tpu.matmul %153, %138, %cst_50 {dimension_numbers = #tpu.dot_dimension_numbers<[2], [1], [1], [2], [0, 0, 0, 1, 1, 2], [0], [0]>} : vector<1x8x8xbf16>, vector<1x8x8xbf16>, vector<1x8x8xf32> -> vector<1x8x8xf32>
    "tpu.trace_stop"() : () -> ()
    %155 = vector.shape_cast %154 : vector<1x8x8xf32> to vector<8x8xf32>
    %156 = arith.truncf %155 : vector<8x8xf32> to vector<8x8xbf16>
    %157 = tpu.concatenate %54, %88, %122, %156 in 1 : vector<8x8xbf16>, vector<8x8xbf16>, vector<8x8xbf16>, vector<8x8xbf16> -> vector<8x32xbf16>
    %c0_51 = arith.constant 0 : index
    %c0_52 = arith.constant 0 : index
    %158 = vector.load %arg4[%c0_51, %c0_52] : memref<32x32xbf16, #tpu.memory_space<vmem>>, vector<32x32xbf16>
    %cst_53 = arith.constant dense<0.000000e+00> : vector<8x32xf32>
    %159 = tpu.matmul %157, %158, %cst_53 {dimension_numbers = #tpu.dot_dimension_numbers<[1], [0], [0], [1], [0, 0, 1, 1], [], []>} : vector<8x32xbf16>, vector<32x32xbf16>, vector<8x32xf32> -> vector<8x32xf32>
    %160 = arith.addf %1, %159 : vector<8x32xf32>
    %c0_54 = arith.constant 0 : index
    %c0_55 = arith.constant 0 : index
    %161 = vector.load %arg5[%c0_54, %c0_55] : memref<1x32xf32, #tpu.memory_space<vmem>>, vector<1x32xf32>
    %162 = vector.broadcast %161 : vector<1x32xf32> to vector<8x32xf32>
    %163 = arith.addf %160, %162 : vector<8x32xf32>
    %cst_56 = arith.constant dense<0.000000e+00> : vector<8xf32>
    %164 = vector.multi_reduction <add>, %163, %cst_56 [1] : vector<8x32xf32> to vector<8xf32>
    %165 = vector.shape_cast %164 : vector<8xf32> to vector<8x1xf32>
    %cst_57 = arith.constant 3.200000e+01 : f32
    %166 = vector.broadcast %cst_57 : f32 to vector<8x1xf32>
    %167 = arith.divf %165, %166 : vector<8x1xf32>
    %168 = vector.broadcast %167 : vector<8x1xf32> to vector<8x32xf32>
    %169 = arith.subf %163, %168 : vector<8x32xf32>
    %170 = arith.mulf %169, %169 : vector<8x32xf32>
    %cst_58 = arith.constant dense<0.000000e+00> : vector<8xf32>
    %171 = vector.multi_reduction <add>, %170, %cst_58 [1] : vector<8x32xf32> to vector<8xf32>
    %172 = vector.shape_cast %171 : vector<8xf32> to vector<8x1xf32>
    %cst_59 = arith.constant 0.0322580636 : f32
    %173 = vector.broadcast %cst_59 : f32 to vector<8x1xf32>
    %174 = arith.mulf %172, %173 : vector<8x1xf32>
    %175 = math.sqrt %174 : vector<8x1xf32>
    %cst_60 = arith.constant 9.99999997E-7 : f32
    %176 = vector.broadcast %cst_60 : f32 to vector<8x1xf32>
    %177 = arith.addf %175, %176 : vector<8x1xf32>
    %178 = vector.broadcast %167 : vector<8x1xf32> to vector<8x32xf32>
    %179 = arith.subf %163, %178 : vector<8x32xf32>
    %180 = tpu.reciprocal %177 {approx = true} : vector<8x1xf32> -> vector<8x1xf32>
    %181 = vector.broadcast %180 : vector<8x1xf32> to vector<8x32xf32>
    %182 = arith.mulf %179, %181 : vector<8x32xf32>
    %183 = arith.truncf %182 : vector<8x32xf32> to vector<8x32xbf16>
    %c0_61 = arith.constant 0 : index
    %c0_62 = arith.constant 0 : index
    %184 = vector.load %arg6[%c0_61, %c0_62] : memref<32x64xbf16, #tpu.memory_space<vmem>>, vector<32x64xbf16>
    %cst_63 = arith.constant dense<0.000000e+00> : vector<8x64xf32>
    %185 = tpu.matmul %183, %184, %cst_63 {dimension_numbers = #tpu.dot_dimension_numbers<[1], [0], [0], [1], [0, 0, 1, 1], [], []>} : vector<8x32xbf16>, vector<32x64xbf16>, vector<8x64xf32> -> vector<8x64xf32>
    %c0_64 = arith.constant 0 : index
    %c0_65 = arith.constant 0 : index
    %186 = vector.load %arg7[%c0_64, %c0_65] : memref<1x64xf32, #tpu.memory_space<vmem>>, vector<1x64xf32>
    %187 = vector.broadcast %186 : vector<1x64xf32> to vector<8x64xf32>
    %188 = arith.addf %185, %187 : vector<8x64xf32>
    %cst_66 = arith.constant 0.000000e+00 : f32
    %189 = vector.broadcast %cst_66 : f32 to vector<8x64xf32>
    %190 = arith.maximumf %188, %189 : vector<8x64xf32>
    %191 = arith.truncf %190 : vector<8x64xf32> to vector<8x64xbf16>
    %c0_67 = arith.constant 0 : index
    %c0_68 = arith.constant 0 : index
    %192 = vector.load %arg8[%c0_67, %c0_68] : memref<64x32xbf16, #tpu.memory_space<vmem>>, vector<64x32xbf16>
    %cst_69 = arith.constant dense<0.000000e+00> : vector<8x32xf32>
    %193 = tpu.matmul %191, %192, %cst_69 {dimension_numbers = #tpu.dot_dimension_numbers<[1], [0], [0], [1], [0, 0, 1, 1], [], []>} : vector<8x64xbf16>, vector<64x32xbf16>, vector<8x32xf32> -> vector<8x32xf32>
    %c0_70 = arith.constant 0 : index
    %c0_71 = arith.constant 0 : index
    %194 = vector.load %arg9[%c0_70, %c0_71] : memref<1x32xf32, #tpu.memory_space<vmem>>, vector<1x32xf32>
    %195 = vector.broadcast %194 : vector<1x32xf32> to vector<8x32xf32>
    %196 = arith.addf %193, %195 : vector<8x32xf32>
    %197 = arith.addf %163, %196 : vector<8x32xf32>
    %198 = vector.shape_cast %197 : vector<8x32xf32> to vector<1x8x32xf32>
    %c0_72 = arith.constant 0 : index
    %c0_73 = arith.constant 0 : index
    %c0_74 = arith.constant 0 : index
    %199 = vector.load %arg10[%c0_72, %c0_73, %c0_74] : memref<1x8x32xf32, #tpu.memory_space<vmem>>, vector<1x8x32xf32>
    tpu.vector_store %arg10[%c0_72, %c0_73, %c0_74], %198 {strides = array<i32>} : memref<1x8x32xf32, #tpu.memory_space<vmem>>, vector<1x8x32xf32>,
    return
  }
  func.func @transform_0(%arg0: i32) -> (i32, i32, i32) {
    %c0_i32 = arith.constant 0 : i32
    %c0_i32_0 = arith.constant 0 : i32
    %c0_i32_1 = arith.constant 0 : i32
    return %arg0, %c0_i32, %c0_i32_0 : i32, i32, i32
  }
  func.func @transform_1(%arg0: i32) -> (i32, i32, i32) {
    %c0_i32 = arith.constant 0 : i32
    %c0_i32_0 = arith.constant 0 : i32
    %c0_i32_1 = arith.constant 0 : i32
    %c0_i32_2 = arith.constant 0 : i32
    return %c0_i32, %c0_i32_0, %c0_i32_1 : i32, i32, i32
  }
  func.func @transform_2(%arg0: i32) -> (i32, i32, i32) {
    %c0_i32 = arith.constant 0 : i32
    %c0_i32_0 = arith.constant 0 : i32
    %c0_i32_1 = arith.constant 0 : i32
    %c0_i32_2 = arith.constant 0 : i32
    return %c0_i32, %c0_i32_0, %c0_i32_1 : i32, i32, i32
  }
  func.func @transform_3(%arg0: i32) -> (i32, i32) {
    %c0_i32 = arith.constant 0 : i32
    %c0_i32_0 = arith.constant 0 : i32
    %c0_i32_1 = arith.constant 0 : i32
    return %c0_i32, %c0_i32_0 : i32, i32
  }
  func.func @transform_4(%arg0: i32) -> (i32, i32) {
    %c0_i32 = arith.constant 0 : i32
    %c0_i32_0 = arith.constant 0 : i32
    %c0_i32_1 = arith.constant 0 : i32
    return %c0_i32, %c0_i32_0 : i32, i32
  }
  func.func @transform_5(%arg0: i32) -> (i32, i32) {
    %c0_i32 = arith.constant 0 : i32
    %c0_i32_0 = arith.constant 0 : i32
    %c0_i32_1 = arith.constant 0 : i32
    return %c0_i32, %c0_i32_0 : i32, i32
  }
  func.func @transform_6(%arg0: i32) -> (i32, i32) {
    %c0_i32 = arith.constant 0 : i32
    %c0_i32_0 = arith.constant 0 : i32
    %c0_i32_1 = arith.constant 0 : i32
    return %c0_i32, %c0_i32_0 : i32, i32
  }
  func.func @transform_7(%arg0: i32) -> (i32, i32) {
    %c0_i32 = arith.constant 0 : i32
    %c0_i32_0 = arith.constant 0 : i32
    %c0_i32_1 = arith.constant 0 : i32
    return %c0_i32, %c0_i32_0 : i32, i32
  }
  func.func @transform_8(%arg0: i32) -> (i32, i32) {
    %c0_i32 = arith.constant 0 : i32
    %c0_i32_0 = arith.constant 0 : i32
    %c0_i32_1 = arith.constant 0 : i32
    return %c0_i32, %c0_i32_0 : i32, i32
  }
  func.func @transform_9(%arg0: i32) -> (i32, i32, i32) {
    %c0_i32 = arith.constant 0 : i32
    %c0_i32_0 = arith.constant 0 : i32
    %c0_i32_1 = arith.constant 0 : i32
    return %arg0, %c0_i32, %c0_i32_0 : i32, i32, i32
  }
}

</mosaic_0001>

<llo_original>
// kernel: tpu_custom_call.1
$region0: #{tpu_custom_call.1}
  #allocation0 [shape = 'u32[]', space=smem, size = 0x4, offset = 0x4, fixed_abs, tag = 'smem constant byte address 0x4 - core index']
  #allocation1 [shape = 'u32[144,128]{1,0:T(1,128)}', space=vmem, size = 0x12000, scoped, tag = 'internal scratch']
  %s0 = inlined_call_operand.vmem [shape: f32[2,8,32], index: 0, kind: input, shape index: {}]
  %s1 = inlined_call_operand.vmem [shape: bf16[4,32,24], index: 1, kind: input, shape index: {}]
  %s2 = inlined_call_operand.vmem [shape: f32[4,1,24], index: 2, kind: input, shape index: {}]
  %s3 = inlined_call_operand.vmem [shape: bf16[32,32], index: 3, kind: input, shape index: {}]
  %s4 = inlined_call_operand.vmem [shape: f32[1,32], index: 4, kind: input, shape index: {}]
  %s5 = inlined_call_operand.vmem [shape: bf16[32,64], index: 5, kind: input, shape index: {}]
  %s6 = inlined_call_operand.vmem [shape: f32[1,64], index: 6, kind: input, shape index: {}]
  %s7 = inlined_call_operand.vmem [shape: bf16[64,32], index: 7, kind: input, shape index: {}]
  %s8 = inlined_call_operand.vmem [shape: f32[1,32], index: 8, kind: input, shape index: {}]
  %s9 = inlined_call_operand.hbm [shape: f32[2,8,32], index: 9, kind: output, shape index: {}]
  %s10 = sld [smem:[#allocation0]]
  $region69: #{tpu_custom_call.1} parent=0
    _
  %s12 = ssub.s32 1, %s10
  %s13 = scalar_select 0, %s12, %s10
  $region1: #{tpu_custom_call.1} parent=0
    #allocation2 [shape = 'u8[8192]{0}', space=vmem, size = 0x2000, scoped, tag = 'output window, operand 0']
    #allocation3 [shape = 's32[2]{0}', space=sflag, size = 0x8, scoped, tag = 'scoped memory for tpu_custom_call.1']
    %14 = vsyncpa [#allocation3], 0
    %s15 = scalar_lea.sflag [#allocation3], 1
    %16 = vsyncpa %s15, 0
    loop: start=0, step=1, limit=4
    $region2: #{tpu_custom_call.1} parent=1 // loop_pre_header
      _
    $region3: #{tpu_custom_call.1} parent=1 // loop_header
      %s18 = sphi 0, %s22
      %p19 = scmp.ge.s32.totalorder %s18, 4
      %s28 = sphi 0, %s30
      %s31 = sphi 0, %s28
      %s32 = sphi 0, %s31
      %s48 = sphi 0, %s32
      %s52 = sphi 0, %s52
      %s54 = sphi 0, %s52
      %s55 = sphi 0, %s54
      %s69 = sphi 0, %s55
      %s73 = sphi 0, %s73
      %s75 = sphi 0, %s73
      %s76 = sphi 0, %s75
      %s90 = sphi 0, %s76
      %s94 = sphi 0, %s94
      %s96 = sphi 0, %s94
      %s97 = sphi 0, %s96
      %s111 = sphi 0, %s97
      %s115 = sphi 0, %s115
      %s117 = sphi 0, %s115
      %s118 = sphi 0, %s117
      %s132 = sphi 0, %s118
      %s136 = sphi 0, %s136
      %s138 = sphi 0, %s136
      %s139 = sphi 0, %s138
      %s153 = sphi 0, %s139
      %s157 = sphi 0, %s157
      %s159 = sphi 0, %s157
      %s160 = sphi 0, %s159
      %s174 = sphi 0, %s160
      %s178 = sphi 0, %s178
      %s180 = sphi 0, %s178
      %s181 = sphi 0, %s180
      %s195 = sphi 0, %s181
      %s199 = sphi 0, %s199
      %s201 = sphi 0, %s199
      %s202 = sphi 0, %s201
      %s216 = sphi 0, %s202
      %s222 = sphi 0, %s224
      %s225 = sphi 0, %s222
      %s226 = sphi 0, %s225
      %s242 = sphi 0, %s226
    $region4: #{tpu_custom_call.1} parent=1 // loop_header_branch
      %21 = sbr.rel (%p19) target = $region8
    $region5: #{tpu_custom_call.1} parent=1 // loop_body
      %s23 = ssub.s32 %s18, 1
      %s24 = ssub.s32 %s18, 2
      %s25 = sadd.s32 %s18, 1
      %s26 = ssub.s32 %s18, %s25
      %p27 = scmp.eq.s32.totalorder %s26, 0
      %s29 = sadd.s32 %s28, 1
      %s30 = scalar_select %p27, %s28, %s29
      %p33 = pneg %p27
      %p34 = scmp.eq.s32.totalorder %s18, 1
      %p35 = por %p33, %p34
      %p36 = scmp.ne.s32.totalorder %s28, %s31
      %p37 = scmp.eq.s32.totalorder %s18, 0
      %p38 = por %p36, %p37
      %p39 = scmp.ne.s32.totalorder %s28, %s31
      %p40 = scmp.eq.s32.totalorder %s23, 1
      %p41 = por %p39, %p40
      %p42 = scmp.ne.s32.totalorder %s31, %s32
      %p43 = scmp.eq.s32.totalorder %s23, 0
      %p44 = por %p42, %p43
      %p45 = scmp.ne.s32.totalorder %s31, %s32
      %p46 = scmp.eq.s32.totalorder %s24, 1
      %p47 = por %p45, %p46
      %p49 = scmp.ne.s32.totalorder %s32, %s48
      %p50 = scmp.eq.s32.totalorder %s24, 0
      %p51 = por %p49, %p50
      %s53 = sadd.s32 %s52, 1
      %p56 = scmp.eq.s32.totalorder %s18, 1
      %p57 = scmp.ne.s32.totalorder %s52, %s54
      %p58 = scmp.eq.s32.totalorder %s18, 0
      %p59 = por %p57, %p58
      %p60 = scmp.ne.s32.totalorder %s52, %s54
      %p61 = scmp.eq.s32.totalorder %s23, 1
      %p62 = por %p60, %p61
      %p63 = scmp.ne.s32.totalorder %s54, %s55
      %p64 = scmp.eq.s32.totalorder %s23, 0
      %p65 = por %p63, %p64
      %p66 = scmp.ne.s32.totalorder %s54, %s55
      %p67 = scmp.eq.s32.totalorder %s24, 1
      %p68 = por %p66, %p67
      %p70 = scmp.ne.s32.totalorder %s55, %s69
      %p71 = scmp.eq.s32.totalorder %s24, 0
      %p72 = por %p70, %p71
      %s74 = sadd.s32 %s73, 1
      %p77 = scmp.eq.s32.totalorder %s18, 1
      %p78 = scmp.ne.s32.totalorder %s73, %s75
      %p79 = scmp.eq.s32.totalorder %s18, 0
      %p80 = por %p78, %p79
      %p81 = scmp.ne.s32.totalorder %s73, %s75
      %p82 = scmp.eq.s32.totalorder %s23, 1
      %p83 = por %p81, %p82
      %p84 = scmp.ne.s32.totalorder %s75, %s76
      %p85 = scmp.eq.s32.totalorder %s23, 0
      %p86 = por %p84, %p85
      %p87 = scmp.ne.s32.totalorder %s75, %s76
      %p88 = scmp.eq.s32.totalorder %s24, 1
      %p89 = por %p87, %p88
      %p91 = scmp.ne.s32.totalorder %s76, %s90
      %p92 = scmp.eq.s32.totalorder %s24, 0
      %p93 = por %p91, %p92
      %s95 = sadd.s32 %s94, 1
      %p98 = scmp.eq.s32.totalorder %s18, 1
      %p99 = scmp.ne.s32.totalorder %s94, %s96
      %p100 = scmp.eq.s32.totalorder %s18, 0
      %p101 = por %p99, %p100
      %p102 = scmp.ne.s32.totalorder %s94, %s96
      %p103 = scmp.eq.s32.totalorder %s23, 1
      %p104 = por %p102, %p103
      %p105 = scmp.ne.s32.totalorder %s96, %s97
      %p106 = scmp.eq.s32.totalorder %s23, 0
      %p107 = por %p105, %p106
      %p108 = scmp.ne.s32.totalorder %s96, %s97
      %p109 = scmp.eq.s32.totalorder %s24, 1
      %p110 = por %p108, %p109
      %p112 = scmp.ne.s32.totalorder %s97, %s111
      %p113 = scmp.eq.s32.totalorder %s24, 0
      %p114 = por %p112, %p113
      %s116 = sadd.s32 %s115, 1
      %p119 = scmp.eq.s32.totalorder %s18, 1
      %p120 = scmp.ne.s32.totalorder %s115, %s117
      %p121 = scmp.eq.s32.totalorder %s18, 0
      %p122 = por %p120, %p121
      %p123 = scmp.ne.s32.totalorder %s115, %s117
      %p124 = scmp.eq.s32.totalorder %s23, 1
      %p125 = por %p123, %p124
      %p126 = scmp.ne.s32.totalorder %s117, %s118
      %p127 = scmp.eq.s32.totalorder %s23, 0
      %p128 = por %p126, %p127
      %p129 = scmp.ne.s32.totalorder %s117, %s118
      %p130 = scmp.eq.s32.totalorder %s24, 1
      %p131 = por %p129, %p130
      %p133 = scmp.ne.s32.totalorder %s118, %s132
      %p134 = scmp.eq.s32.totalorder %s24, 0
      %p135 = por %p133, %p134
      %s137 = sadd.s32 %s136, 1
      %p140 = scmp.eq.s32.totalorder %s18, 1
      %p141 = scmp.ne.s32.totalorder %s136, %s138
      %p142 = scmp.eq.s32.totalorder %s18, 0
      %p143 = por %p141, %p142
      %p144 = scmp.ne.s32.totalorder %s136, %s138
      %p145 = scmp.eq.s32.totalorder %s23, 1
      %p146 = por %p144, %p145
      %p147 = scmp.ne.s32.totalorder %s138, %s139
      %p148 = scmp.eq.s32.totalorder %s23, 0
      %p149 = por %p147, %p148
      %p150 = scmp.ne.s32.totalorder %s138, %s139
      %p151 = scmp.eq.s32.totalorder %s24, 1
      %p152 = por %p150, %p151
      %p154 = scmp.ne.s32.totalorder %s139, %s153
      %p155 = scmp.eq.s32.totalorder %s24, 0
      %p156 = por %p154, %p155
      %s158 = sadd.s32 %s157, 1
      %p161 = scmp.eq.s32.totalorder %s18, 1
      %p162 = scmp.ne.s32.totalorder %s157, %s159
      %p163 = scmp.eq.s32.totalorder %s18, 0
      %p164 = por %p162, %p163
      %p165 = scmp.ne.s32.totalorder %s157, %s159
      %p166 = scmp.eq.s32.totalorder %s23, 1
      %p167 = por %p165, %p166
      %p168 = scmp.ne.s32.totalorder %s159, %s160
      %p169 = scmp.eq.s32.totalorder %s23, 0
      %p170 = por %p168, %p169
      %p171 = scmp.ne.s32.totalorder %s159, %s160
      %p172 = scmp.eq.s32.totalorder %s24, 1
      %p173 = por %p171, %p172
      %p175 = scmp.ne.s32.totalorder %s160, %s174
      %p176 = scmp.eq.s32.totalorder %s24, 0
      %p177 = por %p175, %p176
      %s179 = sadd.s32 %s178, 1
      %p182 = scmp.eq.s32.totalorder %s18, 1
      %p183 = scmp.ne.s32.totalorder %s178, %s180
      %p184 = scmp.eq.s32.totalorder %s18, 0
      %p185 = por %p183, %p184
      %p186 = scmp.ne.s32.totalorder %s178, %s180
      %p187 = scmp.eq.s32.totalorder %s23, 1
      %p188 = por %p186, %p187
      %p189 = scmp.ne.s32.totalorder %s180, %s181
      %p190 = scmp.eq.s32.totalorder %s23, 0
      %p191 = por %p189, %p190
      %p192 = scmp.ne.s32.totalorder %s180, %s181
      %p193 = scmp.eq.s32.totalorder %s24, 1
      %p194 = por %p192, %p193
      %p196 = scmp.ne.s32.totalorder %s181, %s195
      %p197 = scmp.eq.s32.totalorder %s24, 0
      %p198 = por %p196, %p197
      %s200 = sadd.s32 %s199, 1
      %p203 = scmp.eq.s32.totalorder %s18, 1
      %p204 = scmp.ne.s32.totalorder %s199, %s201
      %p205 = scmp.eq.s32.totalorder %s18, 0
      %p206 = por %p204, %p205
      %p207 = scmp.ne.s32.totalorder %s199, %s201
      %p208 = scmp.eq.s32.totalorder %s23, 1
      %p209 = por %p207, %p208
      %p210 = scmp.ne.s32.totalorder %s201, %s202
      %p211 = scmp.eq.s32.totalorder %s23, 0
      %p212 = por %p210, %p211
      %p213 = scmp.ne.s32.totalorder %s201, %s202
      %p214 = scmp.eq.s32.totalorder %s24, 1
      %p215 = por %p213, %p214
      %p217 = scmp.ne.s32.totalorder %s202, %s216
      %p218 = scmp.eq.s32.totalorder %s24, 0
      %p219 = por %p217, %p218
      %s220 = ssub.s32 %s18, %s25
      %p221 = scmp.eq.s32.totalorder %s220, 0
      %s223 = sadd.s32 %s222, 1
      %s224 = scalar_select %p221, %s222, %s223
      %p227 = pneg %p221
      %p228 = scmp.eq.s32.totalorder %s18, 1
      %p229 = por %p227, %p228
      %p230 = scmp.ne.s32.totalorder %s222, %s225
      %p231 = scmp.eq.s32.totalorder %s18, 0
      %p232 = por %p230, %p231
      %p233 = scmp.ne.s32.totalorder %s222, %s225
      %p234 = scmp.eq.s32.totalorder %s23, 1
      %p235 = por %p233, %p234
      %p236 = scmp.ne.s32.totalorder %s225, %s226
      %p237 = scmp.eq.s32.totalorder %s23, 0
      %p238 = por %p236, %p237
      %p239 = scmp.ne.s32.totalorder %s225, %s226
      %p240 = scmp.eq.s32.totalorder %s24, 1
      %p241 = por %p239, %p240
      %p243 = scmp.ne.s32.totalorder %s226, %s242
      %p244 = scmp.eq.s32.totalorder %s24, 0
      %p245 = por %p243, %p244
      %p246 = scmp.le.s32.totalorder 1, %s18
      %p247 = scmp.lt.s32.totalorder %s18, 3
      %p248 = pnand %p246, %p247
      %p249 = pneg %p248
      // Predicated region
      $region9: #{tpu_custom_call.1} parent=5 // pred_check
        _
      $region10: #{tpu_custom_call.1} parent=5 // pred_check_branch
        %251 = sbr.rel (%p248) target = $region12
      $region11: #{tpu_custom_call.1} parent=5 // pred_region
        %s252 = ssub.s32 %s18, 1
        // Predicated region
        $region13: #{tpu_custom_call.1} parent=11 // pred_check
          %p253 = pneg %p65
        $region14: #{tpu_custom_call.1} parent=11 // pred_check_branch
          %255 = sbr.rel (%p253) target = $region16
        $region15: #{tpu_custom_call.1} parent=11 // pred_region
          _
        $region16: #{tpu_custom_call.1} parent=11 // pred_fallthru
          _
        // Predicated region
        $region17: #{tpu_custom_call.1} parent=11 // pred_check
          %p256 = pneg %p86
        $region18: #{tpu_custom_call.1} parent=11 // pred_check_branch
          %258 = sbr.rel (%p256) target = $region20
        $region19: #{tpu_custom_call.1} parent=11 // pred_region
          _
        $region20: #{tpu_custom_call.1} parent=11 // pred_fallthru
          _
        // Predicated region
        $region21: #{tpu_custom_call.1} parent=11 // pred_check
          %p259 = pneg %p107
        $region22: #{tpu_custom_call.1} parent=11 // pred_check_branch
          %261 = sbr.rel (%p259) target = $region24
        $region23: #{tpu_custom_call.1} parent=11 // pred_region
          _
        $region24: #{tpu_custom_call.1} parent=11 // pred_fallthru
          _
        // Predicated region
        $region25: #{tpu_custom_call.1} parent=11 // pred_check
          %p262 = pneg %p128
        $region26: #{tpu_custom_call.1} parent=11 // pred_check_branch
          %264 = sbr.rel (%p262) target = $region28
        $region27: #{tpu_custom_call.1} parent=11 // pred_region
          _
        $region28: #{tpu_custom_call.1} parent=11 // pred_fallthru
          _
        // Predicated region
        $region29: #{tpu_custom_call.1} parent=11 // pred_check
          %p265 = pneg %p149
        $region30: #{tpu_custom_call.1} parent=11 // pred_check_branch
          %267 = sbr.rel (%p265) target = $region32
        $region31: #{tpu_custom_call.1} parent=11 // pred_region
          _
        $region32: #{tpu_custom_call.1} parent=11 // pred_fallthru
          _
        // Predicated region
        $region33: #{tpu_custom_call.1} parent=11 // pred_check
          %p268 = pneg %p170
        $region34: #{tpu_custom_call.1} parent=11 // pred_check_branch
          %270 = sbr.rel (%p268) target = $region36
        $region35: #{tpu_custom_call.1} parent=11 // pred_region
          _
        $region36: #{tpu_custom_call.1} parent=11 // pred_fallthru
          _
        // Predicated region
        $region37: #{tpu_custom_call.1} parent=11 // pred_check
          %p271 = pneg %p191
        $region38: #{tpu_custom_call.1} parent=11 // pred_check_branch
          %273 = sbr.rel (%p271) target = $region40
        $region39: #{tpu_custom_call.1} parent=11 // pred_region
          _
        $region40: #{tpu_custom_call.1} parent=11 // pred_fallthru
          _
        // Predicated region
        $region41: #{tpu_custom_call.1} parent=11 // pred_check
          %p274 = pneg %p212
        $region42: #{tpu_custom_call.1} parent=11 // pred_check_branch
          %276 = sbr.rel (%p274) target = $region44
        $region43: #{tpu_custom_call.1} parent=11 // pred_region
          _
        $region44: #{tpu_custom_call.1} parent=11 // pred_fallthru
          _
      $region12: #{tpu_custom_call.1} parent=5 // pred_fallthru
        _
      %p277 = scmp.lt.s32.totalorder %s18, 2
      // Predicated region
      $region45: #{tpu_custom_call.1} parent=5 // pred_check
        %p278 = pneg %p277
      $region46: #{tpu_custom_call.1} parent=5 // pred_check_branch
        %280 = sbr.rel (%p278) target = $region48
      $region47: #{tpu_custom_call.1} parent=5 // pred_region
        // Predicated region
        $region49: #{tpu_custom_call.1} parent=47 // pred_check
          %p281 = pneg %p38
        $region50: #{tpu_custom_call.1} parent=47 // pred_check_branch
          %283 = sbr.rel (%p281) target = $region52
        $region51: #{tpu_custom_call.1} parent=47 // pred_region
          %p284 = scmp.lt.s32.totalorder %s18, 1
          %s285 = scalar_select %p284, %s18, 1
          %s286 = smul.addr %s285, 8
          %s287 = scalar_lea.vmem %s0, %s286
        $region52: #{tpu_custom_call.1} parent=47 // pred_fallthru
          _
      $region48: #{tpu_custom_call.1} parent=5 // pred_fallthru
        _
      %p288 = scmp.le.s32.totalorder 1, %s18
      %p289 = scmp.lt.s32.totalorder %s18, 3
      %p290 = pnand %p288, %p289
      %p291 = pneg %p290
      // Predicated region
      $region53: #{tpu_custom_call.1} parent=5 // pred_check
        _
      $region54: #{tpu_custom_call.1} parent=5 // pred_check_branch
        %293 = sbr.rel (%p290) target = $region56
      $region55: #{tpu_custom_call.1} parent=5 // pred_region
        %s294 = ssub.s32 %s18, 1
        %p295 = scmp.lt.s32.totalorder %s23, 1
        %s296 = scalar_select %p295, %s23, 1
        %s297 = smul.addr %s296, 8
        %s298 = scalar_lea.vmem %s0, %s297
        %p299 = pneg %p44
        %p300 = pneg %p41
        %p301 = pneg %p65
        %p302 = pneg %p62
        %p303 = pneg %p86
        %p304 = pneg %p83
        %p305 = pneg %p107
        %p306 = pneg %p104
        %p307 = pneg %p128
        %p308 = pneg %p125
        %p309 = pneg %p149
        %p310 = pneg %p146
        %p311 = pneg %p170
        %p312 = pneg %p167
        %p313 = pneg %p191
        %p314 = pneg %p188
        %p315 = pneg %p212
        %p316 = pneg %p209
        %p317 = pneg %p238
        %p318 = pneg %p235
        %s319 = sand.u32 %s225, 1
        %s320 = scalar_lea.sflag [#allocation3], %s319
        %s321 = sand.u32 %s225, 1
        %s322 = smul.addr %s321, 8
        %s323 = scalar_lea.vmem [#allocation2], %s322
        %p324 = scmp.lt.s32.totalorder %s23, 1
        %s325 = scalar_select %p324, %s23, 1
        %s326 = smul.addr %s325, 8
        %s327 = scalar_lea.vmem %s0, %s326
        %v329 = vld [vmem:[%s327] sm:$0xff]
        %vm330 = vcmask 261120
        %v331 = vsel %vm330, %v329, 0.0
        %332 = vadd.xlane.f32.xlu0 %v331
        %v333 = vpop.xlane.xlu0 %332
        %v334 = vrcp.pop 32.0
        %v335 = vmul.f32 %v333, %v334
        %v336 = vsub.f32 %v329, %v335
        %v337 = vmul.f32 %v336, %v336
        %v338 = vsel %vm330, %v337, 0.0
        %339 = vadd.xlane.f32.xlu0 %v338
        %v340 = vpop.xlane.xlu0 %339
        %v341 = vmul.f32 %v340, 0.032258064
        %v342 = vrsqrt.pop %v341
        %v343 = vmul.f32 %v341, %v342
        %vm344 = vcmp.eq.f32.partialorder %v341, inf
        %v345 = vsel %vm344, %v341, %v343
        %vm346 = vcmp.eq.f32.partialorder %v341, 0.0
        %v347 = vand.u32 %v341, 2147483648
        %v348 = vsel %vm346, %v347, %v345
        %v349 = vadd.f32 %v348, 1e-06
        %v350 = vrcp.pop %v349
        %v351 = vmul.f32 %v336, %v350
        %v352 = vpack.c.bf16 %v351, %v351
        %v353 = vld [vmem:[%s1] sm:$0xf]
        %v354 = vld [vmem:[%s1 + $0x4] sm:$0xf]
        %v355 = vld [vmem:[%s1 + $0x8] sm:$0xf]
        %v356 = vld [vmem:[%s1 + $0xc] sm:$0xf]
        %v357 = vld [vmem:[%s2] sm:$0x1]
        %v359 = vlaneseq
        %v360 = vshrl.u32 %v359, 7
        %v361 = vsub.s32 0, %v360
        %v362 = vrot.slane %v357, %v361
        %v368 = vunpack.c.l.b16 %v353
        %v369 = vunpack.c.l.b16 %v354
        %v370 = vunpack.c.l.b16 %v355
        %v371 = vunpack.c.l.b16 %v356
        %v372 = vpack.c.b16 %v369, %v368
        %v373 = vpack.c.b16 %v371, %v370
        %v377 = vsel %vm330, %v352, 0
        %379 = vmatprep.subr.bf16.mxu0 0
        %380 = vmatpush1.bf16.msra.mxu0 0
        %381 = vmatprep.subr.bf16.mxu0 0
        %382 = vmatpush1.bf16.msra.mxu0 0
        %383 = vmatprep.subr.bf16.mxu0 0
        %384 = vmatpush1.bf16.msra.mxu0 0
        %385 = vmatprep.subr.bf16.mxu0 0
        %386 = vmatpush1.bf16.msra.mxu0 0
        %387 = vmatprep.subr.bf16.mxu0 0
        %388 = vmatpush1.bf16.msra.mxu0 0
        %389 = vmatprep.subr.bf16.mxu0 0
        %390 = vmatpush1.bf16.msra.mxu0 0
        %391 = vmatprep.subr.bf16.mxu0 0
        %392 = vmatpush1.bf16.msra.mxu0 %v373
        %393 = vmatprep.subr.bf16.mxu0 0
        %394 = vmatpush1.bf16.msra.mxu0 %v372
        %395 = vmatprep.subr.bf16.mxu0 0
        %396 = vmatpush2.bf16.msra.mxu0 0
        %397 = vmatprep.subr.bf16.mxu0 0
        %398 = vmatpush2.bf16.msra.mxu0 0
        %399 = vmatprep.subr.bf16.mxu0 0
        %400 = vmatpush2.bf16.msra.mxu0 0
        %401 = vmatprep.subr.bf16.mxu0 0
        %402 = vmatpush2.bf16.msra.mxu0 0
        %403 = vmatprep.subr.bf16.mxu0 0
        %404 = vmatpush2.bf16.msra.mxu0 0
        %405 = vmatprep.subr.bf16.mxu0 0
        %406 = vmatpush2.bf16.msra.mxu0 0
        %407 = vmatprep.subr.bf16.mxu0 0
        %408 = vmatpush2.bf16.msra.mxu0 0
        %409 = vmatprep.subr.bf16.mxu0 0
        %410 = vmatpush2.bf16.msra.mxu0 0
        %411 = vmatprep.mubr.bf16.mxu0 0
        %412 = vmatmul.mubr.bf16.gmra.mxu0 %v377
        %v413 = vpop.f32.mrf.mxu0
        %v414 = vadd.f32 %v362, %v413
        %v415 = vpop.f32.mrf.mxu0
        %v416 = vpop.f32.mrf.mxu0
        %v417 = vpop.f32.mrf.mxu0
        %418 = vdwg.mxu0
        %v419 = vpack.c.bf16 %v414, %v414
        %421 = vrot.lane.b32.xlu0 %v419, 120
        %v422 = vpop.permute.xlu0 %421
        %vm423 = vcmask 64512
        %v425 = vsel %vm423, %v419, 0
        %v428 = vsel %vm423, %v422, 0
        %430 = vmatprep.subr.bf16.mxu0 0
        %431 = vmatpush1.bf16.xpose.msra.mxu0 0
        %432 = vmatprep.subr.bf16.mxu0 0
        %433 = vmatpush1.bf16.xpose.msra.mxu0 0
        %434 = vmatprep.subr.bf16.mxu0 0
        %435 = vmatpush1.bf16.xpose.msra.mxu0 0
        %436 = vmatprep.subr.bf16.mxu0 0
        %437 = vmatpush1.bf16.xpose.msra.mxu0 0
        %438 = vmatprep.subr.bf16.mxu0 0
        %439 = vmatpush1.bf16.xpose.msra.mxu0 0
        %440 = vmatprep.subr.bf16.mxu0 0
        %441 = vmatpush1.bf16.xpose.msra.mxu0 0
        %442 = vmatprep.subr.bf16.mxu0 0
        %443 = vmatpush1.bf16.xpose.msra.mxu0 0
        %444 = vmatprep.subr.bf16.mxu0 0
        %445 = vmatpush1.bf16.xpose.msra.mxu0 %v428
        %446 = vmatprep.subr.bf16.mxu0 0
        %447 = vmatpush2.bf16.xpose.msra.mxu0 0
        %448 = vmatprep.subr.bf16.mxu0 0
        %449 = vmatpush2.bf16.xpose.msra.mxu0 0
        %450 = vmatprep.subr.bf16.mxu0 0
        %451 = vmatpush2.bf16.xpose.msra.mxu0 0
        %452 = vmatprep.subr.bf16.mxu0 0
        %453 = vmatpush2.bf16.xpose.msra.mxu0 0
        %454 = vmatprep.subr.bf16.mxu0 0
        %455 = vmatpush2.bf16.xpose.msra.mxu0 0
        %456 = vmatprep.subr.bf16.mxu0 0
        %457 = vmatpush2.bf16.xpose.msra.mxu0 0
        %458 = vmatprep.subr.bf16.mxu0 0
        %459 = vmatpush2.bf16.xpose.msra.mxu0 0
        %460 = vmatprep.subr.bf16.mxu0 0
        %461 = vmatpush2.bf16.xpose.msra.mxu0 0
        %462 = vmatprep.mubr.bf16.mxu0 0
        %463 = vmatmul.mubr.bf16.gmra.mxu0 %v425
        %v464 = vpop.f32.mrf.mxu0
        %v465 = vadd.f32 0.0, %v464
        %v466 = vpop.f32.mrf.mxu0
        %v467 = vpop.f32.mrf.mxu0
        %v468 = vpop.f32.mrf.mxu0
        %469 = vdwg.mxu0
        %v470 = vmul.f32 %v465, 0.35355338
        %v471 = vfloor.f32 %v470
        %v472 = vsel %vm423, %v471, -inf
        %473 = vmax.xlane.f32.xlu0 %v472
        %v474 = vpop.xlane.xlu0 %473
        %v475 = vsub.f32 %v471, %v474
        %v476 = vmul.f32 %v475, 1.442695
        %v477 = vpow.pop %v476
        %v478 = vsel %vm423, %v477, 0.0
        %479 = vadd.xlane.f32.xlu0 %v478
        %v480 = vpop.xlane.xlu0 %479
        %v481 = vrcp.pop %v480
        %v482 = vmul.f32 %v477, %v481
        %v483 = vpack.c.bf16 %v482, %v482
        %484 = vrot.lane.b32.xlu0 %v419, 112
        %v485 = vpop.permute.xlu0 %484
        %v487 = vsel %vm423, %v483, 0
        %vm489 = vcmask 1043456
        %v491 = vsel %vm489, %v485, 0
        %493 = vmatprep.subr.bf16.mxu0 0
        %494 = vmatpush1.bf16.msra.mxu0 0
        %495 = vmatprep.subr.bf16.mxu0 0
        %496 = vmatpush1.bf16.msra.mxu0 0
        %497 = vmatprep.subr.bf16.mxu0 0
        %498 = vmatpush1.bf16.msra.mxu0 0
        %499 = vmatprep.subr.bf16.mxu0 0
        %500 = vmatpush1.bf16.msra.mxu0 0
        %501 = vmatprep.subr.bf16.mxu0 0
        %502 = vmatpush1.bf16.msra.mxu0 0
        %503 = vmatprep.subr.bf16.mxu0 0
        %504 = vmatpush1.bf16.msra.mxu0 0
        %505 = vmatprep.subr.bf16.mxu0 0
        %506 = vmatpush1.bf16.msra.mxu0 0
        %507 = vmatprep.subr.bf16.mxu0 0
        %508 = vmatpush1.bf16.msra.mxu0 %v491
        %509 = vmatprep.subr.bf16.mxu0 0
        %510 = vmatpush2.bf16.msra.mxu0 0
        %511 = vmatprep.subr.bf16.mxu0 0
        %512 = vmatpush2.bf16.msra.mxu0 0
        %513 = vmatprep.subr.bf16.mxu0 0
        %514 = vmatpush2.bf16.msra.mxu0 0
        %515 = vmatprep.subr.bf16.mxu0 0
        %516 = vmatpush2.bf16.msra.mxu0 0
        %517 = vmatprep.subr.bf16.mxu0 0
        %518 = vmatpush2.bf16.msra.mxu0 0
        %519 = vmatprep.subr.bf16.mxu0 0
        %520 = vmatpush2.bf16.msra.mxu0 0
        %521 = vmatprep.subr.bf16.mxu0 0
        %522 = vmatpush2.bf16.msra.mxu0 0
        %523 = vmatprep.subr.bf16.mxu0 0
        %524 = vmatpush2.bf16.msra.mxu0 0
        %525 = vmatprep.mubr.bf16.mxu0 0
        %526 = vmatmul.mubr.bf16.gmra.mxu0 %v487
        %v527 = vpop.f32.mrf.mxu0
        %v528 = vadd.f32 0.0, %v527
        %v529 = vpop.f32.mrf.mxu0
        %v530 = vpop.f32.mrf.mxu0
        %v531 = vpop.f32.mrf.mxu0
        %532 = vdwg.mxu0
        %v533 = vpack.c.bf16 %v528, %v528
        %s534 = scalar_lea.vmem %s1, 16
        %v535 = vld [vmem:[%s534] sm:$0xf]
        %v536 = vld [vmem:[%s534 + $0x4] sm:$0xf]
        %v537 = vld [vmem:[%s534 + $0x8] sm:$0xf]
        %v538 = vld [vmem:[%s534 + $0xc] sm:$0xf]
        %s539 = scalar_lea.vmem %s2, 1
        %v540 = vld [vmem:[%s539] sm:$0x1]
        %v542 = vlaneseq
        %v543 = vshrl.u32 %v542, 7
        %v544 = vsub.s32 0, %v543
        %v545 = vrot.slane %v540, %v544
        %v551 = vunpack.c.l.b16 %v535
        %v552 = vunpack.c.l.b16 %v536
        %v553 = vunpack.c.l.b16 %v537
        %v554 = vunpack.c.l.b16 %v538
        %v555 = vpack.c.b16 %v552, %v551
        %v556 = vpack.c.b16 %v554, %v553
        %559 = vmatprep.subr.bf16.mxu0 0
        %560 = vmatpush1.bf16.msra.mxu0 0
        %561 = vmatprep.subr.bf16.mxu0 0
        %562 = vmatpush1.bf16.msra.mxu0 0
        %563 = vmatprep.subr.bf16.mxu0 0
        %564 = vmatpush1.bf16.msra.mxu0 0
        %565 = vmatprep.subr.bf16.mxu0 0
        %566 = vmatpush1.bf16.msra.mxu0 0
        %567 = vmatprep.subr.bf16.mxu0 0
        %568 = vmatpush1.bf16.msra.mxu0 0
        %569 = vmatprep.subr.bf16.mxu0 0
        %570 = vmatpush1.bf16.msra.mxu0 0
        %571 = vmatprep.subr.bf16.mxu0 0
        %572 = vmatpush1.bf16.msra.mxu0 %v556
        %573 = vmatprep.subr.bf16.mxu0 0
        %574 = vmatpush1.bf16.msra.mxu0 %v555
        %575 = vmatprep.subr.bf16.mxu0 0
        %576 = vmatpush2.bf16.msra.mxu0 0
        %577 = vmatprep.subr.bf16.mxu0 0
        %578 = vmatpush2.bf16.msra.mxu0 0
        %579 = vmatprep.subr.bf16.mxu0 0
        %580 = vmatpush2.bf16.msra.mxu0 0
        %581 = vmatprep.subr.bf16.mxu0 0
        %582 = vmatpush2.bf16.msra.mxu0 0
        %583 = vmatprep.subr.bf16.mxu0 0
        %584 = vmatpush2.bf16.msra.mxu0 0
        %585 = vmatprep.subr.bf16.mxu0 0
        %586 = vmatpush2.bf16.msra.mxu0 0
        %587 = vmatprep.subr.bf16.mxu0 0
        %588 = vmatpush2.bf16.msra.mxu0 0
        %589 = vmatprep.subr.bf16.mxu0 0
        %590 = vmatpush2.bf16.msra.mxu0 0
        %591 = vmatprep.mubr.bf16.mxu0 0
        %592 = vmatmul.mubr.bf16.gmra.mxu0 %v377
        %v593 = vpop.f32.mrf.mxu0
        %v594 = vadd.f32 %v545, %v593
        %v595 = vpop.f32.mrf.mxu0
        %v596 = vpop.f32.mrf.mxu0
        %v597 = vpop.f32.mrf.mxu0
        %598 = vdwg.mxu0
        %v599 = vpack.c.bf16 %v594, %v594
        %601 = vrot.lane.b32.xlu0 %v599, 120
        %v602 = vpop.permute.xlu0 %601
        %v604 = vsel %vm423, %v599, 0
        %v607 = vsel %vm423, %v602, 0
        %609 = vmatprep.subr.bf16.mxu0 0
        %610 = vmatpush1.bf16.xpose.msra.mxu0 0
        %611 = vmatprep.subr.bf16.mxu0 0
        %612 = vmatpush1.bf16.xpose.msra.mxu0 0
        %613 = vmatprep.subr.bf16.mxu0 0
        %614 = vmatpush1.bf16.xpose.msra.mxu0 0
        %615 = vmatprep.subr.bf16.mxu0 0
        %616 = vmatpush1.bf16.xpose.msra.mxu0 0
        %617 = vmatprep.subr.bf16.mxu0 0
        %618 = vmatpush1.bf16.xpose.msra.mxu0 0
        %619 = vmatprep.subr.bf16.mxu0 0
        %620 = vmatpush1.bf16.xpose.msra.mxu0 0
        %621 = vmatprep.subr.bf16.mxu0 0
        %622 = vmatpush1.bf16.xpose.msra.mxu0 0
        %623 = vmatprep.subr.bf16.mxu0 0
        %624 = vmatpush1.bf16.xpose.msra.mxu0 %v607
        %625 = vmatprep.subr.bf16.mxu0 0
        %626 = vmatpush2.bf16.xpose.msra.mxu0 0
        %627 = vmatprep.subr.bf16.mxu0 0
        %628 = vmatpush2.bf16.xpose.msra.mxu0 0
        %629 = vmatprep.subr.bf16.mxu0 0
        %630 = vmatpush2.bf16.xpose.msra.mxu0 0
        %631 = vmatprep.subr.bf16.mxu0 0
        %632 = vmatpush2.bf16.xpose.msra.mxu0 0
        %633 = vmatprep.subr.bf16.mxu0 0
        %634 = vmatpush2.bf16.xpose.msra.mxu0 0
        %635 = vmatprep.subr.bf16.mxu0 0
        %636 = vmatpush2.bf16.xpose.msra.mxu0 0
        %637 = vmatprep.subr.bf16.mxu0 0
        %638 = vmatpush2.bf16.xpose.msra.mxu0 0
        %639 = vmatprep.subr.bf16.mxu0 0
        %640 = vmatpush2.bf16.xpose.msra.mxu0 0
        %641 = vmatprep.mubr.bf16.mxu0 0
        %642 = vmatmul.mubr.bf16.gmra.mxu0 %v604
        %v643 = vpop.f32.mrf.mxu0
        %v644 = vadd.f32 0.0, %v643
        %v645 = vpop.f32.mrf.mxu0
        %v646 = vpop.f32.mrf.mxu0
        %v647 = vpop.f32.mrf.mxu0
        %648 = vdwg.mxu0
        %v649 = vmul.f32 %v644, 0.35355338
        %v650 = vfloor.f32 %v649
        %v651 = vsel %vm423, %v650, -inf
        %652 = vmax.xlane.f32.xlu0 %v651
        %v653 = vpop.xlane.xlu0 %652
        %v654 = vsub.f32 %v650, %v653
        %v655 = vmul.f32 %v654, 1.442695
        %v656 = vpow.pop %v655
        %v657 = vsel %vm423, %v656, 0.0
        %658 = vadd.xlane.f32.xlu0 %v657
        %v659 = vpop.xlane.xlu0 %658
        %v660 = vrcp.pop %v659
        %v661 = vmul.f32 %v656, %v660
        %v662 = vpack.c.bf16 %v661, %v661
        %663 = vrot.lane.b32.xlu0 %v599, 112
        %v664 = vpop.permute.xlu0 %663
        %v666 = vsel %vm423, %v662, 0
        %v669 = vsel %vm489, %v664, 0
        %671 = vmatprep.subr.bf16.mxu0 0
        %672 = vmatpush1.bf16.msra.mxu0 0
        %673 = vmatprep.subr.bf16.mxu0 0
        %674 = vmatpush1.bf16.msra.mxu0 0
        %675 = vmatprep.subr.bf16.mxu0 0
        %676 = vmatpush1.bf16.msra.mxu0 0
        %677 = vmatprep.subr.bf16.mxu0 0
        %678 = vmatpush1.bf16.msra.mxu0 0
        %679 = vmatprep.subr.bf16.mxu0 0
        %680 = vmatpush1.bf16.msra.mxu0 0
        %681 = vmatprep.subr.bf16.mxu0 0
        %682 = vmatpush1.bf16.msra.mxu0 0
        %683 = vmatprep.subr.bf16.mxu0 0
        %684 = vmatpush1.bf16.msra.mxu0 0
        %685 = vmatprep.subr.bf16.mxu0 0
        %686 = vmatpush1.bf16.msra.mxu0 %v669
        %687 = vmatprep.subr.bf16.mxu0 0
        %688 = vmatpush2.bf16.msra.mxu0 0
        %689 = vmatprep.subr.bf16.mxu0 0
        %690 = vmatpush2.bf16.msra.mxu0 0
        %691 = vmatprep.subr.bf16.mxu0 0
        %692 = vmatpush2.bf16.msra.mxu0 0
        %693 = vmatprep.subr.bf16.mxu0 0
        %694 = vmatpush2.bf16.msra.mxu0 0
        %695 = vmatprep.subr.bf16.mxu0 0
        %696 = vmatpush2.bf16.msra.mxu0 0
        %697 = vmatprep.subr.bf16.mxu0 0
        %698 = vmatpush2.bf16.msra.mxu0 0
        %699 = vmatprep.subr.bf16.mxu0 0
        %700 = vmatpush2.bf16.msra.mxu0 0
        %701 = vmatprep.subr.bf16.mxu0 0
        %702 = vmatpush2.bf16.msra.mxu0 0
        %703 = vmatprep.mubr.bf16.mxu0 0
        %704 = vmatmul.mubr.bf16.gmra.mxu0 %v666
        %v705 = vpop.f32.mrf.mxu0
        %v706 = vadd.f32 0.0, %v705
        %v707 = vpop.f32.mrf.mxu0
        %v708 = vpop.f32.mrf.mxu0
        %v709 = vpop.f32.mrf.mxu0
        %710 = vdwg.mxu0
        %v711 = vpack.c.bf16 %v706, %v706
        %s712 = scalar_lea.vmem %s1, 32
        %v713 = vld [vmem:[%s712] sm:$0xf]
        %v714 = vld [vmem:[%s712 + $0x4] sm:$0xf]
        %v715 = vld [vmem:[%s712 + $0x8] sm:$0xf]
        %v716 = vld [vmem:[%s712 + $0xc] sm:$0xf]
        %s717 = scalar_lea.vmem %s2, 2
        %v718 = vld [vmem:[%s717] sm:$0x1]
        %v720 = vlaneseq
        %v721 = vshrl.u32 %v720, 7
        %v722 = vsub.s32 0, %v721
        %v723 = vrot.slane %v718, %v722
        %v729 = vunpack.c.l.b16 %v713
        %v730 = vunpack.c.l.b16 %v714
        %v731 = vunpack.c.l.b16 %v715
        %v732 = vunpack.c.l.b16 %v716
        %v733 = vpack.c.b16 %v730, %v729
        %v734 = vpack.c.b16 %v732, %v731
        %737 = vmatprep.subr.bf16.mxu0 0
        %738 = vmatpush1.bf16.msra.mxu0 0
        %739 = vmatprep.subr.bf16.mxu0 0
        %740 = vmatpush1.bf16.msra.mxu0 0
        %741 = vmatprep.subr.bf16.mxu0 0
        %742 = vmatpush1.bf16.msra.mxu0 0
        %743 = vmatprep.subr.bf16.mxu0 0
        %744 = vmatpush1.bf16.msra.mxu0 0
        %745 = vmatprep.subr.bf16.mxu0 0
        %746 = vmatpush1.bf16.msra.mxu0 0
        %747 = vmatprep.subr.bf16.mxu0 0
        %748 = vmatpush1.bf16.msra.mxu0 0
        %749 = vmatprep.subr.bf16.mxu0 0
        %750 = vmatpush1.bf16.msra.mxu0 %v734
        %751 = vmatprep.subr.bf16.mxu0 0
        %752 = vmatpush1.bf16.msra.mxu0 %v733
        %753 = vmatprep.subr.bf16.mxu0 0
        %754 = vmatpush2.bf16.msra.mxu0 0
        %755 = vmatprep.subr.bf16.mxu0 0
        %756 = vmatpush2.bf16.msra.mxu0 0
        %757 = vmatprep.subr.bf16.mxu0 0
        %758 = vmatpush2.bf16.msra.mxu0 0
        %759 = vmatprep.subr.bf16.mxu0 0
        %760 = vmatpush2.bf16.msra.mxu0 0
        %761 = vmatprep.subr.bf16.mxu0 0
        %762 = vmatpush2.bf16.msra.mxu0 0
        %763 = vmatprep.subr.bf16.mxu0 0
        %764 = vmatpush2.bf16.msra.mxu0 0
        %765 = vmatprep.subr.bf16.mxu0 0
        %766 = vmatpush2.bf16.msra.mxu0 0
        %767 = vmatprep.subr.bf16.mxu0 0
        %768 = vmatpush2.bf16.msra.mxu0 0
        %769 = vmatprep.mubr.bf16.mxu0 0
        %770 = vmatmul.mubr.bf16.gmra.mxu0 %v377
        %v771 = vpop.f32.mrf.mxu0
        %v772 = vadd.f32 %v723, %v771
        %v773 = vpop.f32.mrf.mxu0
        %v774 = vpop.f32.mrf.mxu0
        %v775 = vpop.f32.mrf.mxu0
        %776 = vdwg.mxu0
        %v777 = vpack.c.bf16 %v772, %v772
        %779 = vrot.lane.b32.xlu0 %v777, 120
        %v780 = vpop.permute.xlu0 %779
        %v782 = vsel %vm423, %v777, 0
        %v785 = vsel %vm423, %v780, 0
        %787 = vmatprep.subr.bf16.mxu0 0
        %788 = vmatpush1.bf16.xpose.msra.mxu0 0
        %789 = vmatprep.subr.bf16.mxu0 0
        %790 = vmatpush1.bf16.xpose.msra.mxu0 0
        %791 = vmatprep.subr.bf16.mxu0 0
        %792 = vmatpush1.bf16.xpose.msra.mxu0 0
        %793 = vmatprep.subr.bf16.mxu0 0
        %794 = vmatpush1.bf16.xpose.msra.mxu0 0
        %795 = vmatprep.subr.bf16.mxu0 0
        %796 = vmatpush1.bf16.xpose.msra.mxu0 0
        %797 = vmatprep.subr.bf16.mxu0 0
        %798 = vmatpush1.bf16.xpose.msra.mxu0 0
        %799 = vmatprep.subr.bf16.mxu0 0
        %800 = vmatpush1.bf16.xpose.msra.mxu0 0
        %801 = vmatprep.subr.bf16.mxu0 0
        %802 = vmatpush1.bf16.xpose.msra.mxu0 %v785
        %803 = vmatprep.subr.bf16.mxu0 0
        %804 = vmatpush2.bf16.xpose.msra.mxu0 0
        %805 = vmatprep.subr.bf16.mxu0 0
        %806 = vmatpush2.bf16.xpose.msra.mxu0 0
        %807 = vmatprep.subr.bf16.mxu0 0
        %808 = vmatpush2.bf16.xpose.msra.mxu0 0
        %809 = vmatprep.subr.bf16.mxu0 0
        %810 = vmatpush2.bf16.xpose.msra.mxu0 0
        %811 = vmatprep.subr.bf16.mxu0 0
        %812 = vmatpush2.bf16.xpose.msra.mxu0 0
        %813 = vmatprep.subr.bf16.mxu0 0
        %814 = vmatpush2.bf16.xpose.msra.mxu0 0
        %815 = vmatprep.subr.bf16.mxu0 0
        %816 = vmatpush2.bf16.xpose.msra.mxu0 0
        %817 = vmatprep.subr.bf16.mxu0 0
        %818 = vmatpush2.bf16.xpose.msra.mxu0 0
        %819 = vmatprep.mubr.bf16.mxu0 0
        %820 = vmatmul.mubr.bf16.gmra.mxu0 %v782
        %v821 = vpop.f32.mrf.mxu0
        %v822 = vadd.f32 0.0, %v821
        %v823 = vpop.f32.mrf.mxu0
        %v824 = vpop.f32.mrf.mxu0
        %v825 = vpop.f32.mrf.mxu0
        %826 = vdwg.mxu0
        %v827 = vmul.f32 %v822, 0.35355338
        %v828 = vfloor.f32 %v827
        %v829 = vsel %vm423, %v828, -inf
        %830 = vmax.xlane.f32.xlu0 %v829
        %v831 = vpop.xlane.xlu0 %830
        %v832 = vsub.f32 %v828, %v831
        %v833 = vmul.f32 %v832, 1.442695
        %v834 = vpow.pop %v833
        %v835 = vsel %vm423, %v834, 0.0
        %836 = vadd.xlane.f32.xlu0 %v835
        %v837 = vpop.xlane.xlu0 %836
        %v838 = vrcp.pop %v837
        %v839 = vmul.f32 %v834, %v838
        %v840 = vpack.c.bf16 %v839, %v839
        %841 = vrot.lane.b32.xlu0 %v777, 112
        %v842 = vpop.permute.xlu0 %841
        %v844 = vsel %vm423, %v840, 0
        %v847 = vsel %vm489, %v842, 0
        %849 = vmatprep.subr.bf16.mxu0 0
        %850 = vmatpush1.bf16.msra.mxu0 0
        %851 = vmatprep.subr.bf16.mxu0 0
        %852 = vmatpush1.bf16.msra.mxu0 0
        %853 = vmatprep.subr.bf16.mxu0 0
        %854 = vmatpush1.bf16.msra.mxu0 0
        %855 = vmatprep.subr.bf16.mxu0 0
        %856 = vmatpush1.bf16.msra.mxu0 0
        %857 = vmatprep.subr.bf16.mxu0 0
        %858 = vmatpush1.bf16.msra.mxu0 0
        %859 = vmatprep.subr.bf16.mxu0 0
        %860 = vmatpush1.bf16.msra.mxu0 0
        %861 = vmatprep.subr.bf16.mxu0 0
        %862 = vmatpush1.bf16.msra.mxu0 0
        %863 = vmatprep.subr.bf16.mxu0 0
        %864 = vmatpush1.bf16.msra.mxu0 %v847
        %865 = vmatprep.subr.bf16.mxu0 0
        %866 = vmatpush2.bf16.msra.mxu0 0
        %867 = vmatprep.subr.bf16.mxu0 0
        %868 = vmatpush2.bf16.msra.mxu0 0
        %869 = vmatprep.subr.bf16.mxu0 0
        %870 = vmatpush2.bf16.msra.mxu0 0
        %871 = vmatprep.subr.bf16.mxu0 0
        %872 = vmatpush2.bf16.msra.mxu0 0
        %873 = vmatprep.subr.bf16.mxu0 0
        %874 = vmatpush2.bf16.msra.mxu0 0
        %875 = vmatprep.subr.bf16.mxu0 0
        %876 = vmatpush2.bf16.msra.mxu0 0
        %877 = vmatprep.subr.bf16.mxu0 0
        %878 = vmatpush2.bf16.msra.mxu0 0
        %879 = vmatprep.subr.bf16.mxu0 0
        %880 = vmatpush2.bf16.msra.mxu0 0
        %881 = vmatprep.mubr.bf16.mxu0 0
        %882 = vmatmul.mubr.bf16.gmra.mxu0 %v844
        %v883 = vpop.f32.mrf.mxu0
        %v884 = vadd.f32 0.0, %v883
        %v885 = vpop.f32.mrf.mxu0
        %v886 = vpop.f32.mrf.mxu0
        %v887 = vpop.f32.mrf.mxu0
        %888 = vdwg.mxu0
        %v889 = vpack.c.bf16 %v884, %v884
        %s890 = scalar_lea.vmem %s1, 48
        %v891 = vld [vmem:[%s890] sm:$0xf]
        %v892 = vld [vmem:[%s890 + $0x4] sm:$0xf]
        %v893 = vld [vmem:[%s890 + $0x8] sm:$0xf]
        %v894 = vld [vmem:[%s890 + $0xc] sm:$0xf]
        %s895 = scalar_lea.vmem %s2, 3
        %v896 = vld [vmem:[%s895] sm:$0x1]
        %v898 = vlaneseq
        %v899 = vshrl.u32 %v898, 7
        %v900 = vsub.s32 0, %v899
        %v901 = vrot.slane %v896, %v900
        %v907 = vunpack.c.l.b16 %v891
        %v908 = vunpack.c.l.b16 %v892
        %v909 = vunpack.c.l.b16 %v893
        %v910 = vunpack.c.l.b16 %v894
        %v911 = vpack.c.b16 %v908, %v907
        %v912 = vpack.c.b16 %v910, %v909
        %915 = vmatprep.subr.bf16.mxu0 0
        %916 = vmatpush1.bf16.msra.mxu0 0
        %917 = vmatprep.subr.bf16.mxu0 0
        %918 = vmatpush1.bf16.msra.mxu0 0
        %919 = vmatprep.subr.bf16.mxu0 0
        %920 = vmatpush1.bf16.msra.mxu0 0
        %921 = vmatprep.subr.bf16.mxu0 0
        %922 = vmatpush1.bf16.msra.mxu0 0
        %923 = vmatprep.subr.bf16.mxu0 0
        %924 = vmatpush1.bf16.msra.mxu0 0
        %925 = vmatprep.subr.bf16.mxu0 0
        %926 = vmatpush1.bf16.msra.mxu0 0
        %927 = vmatprep.subr.bf16.mxu0 0
        %928 = vmatpush1.bf16.msra.mxu0 %v912
        %929 = vmatprep.subr.bf16.mxu0 0
        %930 = vmatpush1.bf16.msra.mxu0 %v911
        %931 = vmatprep.subr.bf16.mxu0 0
        %932 = vmatpush2.bf16.msra.mxu0 0
        %933 = vmatprep.subr.bf16.mxu0 0
        %934 = vmatpush2.bf16.msra.mxu0 0
        %935 = vmatprep.subr.bf16.mxu0 0
        %936 = vmatpush2.bf16.msra.mxu0 0
        %937 = vmatprep.subr.bf16.mxu0 0
        %938 = vmatpush2.bf16.msra.mxu0 0
        %939 = vmatprep.subr.bf16.mxu0 0
        %940 = vmatpush2.bf16.msra.mxu0 0
        %941 = vmatprep.subr.bf16.mxu0 0
        %942 = vmatpush2.bf16.msra.mxu0 0
        %943 = vmatprep.subr.bf16.mxu0 0
        %944 = vmatpush2.bf16.msra.mxu0 0
        %945 = vmatprep.subr.bf16.mxu0 0
        %946 = vmatpush2.bf16.msra.mxu0 0
        %947 = vmatprep.mubr.bf16.mxu0 0
        %948 = vmatmul.mubr.bf16.gmra.mxu0 %v377
        %v949 = vpop.f32.mrf.mxu0
        %v950 = vadd.f32 %v901, %v949
        %v951 = vpop.f32.mrf.mxu0
        %v952 = vpop.f32.mrf.mxu0
        %v953 = vpop.f32.mrf.mxu0
        %954 = vdwg.mxu0
        %v955 = vpack.c.bf16 %v950, %v950
        %957 = vrot.lane.b32.xlu0 %v955, 120
        %v958 = vpop.permute.xlu0 %957
        %v960 = vsel %vm423, %v955, 0
        %v963 = vsel %vm423, %v958, 0
        %965 = vmatprep.subr.bf16.mxu0 0
        %966 = vmatpush1.bf16.xpose.msra.mxu0 0
        %967 = vmatprep.subr.bf16.mxu0 0
        %968 = vmatpush1.bf16.xpose.msra.mxu0 0
        %969 = vmatprep.subr.bf16.mxu0 0
        %970 = vmatpush1.bf16.xpose.msra.mxu0 0
        %971 = vmatprep.subr.bf16.mxu0 0
        %972 = vmatpush1.bf16.xpose.msra.mxu0 0
        %973 = vmatprep.subr.bf16.mxu0 0
        %974 = vmatpush1.bf16.xpose.msra.mxu0 0
        %975 = vmatprep.subr.bf16.mxu0 0
        %976 = vmatpush1.bf16.xpose.msra.mxu0 0
        %977 = vmatprep.subr.bf16.mxu0 0
        %978 = vmatpush1.bf16.xpose.msra.mxu0 0
        %979 = vmatprep.subr.bf16.mxu0 0
        %980 = vmatpush1.bf16.xpose.msra.mxu0 %v963
        %981 = vmatprep.subr.bf16.mxu0 0
        %982 = vmatpush2.bf16.xpose.msra.mxu0 0
        %983 = vmatprep.subr.bf16.mxu0 0
        %984 = vmatpush2.bf16.xpose.msra.mxu0 0
        %985 = vmatprep.subr.bf16.mxu0 0
        %986 = vmatpush2.bf16.xpose.msra.mxu0 0
        %987 = vmatprep.subr.bf16.mxu0 0
        %988 = vmatpush2.bf16.xpose.msra.mxu0 0
        %989 = vmatprep.subr.bf16.mxu0 0
        %990 = vmatpush2.bf16.xpose.msra.mxu0 0
        %991 = vmatprep.subr.bf16.mxu0 0
        %992 = vmatpush2.bf16.xpose.msra.mxu0 0
        %993 = vmatprep.subr.bf16.mxu0 0
        %994 = vmatpush2.bf16.xpose.msra.mxu0 0
        %995 = vmatprep.subr.bf16.mxu0 0
        %996 = vmatpush2.bf16.xpose.msra.mxu0 0
        %997 = vmatprep.mubr.bf16.mxu0 0
        %998 = vmatmul.mubr.bf16.gmra.mxu0 %v960
        %v999 = vpop.f32.mrf.mxu0
        %v1000 = vadd.f32 0.0, %v999
        %v1001 = vpop.f32.mrf.mxu0
        %v1002 = vpop.f32.mrf.mxu0
        %v1003 = vpop.f32.mrf.mxu0
        %1004 = vdwg.mxu0
        %v1005 = vmul.f32 %v1000, 0.35355338
        %v1006 = vfloor.f32 %v1005
        %v1007 = vsel %vm423, %v1006, -inf
        %1008 = vmax.xlane.f32.xlu0 %v1007
        %v1009 = vpop.xlane.xlu0 %1008
        %v1010 = vsub.f32 %v1006, %v1009
        %v1011 = vmul.f32 %v1010, 1.442695
        %v1012 = vpow.pop %v1011
        %v1013 = vsel %vm423, %v1012, 0.0
        %1014 = vadd.xlane.f32.xlu0 %v1013
        %v1015 = vpop.xlane.xlu0 %1014
        %v1016 = vrcp.pop %v1015
        %v1017 = vmul.f32 %v1012, %v1016
        %v1018 = vpack.c.bf16 %v1017, %v1017
        %1019 = vrot.lane.b32.xlu0 %v955, 112
        %v1020 = vpop.permute.xlu0 %1019
        %v1022 = vsel %vm423, %v1018, 0
        %v1025 = vsel %vm489, %v1020, 0
        %1027 = vmatprep.subr.bf16.mxu0 0
        %1028 = vmatpush1.bf16.msra.mxu0 0
        %1029 = vmatprep.subr.bf16.mxu0 0
        %1030 = vmatpush1.bf16.msra.mxu0 0
        %1031 = vmatprep.subr.bf16.mxu0 0
        %1032 = vmatpush1.bf16.msra.mxu0 0
        %1033 = vmatprep.subr.bf16.mxu0 0
        %1034 = vmatpush1.bf16.msra.mxu0 0
        %1035 = vmatprep.subr.bf16.mxu0 0
        %1036 = vmatpush1.bf16.msra.mxu0 0
        %1037 = vmatprep.subr.bf16.mxu0 0
        %1038 = vmatpush1.bf16.msra.mxu0 0
        %1039 = vmatprep.subr.bf16.mxu0 0
        %1040 = vmatpush1.bf16.msra.mxu0 0
        %1041 = vmatprep.subr.bf16.mxu0 0
        %1042 = vmatpush1.bf16.msra.mxu0 %v1025
        %1043 = vmatprep.subr.bf16.mxu0 0
        %1044 = vmatpush2.bf16.msra.mxu0 0
        %1045 = vmatprep.subr.bf16.mxu0 0
        %1046 = vmatpush2.bf16.msra.mxu0 0
        %1047 = vmatprep.subr.bf16.mxu0 0
        %1048 = vmatpush2.bf16.msra.mxu0 0
        %1049 = vmatprep.subr.bf16.mxu0 0
        %1050 = vmatpush2.bf16.msra.mxu0 0
        %1051 = vmatprep.subr.bf16.mxu0 0
        %1052 = vmatpush2.bf16.msra.mxu0 0
        %1053 = vmatprep.subr.bf16.mxu0 0
        %1054 = vmatpush2.bf16.msra.mxu0 0
        %1055 = vmatprep.subr.bf16.mxu0 0
        %1056 = vmatpush2.bf16.msra.mxu0 0
        %1057 = vmatprep.subr.bf16.mxu0 0
        %1058 = vmatpush2.bf16.msra.mxu0 0
        %1059 = vmatprep.mubr.bf16.mxu0 0
        %1060 = vmatmul.mubr.bf16.gmra.mxu0 %v1022
        %v1061 = vpop.f32.mrf.mxu0
        %v1062 = vadd.f32 0.0, %v1061
        %v1063 = vpop.f32.mrf.mxu0
        %v1064 = vpop.f32.mrf.mxu0
        %v1065 = vpop.f32.mrf.mxu0
        %1066 = vdwg.mxu0
        %v1067 = vpack.c.bf16 %v1062, %v1062
        %1069 = vrot.lane.b32.xlu0 %v711, 8
        %v1070 = vpop.permute.xlu0 %1069
        %1072 = vrot.lane.b32.xlu0 %v889, 16
        %v1073 = vpop.permute.xlu0 %1072
        %1075 = vrot.lane.b32.xlu0 %v1067, 24
        %v1076 = vpop.permute.xlu0 %1075
        %v1079 = vsel %vm423, %v533, %v1070
        %vm1080 = vcmask 130048
        %v1082 = vsel %vm1080, %v1079, %v1073
        %vm1083 = vcmask 195584
        %v1085 = vsel %vm1083, %v1082, %v1076
        %v1086 = vld [vmem:[%s3] sm:$0xf]
        %v1087 = vld [vmem:[%s3 + $0x4] sm:$0xf]
        %v1088 = vld [vmem:[%s3 + $0x8] sm:$0xf]
        %v1089 = vld [vmem:[%s3 + $0xc] sm:$0xf]
        %v1094 = vunpack.c.l.b16 %v1086
        %v1095 = vunpack.c.l.b16 %v1087
        %v1096 = vunpack.c.l.b16 %v1088
        %v1097 = vunpack.c.l.b16 %v1089
        %v1098 = vpack.c.b16 %v1095, %v1094
        %v1099 = vpack.c.b16 %v1097, %v1096
        %v1102 = vsel %vm330, %v1085, 0
        %1104 = vmatprep.subr.bf16.mxu0 0
        %1105 = vmatpush1.bf16.msra.mxu0 0
        %1106 = vmatprep.subr.bf16.mxu0 0
        %1107 = vmatpush1.bf16.msra.mxu0 0
        %1108 = vmatprep.subr.bf16.mxu0 0
        %1109 = vmatpush1.bf16.msra.mxu0 0
        %1110 = vmatprep.subr.bf16.mxu0 0
        %1111 = vmatpush1.bf16.msra.mxu0 0
        %1112 = vmatprep.subr.bf16.mxu0 0
        %1113 = vmatpush1.bf16.msra.mxu0 0
        %1114 = vmatprep.subr.bf16.mxu0 0
        %1115 = vmatpush1.bf16.msra.mxu0 0
        %1116 = vmatprep.subr.bf16.mxu0 0
        %1117 = vmatpush1.bf16.msra.mxu0 %v1099
        %1118 = vmatprep.subr.bf16.mxu0 0
        %1119 = vmatpush1.bf16.msra.mxu0 %v1098
        %1120 = vmatprep.subr.bf16.mxu0 0
        %1121 = vmatpush2.bf16.msra.mxu0 0
        %1122 = vmatprep.subr.bf16.mxu0 0
        %1123 = vmatpush2.bf16.msra.mxu0 0
        %1124 = vmatprep.subr.bf16.mxu0 0
        %1125 = vmatpush2.bf16.msra.mxu0 0
        %1126 = vmatprep.subr.bf16.mxu0 0
        %1127 = vmatpush2.bf16.msra.mxu0 0
        %1128 = vmatprep.subr.bf16.mxu0 0
        %1129 = vmatpush2.bf16.msra.mxu0 0
        %1130 = vmatprep.subr.bf16.mxu0 0
        %1131 = vmatpush2.bf16.msra.mxu0 0
        %1132 = vmatprep.subr.bf16.mxu0 0
        %1133 = vmatpush2.bf16.msra.mxu0 0
        %1134 = vmatprep.subr.bf16.mxu0 0
        %1135 = vmatpush2.bf16.msra.mxu0 0
        %1136 = vmatprep.mubr.bf16.mxu0 0
        %1137 = vmatmul.mubr.bf16.gmra.mxu0 %v1102
        %v1138 = vpop.f32.mrf.mxu0
        %v1139 = vadd.f32 0.0, %v1138
        %v1140 = vpop.f32.mrf.mxu0
        %v1141 = vpop.f32.mrf.mxu0
        %v1142 = vpop.f32.mrf.mxu0
        %1143 = vdwg.mxu0
        %v1144 = vadd.f32 %v329, %v1139
        %v1145 = vld [vmem:[%s4] sm:$0x1]
        %v1147 = vlaneseq
        %v1148 = vshrl.u32 %v1147, 7
        %v1149 = vsub.s32 0, %v1148
        %v1150 = vrot.slane %v1145, %v1149
        %v1152 = vadd.f32 %v1144, %v1150
        %v1153 = vsel %vm330, %v1152, 0.0
        %1154 = vadd.xlane.f32.xlu0 %v1153
        %v1155 = vpop.xlane.xlu0 %1154
        %v1156 = vmul.f32 %v1155, %v334
        %v1157 = vsub.f32 %v1152, %v1156
        %v1158 = vmul.f32 %v1157, %v1157
        %v1159 = vsel %vm330, %v1158, 0.0
        %1160 = vadd.xlane.f32.xlu0 %v1159
        %v1161 = vpop.xlane.xlu0 %1160
        %v1162 = vmul.f32 %v1161, 0.032258064
        %v1163 = vrsqrt.pop %v1162
        %v1164 = vmul.f32 %v1162, %v1163
        %vm1165 = vcmp.eq.f32.partialorder %v1162, inf
        %v1166 = vsel %vm1165, %v1162, %v1164
        %vm1167 = vcmp.eq.f32.partialorder %v1162, 0.0
        %v1168 = vand.u32 %v1162, 2147483648
        %v1169 = vsel %vm1167, %v1168, %v1166
        %v1170 = vadd.f32 %v1169, 1e-06
        %v1171 = vrcp.pop %v1170
        %v1172 = vmul.f32 %v1157, %v1171
        %v1173 = vpack.c.bf16 %v1172, %v1172
        %v1174 = vld [vmem:[%s5] sm:$0xf]
        %v1175 = vld [vmem:[%s5 + $0x4] sm:$0xf]
        %v1176 = vld [vmem:[%s5 + $0x8] sm:$0xf]
        %v1177 = vld [vmem:[%s5 + $0xc] sm:$0xf]
        %v1178 = vld [vmem:[%s6] sm:$0x1]
        %v1180 = vlaneseq
        %v1181 = vshrl.u32 %v1180, 7
        %v1182 = vsub.s32 0, %v1181
        %v1183 = vrot.slane %v1178, %v1182
        %v1189 = vunpack.c.l.b16 %v1174
        %v1190 = vunpack.c.l.b16 %v1175
        %v1191 = vunpack.c.l.b16 %v1176
        %v1192 = vunpack.c.l.b16 %v1177
        %v1193 = vpack.c.b16 %v1190, %v1189
        %v1194 = vpack.c.b16 %v1192, %v1191
        %v1198 = vsel %vm330, %v1173, 0
        %1200 = vmatprep.subr.bf16.mxu0 0
        %1201 = vmatpush1.bf16.msra.mxu0 0
        %1202 = vmatprep.subr.bf16.mxu0 0
        %1203 = vmatpush1.bf16.msra.mxu0 0
        %1204 = vmatprep.subr.bf16.mxu0 0
        %1205 = vmatpush1.bf16.msra.mxu0 0
        %1206 = vmatprep.subr.bf16.mxu0 0
        %1207 = vmatpush1.bf16.msra.mxu0 0
        %1208 = vmatprep.subr.bf16.mxu0 0
        %1209 = vmatpush1.bf16.msra.mxu0 0
        %1210 = vmatprep.subr.bf16.mxu0 0
        %1211 = vmatpush1.bf16.msra.mxu0 0
        %1212 = vmatprep.subr.bf16.mxu0 0
        %1213 = vmatpush1.bf16.msra.mxu0 %v1194
        %1214 = vmatprep.subr.bf16.mxu0 0
        %1215 = vmatpush1.bf16.msra.mxu0 %v1193
        %1216 = vmatprep.subr.bf16.mxu0 0
        %1217 = vmatpush2.bf16.msra.mxu0 0
        %1218 = vmatprep.subr.bf16.mxu0 0
        %1219 = vmatpush2.bf16.msra.mxu0 0
        %1220 = vmatprep.subr.bf16.mxu0 0
        %1221 = vmatpush2.bf16.msra.mxu0 0
        %1222 = vmatprep.subr.bf16.mxu0 0
        %1223 = vmatpush2.bf16.msra.mxu0 0
        %1224 = vmatprep.subr.bf16.mxu0 0
        %1225 = vmatpush2.bf16.msra.mxu0 0
        %1226 = vmatprep.subr.bf16.mxu0 0
        %1227 = vmatpush2.bf16.msra.mxu0 0
        %1228 = vmatprep.subr.bf16.mxu0 0
        %1229 = vmatpush2.bf16.msra.mxu0 0
        %1230 = vmatprep.subr.bf16.mxu0 0
        %1231 = vmatpush2.bf16.msra.mxu0 0
        %1232 = vmatprep.mubr.bf16.mxu0 0
        %1233 = vmatmul.mubr.bf16.gmra.mxu0 %v1198
        %v1234 = vpop.f32.mrf.mxu0
        %v1235 = vadd.f32 %v1183, %v1234
        %v1236 = vpop.f32.mrf.mxu0
        %v1237 = vpop.f32.mrf.mxu0
        %v1238 = vpop.f32.mrf.mxu0
        %1239 = vdwg.mxu0
        %v1240 = vmax.f32 %v1235, 0.0
        %v1241 = vpack.c.bf16 %v1240, %v1240
        %v1242 = vld [vmem:[%s7] sm:$0xf]
        %v1243 = vld [vmem:[%s7 + $0x4] sm:$0xf]
        %v1244 = vld [vmem:[%s7 + $0x8] sm:$0xf]
        %v1245 = vld [vmem:[%s7 + $0xc] sm:$0xf]
        %v1246 = vld [vmem:[%s7 + $0x10] sm:$0xf]
        %v1247 = vld [vmem:[%s7 + $0x14] sm:$0xf]
        %v1248 = vld [vmem:[%s7 + $0x18] sm:$0xf]
        %v1249 = vld [vmem:[%s7 + $0x1c] sm:$0xf]
        %v1250 = vld [vmem:[%s8] sm:$0x1]
        %v1252 = vlaneseq
        %v1253 = vshrl.u32 %v1252, 7
        %v1254 = vsub.s32 0, %v1253
        %v1255 = vrot.slane %v1250, %v1254
        %v1265 = vunpack.c.l.b16 %v1242
        %v1266 = vunpack.c.l.b16 %v1243
        %v1267 = vunpack.c.l.b16 %v1244
        %v1268 = vunpack.c.l.b16 %v1245
        %v1269 = vunpack.c.l.b16 %v1246
        %v1270 = vunpack.c.l.b16 %v1247
        %v1271 = vunpack.c.l.b16 %v1248
        %v1272 = vunpack.c.l.b16 %v1249
        %v1273 = vpack.c.b16 %v1266, %v1265
        %v1274 = vpack.c.b16 %v1268, %v1267
        %v1275 = vpack.c.b16 %v1270, %v1269
        %v1276 = vpack.c.b16 %v1272, %v1271
        %vm1281 = vcmask 523264
        %v1283 = vsel %vm1281, %v1241, 0
        %1285 = vmatprep.subr.bf16.mxu0 0
        %1286 = vmatpush1.bf16.msra.mxu0 0
        %1287 = vmatprep.subr.bf16.mxu0 0
        %1288 = vmatpush1.bf16.msra.mxu0 0
        %1289 = vmatprep.subr.bf16.mxu0 0
        %1290 = vmatpush1.bf16.msra.mxu0 0
        %1291 = vmatprep.subr.bf16.mxu0 0
        %1292 = vmatpush1.bf16.msra.mxu0 0
        %1293 = vmatprep.subr.bf16.mxu0 0
        %1294 = vmatpush1.bf16.msra.mxu0 %v1276
        %1295 = vmatprep.subr.bf16.mxu0 0
        %1296 = vmatpush1.bf16.msra.mxu0 %v1275
        %1297 = vmatprep.subr.bf16.mxu0 0
        %1298 = vmatpush1.bf16.msra.mxu0 %v1274
        %1299 = vmatprep.subr.bf16.mxu0 0
        %1300 = vmatpush1.bf16.msra.mxu0 %v1273
        %1301 = vmatprep.subr.bf16.mxu0 0
        %1302 = vmatpush2.bf16.msra.mxu0 0
        %1303 = vmatprep.subr.bf16.mxu0 0
        %1304 = vmatpush2.bf16.msra.mxu0 0
        %1305 = vmatprep.subr.bf16.mxu0 0
        %1306 = vmatpush2.bf16.msra.mxu0 0
        %1307 = vmatprep.subr.bf16.mxu0 0
        %1308 = vmatpush2.bf16.msra.mxu0 0
        %1309 = vmatprep.subr.bf16.mxu0 0
        %1310 = vmatpush2.bf16.msra.mxu0 0
        %1311 = vmatprep.subr.bf16.mxu0 0
        %1312 = vmatpush2.bf16.msra.mxu0 0
        %1313 = vmatprep.subr.bf16.mxu0 0
        %1314 = vmatpush2.bf16.msra.mxu0 0
        %1315 = vmatprep.subr.bf16.mxu0 0
        %1316 = vmatpush2.bf16.msra.mxu0 0
        %1317 = vmatprep.mubr.bf16.mxu0 0
        %1318 = vmatmul.mubr.bf16.gmra.mxu0 %v1283
        %v1319 = vpop.f32.mrf.mxu0
        %v1320 = vadd.f32 %v1255, %v1319
        %v1321 = vpop.f32.mrf.mxu0
        %v1322 = vpop.f32.mrf.mxu0
        %v1323 = vpop.f32.mrf.mxu0
        %1324 = vdwg.mxu0
        %v1325 = vadd.f32 %v1152, %v1320
        %1326 = vst.msk [vmem:[%s323] sm:$0xff] %vm330, %v1325
        %s1327 = sand.u32 %s225, 1
        %s1328 = scalar_lea.sflag [#allocation3], %s1327
        %s1329 = sand.u32 %s225, 1
        %s1330 = smul.addr %s1329, 8
        %s1331 = scalar_lea.vmem [#allocation2], %s1330
        // Predicated region
        $region57: #{tpu_custom_call.1} parent=55 // pred_check
          %p1332 = pneg %p235
        $region58: #{tpu_custom_call.1} parent=55 // pred_check_branch
          %1334 = sbr.rel (%p1332) target = $region60
        $region59: #{tpu_custom_call.1} parent=55 // pred_region
          %s1336 = ssub.s32 128, 128
          %1337 = vsyncadd %s1328, %s1336
          %s1338 = smul.addr %s23, 128
          %s1339 = scalar_lea.hbm %s9, %s1338
          %s1341 = sshll.u32 %s1331, 4
          %s1342 = int_to_ptr.vmem [resolvable:$true] %s1341
          %1344 = dma.vmem_to_hbm [thread:$0]  %s1342, 128, %s1339, %s1328
        $region60: #{tpu_custom_call.1} parent=55 // pred_fallthru
          _
      $region56: #{tpu_custom_call.1} parent=5 // pred_fallthru
        _
      %p1345 = scmp.le.s32.totalorder 2, %s18
      // Predicated region
      $region61: #{tpu_custom_call.1} parent=5 // pred_check
        %p1346 = pneg %p1345
      $region62: #{tpu_custom_call.1} parent=5 // pred_check_branch
        %1348 = sbr.rel (%p1346) target = $region64
      $region63: #{tpu_custom_call.1} parent=5 // pred_region
        %s1349 = ssub.s32 %s18, 2
        // Predicated region
        $region65: #{tpu_custom_call.1} parent=63 // pred_check
          %p1350 = pneg %p241
        $region66: #{tpu_custom_call.1} parent=63 // pred_check_branch
          %1352 = sbr.rel (%p1350) target = $region68
        $region67: #{tpu_custom_call.1} parent=63 // pred_region
          %s1353 = sand.u32 %s226, 1
          %s1354 = scalar_lea.sflag [#allocation3], %s1353
          %s1355 = sand.u32 %s226, 1
          %s1356 = smul.addr %s1355, 8
          %s1357 = scalar_lea.vmem [#allocation2], %s1356
          %1358 = dma.done %s1354, 128
        $region68: #{tpu_custom_call.1} parent=63 // pred_fallthru
          _
      $region64: #{tpu_custom_call.1} parent=5 // pred_fallthru
        _
    $region6: #{tpu_custom_call.1} parent=1 // loop_footer
      %s22 = sadd.s32 1, %s18
    $region7: #{tpu_custom_call.1} parent=1 // loop_footer_branch
      %17 = sbr.rel target = $region3
    $region8: #{tpu_custom_call.1} parent=1 // loop_exit
      _
    %1359 = vsyncpa [#allocation3], 1
    %s1360 = scalar_lea.sflag [#allocation3], 1
    %1361 = vsyncpa %s1360, 1

// kernel: tpu_custom_call.1
$region0: #{tpu_custom_call.1}
  #allocation0 [shape = 'u32[]', space=smem, size = 0x4, offset = 0x4, fixed_abs, tag = 'smem constant byte address 0x4 - core index']
  #allocation1 [shape = 'u32[144,128]{1,0:T(1,128)}', space=vmem, size = 0x12000, scoped, tag = 'internal scratch']
  %s0 = inlined_call_operand.vmem [shape: f32[2,8,32], index: 0, kind: input, shape index: {}]
  %s1 = inlined_call_operand.vmem [shape: bf16[4,32,24], index: 1, kind: input, shape index: {}]
  %s2 = inlined_call_operand.vmem [shape: f32[4,1,24], index: 2, kind: input, shape index: {}]
  %s3 = inlined_call_operand.vmem [shape: bf16[32,32], index: 3, kind: input, shape index: {}]
  %s4 = inlined_call_operand.vmem [shape: f32[1,32], index: 4, kind: input, shape index: {}]
  %s5 = inlined_call_operand.vmem [shape: bf16[32,64], index: 5, kind: input, shape index: {}]
  %s6 = inlined_call_operand.vmem [shape: f32[1,64], index: 6, kind: input, shape index: {}]
  %s7 = inlined_call_operand.vmem [shape: bf16[64,32], index: 7, kind: input, shape index: {}]
  %s8 = inlined_call_operand.vmem [shape: f32[1,32], index: 8, kind: input, shape index: {}]
  %s9 = inlined_call_operand.hbm [shape: f32[2,8,32], index: 9, kind: output, shape index: {}]
  %s10 = sld [smem:[#allocation0]]
  $region69: #{tpu_custom_call.1} parent=0
    _
  %s12 = ssub.s32 1, %s10
  %s13 = scalar_select 0, %s12, %s10
  $region1: #{tpu_custom_call.1} parent=0
    #allocation2 [shape = 'u8[8192]{0}', space=vmem, size = 0x2000, scoped, tag = 'output window, operand 0']
    #allocation3 [shape = 's32[2]{0}', space=sflag, size = 0x8, scoped, tag = 'scoped memory for tpu_custom_call.1']
    %14 = vsyncpa [#allocation3], 0
    %s15 = scalar_lea.sflag [#allocation3], 1
    %16 = vsyncpa %s15, 0
    loop: start=0, step=1, limit=4
    $region2: #{tpu_custom_call.1} parent=1 // loop_pre_header
      _
    $region3: #{tpu_custom_call.1} parent=1 // loop_header
      %s18 = sphi 0, %s22
      %p19 = scmp.ge.s32.totalorder %s18, 4
      %s28 = sphi 0, %s30
      %s31 = sphi 0, %s28
      %s32 = sphi 0, %s31
      %s48 = sphi 0, %s32
      %s52 = sphi 0, %s52
      %s54 = sphi 0, %s52
      %s55 = sphi 0, %s54
      %s69 = sphi 0, %s55
      %s73 = sphi 0, %s73
      %s75 = sphi 0, %s73
      %s76 = sphi 0, %s75
      %s90 = sphi 0, %s76
      %s94 = sphi 0, %s94
      %s96 = sphi 0, %s94
      %s97 = sphi 0, %s96
      %s111 = sphi 0, %s97
      %s115 = sphi 0, %s115
      %s117 = sphi 0, %s115
      %s118 = sphi 0, %s117
      %s132 = sphi 0, %s118
      %s136 = sphi 0, %s136
      %s138 = sphi 0, %s136
      %s139 = sphi 0, %s138
      %s153 = sphi 0, %s139
      %s157 = sphi 0, %s157
      %s159 = sphi 0, %s157
      %s160 = sphi 0, %s159
      %s174 = sphi 0, %s160
      %s178 = sphi 0, %s178
      %s180 = sphi 0, %s178
      %s181 = sphi 0, %s180
      %s195 = sphi 0, %s181
      %s199 = sphi 0, %s199
      %s201 = sphi 0, %s199
      %s202 = sphi 0, %s201
      %s216 = sphi 0, %s202
      %s222 = sphi 0, %s224
      %s225 = sphi 0, %s222
      %s226 = sphi 0, %s225
      %s242 = sphi 0, %s226
    $region4: #{tpu_custom_call.1} parent=1 // loop_header_branch
      %21 = sbr.rel (%p19) target = $region8
    $region5: #{tpu_custom_call.1} parent=1 // loop_body
      %s23 = ssub.s32 %s18, 1
      %s24 = ssub.s32 %s18, 2
      %s25 = sadd.s32 %s18, 1
      %s26 = ssub.s32 %s18, %s25
      %p27 = scmp.eq.s32.totalorder %s26, 0
      %s29 = sadd.s32 %s28, 1
      %s30 = scalar_select %p27, %s28, %s29
      %p33 = pneg %p27
      %p34 = scmp.eq.s32.totalorder %s18, 1
      %p35 = por %p33, %p34
      %p36 = scmp.ne.s32.totalorder %s28, %s31
      %p37 = scmp.eq.s32.totalorder %s18, 0
      %p38 = por %p36, %p37
      %p39 = scmp.ne.s32.totalorder %s28, %s31
      %p40 = scmp.eq.s32.totalorder %s23, 1
      %p41 = por %p39, %p40
      %p42 = scmp.ne.s32.totalorder %s31, %s32
      %p43 = scmp.eq.s32.totalorder %s23, 0
      %p44 = por %p42, %p43
      %p45 = scmp.ne.s32.totalorder %s31, %s32
      %p46 = scmp.eq.s32.totalorder %s24, 1
      %p47 = por %p45, %p46
      %p49 = scmp.ne.s32.totalorder %s32, %s48
      %p50 = scmp.eq.s32.totalorder %s24, 0
      %p51 = por %p49, %p50
      %s53 = sadd.s32 %s52, 1
      %p56 = scmp.eq.s32.totalorder %s18, 1
      %p57 = scmp.ne.s32.totalorder %s52, %s54
      %p58 = scmp.eq.s32.totalorder %s18, 0
      %p59 = por %p57, %p58
      %p60 = scmp.ne.s32.totalorder %s52, %s54
      %p61 = scmp.eq.s32.totalorder %s23, 1
      %p62 = por %p60, %p61
      %p63 = scmp.ne.s32.totalorder %s54, %s55
      %p64 = scmp.eq.s32.totalorder %s23, 0
      %p65 = por %p63, %p64
      %p66 = scmp.ne.s32.totalorder %s54, %s55
      %p67 = scmp.eq.s32.totalorder %s24, 1
      %p68 = por %p66, %p67
      %p70 = scmp.ne.s32.totalorder %s55, %s69
      %p71 = scmp.eq.s32.totalorder %s24, 0
      %p72 = por %p70, %p71
      %s74 = sadd.s32 %s73, 1
      %p77 = scmp.eq.s32.totalorder %s18, 1
      %p78 = scmp.ne.s32.totalorder %s73, %s75
      %p79 = scmp.eq.s32.totalorder %s18, 0
      %p80 = por %p78, %p79
      %p81 = scmp.ne.s32.totalorder %s73, %s75
      %p82 = scmp.eq.s32.totalorder %s23, 1
      %p83 = por %p81, %p82
      %p84 = scmp.ne.s32.totalorder %s75, %s76
      %p85 = scmp.eq.s32.totalorder %s23, 0
      %p86 = por %p84, %p85
      %p87 = scmp.ne.s32.totalorder %s75, %s76
      %p88 = scmp.eq.s32.totalorder %s24, 1
      %p89 = por %p87, %p88
      %p91 = scmp.ne.s32.totalorder %s76, %s90
      %p92 = scmp.eq.s32.totalorder %s24, 0
      %p93 = por %p91, %p92
      %s95 = sadd.s32 %s94, 1
      %p98 = scmp.eq.s32.totalorder %s18, 1
      %p99 = scmp.ne.s32.totalorder %s94, %s96
      %p100 = scmp.eq.s32.totalorder %s18, 0
      %p101 = por %p99, %p100
      %p102 = scmp.ne.s32.totalorder %s94, %s96
      %p103 = scmp.eq.s32.totalorder %s23, 1
      %p104 = por %p102, %p103
      %p105 = scmp.ne.s32.totalorder %s96, %s97
      %p106 = scmp.eq.s32.totalorder %s23, 0
      %p107 = por %p105, %p106
      %p108 = scmp.ne.s32.totalorder %s96, %s97
      %p109 = scmp.eq.s32.totalorder %s24, 1
      %p110 = por %p108, %p109
      %p112 = scmp.ne.s32.totalorder %s97, %s111
      %p113 = scmp.eq.s32.totalorder %s24, 0
      %p114 = por %p112, %p113
      %s116 = sadd.s32 %s115, 1
      %p119 = scmp.eq.s32.totalorder %s18, 1
      %p120 = scmp.ne.s32.totalorder %s115, %s117
      %p121 = scmp.eq.s32.totalorder %s18, 0
      %p122 = por %p120, %p121
      %p123 = scmp.ne.s32.totalorder %s115, %s117
      %p124 = scmp.eq.s32.totalorder %s23, 1
      %p125 = por %p123, %p124
      %p126 = scmp.ne.s32.totalorder %s117, %s118
      %p127 = scmp.eq.s32.totalorder %s23, 0
      %p128 = por %p126, %p127
      %p129 = scmp.ne.s32.totalorder %s117, %s118
      %p130 = scmp.eq.s32.totalorder %s24, 1
      %p131 = por %p129, %p130
      %p133 = scmp.ne.s32.totalorder %s118, %s132
      %p134 = scmp.eq.s32.totalorder %s24, 0
      %p135 = por %p133, %p134
      %s137 = sadd.s32 %s136, 1
      %p140 = scmp.eq.s32.totalorder %s18, 1
      %p141 = scmp.ne.s32.totalorder %s136, %s138
      %p142 = scmp.eq.s32.totalorder %s18, 0
      %p143 = por %p141, %p142
      %p144 = scmp.ne.s32.totalorder %s136, %s138
      %p145 = scmp.eq.s32.totalorder %s23, 1
      %p146 = por %p144, %p145
      %p147 = scmp.ne.s32.totalorder %s138, %s139
      %p148 = scmp.eq.s32.totalorder %s23, 0
      %p149 = por %p147, %p148
      %p150 = scmp.ne.s32.totalorder %s138, %s139
      %p151 = scmp.eq.s32.totalorder %s24, 1
      %p152 = por %p150, %p151
      %p154 = scmp.ne.s32.totalorder %s139, %s153
      %p155 = scmp.eq.s32.totalorder %s24, 0
      %p156 = por %p154, %p155
      %s158 = sadd.s32 %s157, 1
      %p161 = scmp.eq.s32.totalorder %s18, 1
      %p162 = scmp.ne.s32.totalorder %s157, %s159
      %p163 = scmp.eq.s32.totalorder %s18, 0
      %p164 = por %p162, %p163
      %p165 = scmp.ne.s32.totalorder %s157, %s159
      %p166 = scmp.eq.s32.totalorder %s23, 1
      %p167 = por %p165, %p166
      %p168 = scmp.ne.s32.totalorder %s159, %s160
      %p169 = scmp.eq.s32.totalorder %s23, 0
      %p170 = por %p168, %p169
      %p171 = scmp.ne.s32.totalorder %s159, %s160
      %p172 = scmp.eq.s32.totalorder %s24, 1
      %p173 = por %p171, %p172
      %p175 = scmp.ne.s32.totalorder %s160, %s174
      %p176 = scmp.eq.s32.totalorder %s24, 0
      %p177 = por %p175, %p176
      %s179 = sadd.s32 %s178, 1
      %p182 = scmp.eq.s32.totalorder %s18, 1
      %p183 = scmp.ne.s32.totalorder %s178, %s180
      %p184 = scmp.eq.s32.totalorder %s18, 0
      %p185 = por %p183, %p184
      %p186 = scmp.ne.s32.totalorder %s178, %s180
      %p187 = scmp.eq.s32.totalorder %s23, 1
      %p188 = por %p186, %p187
      %p189 = scmp.ne.s32.totalorder %s180, %s181
      %p190 = scmp.eq.s32.totalorder %s23, 0
      %p191 = por %p189, %p190
      %p192 = scmp.ne.s32.totalorder %s180, %s181
      %p193 = scmp.eq.s32.totalorder %s24, 1
      %p194 = por %p192, %p193
      %p196 = scmp.ne.s32.totalorder %s181, %s195
      %p197 = scmp.eq.s32.totalorder %s24, 0
      %p198 = por %p196, %p197
      %s200 = sadd.s32 %s199, 1
      %p203 = scmp.eq.s32.totalorder %s18, 1
      %p204 = scmp.ne.s32.totalorder %s199, %s201
      %p205 = scmp.eq.s32.totalorder %s18, 0
      %p206 = por %p204, %p205
      %p207 = scmp.ne.s32.totalorder %s199, %s201
      %p208 = scmp.eq.s32.totalorder %s23, 1
      %p209 = por %p207, %p208
      %p210 = scmp.ne.s32.totalorder %s201, %s202
      %p211 = scmp.eq.s32.totalorder %s23, 0
      %p212 = por %p210, %p211
      %p213 = scmp.ne.s32.totalorder %s201, %s202
      %p214 = scmp.eq.s32.totalorder %s24, 1
      %p215 = por %p213, %p214
      %p217 = scmp.ne.s32.totalorder %s202, %s216
      %p218 = scmp.eq.s32.totalorder %s24, 0
      %p219 = por %p217, %p218
      %s220 = ssub.s32 %s18, %s25
      %p221 = scmp.eq.s32.totalorder %s220, 0
      %s223 = sadd.s32 %s222, 1
      %s224 = scalar_select %p221, %s222, %s223
      %p227 = pneg %p221
      %p228 = scmp.eq.s32.totalorder %s18, 1
      %p229 = por %p227, %p228
      %p230 = scmp.ne.s32.totalorder %s222, %s225
      %p231 = scmp.eq.s32.totalorder %s18, 0
      %p232 = por %p230, %p231
      %p233 = scmp.ne.s32.totalorder %s222, %s225
      %p234 = scmp.eq.s32.totalorder %s23, 1
      %p235 = por %p233, %p234
      %p236 = scmp.ne.s32.totalorder %s225, %s226
      %p237 = scmp.eq.s32.totalorder %s23, 0
      %p238 = por %p236, %p237
      %p239 = scmp.ne.s32.totalorder %s225, %s226
      %p240 = scmp.eq.s32.totalorder %s24, 1
      %p241 = por %p239, %p240
      %p243 = scmp.ne.s32.totalorder %s226, %s242
      %p244 = scmp.eq.s32.totalorder %s24, 0
      %p245 = por %p243, %p244
      %p246 = scmp.le.s32.totalorder 1, %s18
      %p247 = scmp.lt.s32.totalorder %s18, 3
      %p248 = pnand %p246, %p247
      %p249 = pneg %p248
      // Predicated region
      $region9: #{tpu_custom_call.1} parent=5 // pred_check
        _
      $region10: #{tpu_custom_call.1} parent=5 // pred_check_branch
        %251 = sbr.rel (%p248) target = $region12
      $region11: #{tpu_custom_call.1} parent=5 // pred_region
        %s252 = ssub.s32 %s18, 1
        // Predicated region
        $region13: #{tpu_custom_call.1} parent=11 // pred_check
          %p253 = pneg %p65
        $region14: #{tpu_custom_call.1} parent=11 // pred_check_branch
          %255 = sbr.rel (%p253) target = $region16
        $region15: #{tpu_custom_call.1} parent=11 // pred_region
          _
        $region16: #{tpu_custom_call.1} parent=11 // pred_fallthru
          _
        // Predicated region
        $region17: #{tpu_custom_call.1} parent=11 // pred_check
          %p256 = pneg %p86
        $region18: #{tpu_custom_call.1} parent=11 // pred_check_branch
          %258 = sbr.rel (%p256) target = $region20
        $region19: #{tpu_custom_call.1} parent=11 // pred_region
          _
        $region20: #{tpu_custom_call.1} parent=11 // pred_fallthru
          _
        // Predicated region
        $region21: #{tpu_custom_call.1} parent=11 // pred_check
          %p259 = pneg %p107
        $region22: #{tpu_custom_call.1} parent=11 // pred_check_branch
          %261 = sbr.rel (%p259) target = $region24
        $region23: #{tpu_custom_call.1} parent=11 // pred_region
          _
        $region24: #{tpu_custom_call.1} parent=11 // pred_fallthru
          _
        // Predicated region
        $region25: #{tpu_custom_call.1} parent=11 // pred_check
          %p262 = pneg %p128
        $region26: #{tpu_custom_call.1} parent=11 // pred_check_branch
          %264 = sbr.rel (%p262) target = $region28
        $region27: #{tpu_custom_call.1} parent=11 // pred_region
          _
        $region28: #{tpu_custom_call.1} parent=11 // pred_fallthru
          _
        // Predicated region
        $region29: #{tpu_custom_call.1} parent=11 // pred_check
          %p265 = pneg %p149
        $region30: #{tpu_custom_call.1} parent=11 // pred_check_branch
          %267 = sbr.rel (%p265) target = $region32
        $region31: #{tpu_custom_call.1} parent=11 // pred_region
          _
        $region32: #{tpu_custom_call.1} parent=11 // pred_fallthru
          _
        // Predicated region
        $region33: #{tpu_custom_call.1} parent=11 // pred_check
          %p268 = pneg %p170
        $region34: #{tpu_custom_call.1} parent=11 // pred_check_branch
          %270 = sbr.rel (%p268) target = $region36
        $region35: #{tpu_custom_call.1} parent=11 // pred_region
          _
        $region36: #{tpu_custom_call.1} parent=11 // pred_fallthru
          _
        // Predicated region
        $region37: #{tpu_custom_call.1} parent=11 // pred_check
          %p271 = pneg %p191
        $region38: #{tpu_custom_call.1} parent=11 // pred_check_branch
          %273 = sbr.rel (%p271) target = $region40
        $region39: #{tpu_custom_call.1} parent=11 // pred_region
          _
        $region40: #{tpu_custom_call.1} parent=11 // pred_fallthru
          _
        // Predicated region
        $region41: #{tpu_custom_call.1} parent=11 // pred_check
          %p274 = pneg %p212
        $region42: #{tpu_custom_call.1} parent=11 // pred_check_branch
          %276 = sbr.rel (%p274) target = $region44
        $region43: #{tpu_custom_call.1} parent=11 // pred_region
          _
        $region44: #{tpu_custom_call.1} parent=11 // pred_fallthru
          _
      $region12: #{tpu_custom_call.1} parent=5 // pred_fallthru
        _
      %p277 = scmp.lt.s32.totalorder %s18, 2
      // Predicated region
      $region45: #{tpu_custom_call.1} parent=5 // pred_check
        %p278 = pneg %p277
      $region46: #{tpu_custom_call.1} parent=5 // pred_check_branch
        %280 = sbr.rel (%p278) target = $region48
      $region47: #{tpu_custom_call.1} parent=5 // pred_region
        // Predicated region
        $region49: #{tpu_custom_call.1} parent=47 // pred_check
          %p281 = pneg %p38
        $region50: #{tpu_custom_call.1} parent=47 // pred_check_branch
          %283 = sbr.rel (%p281) target = $region52
        $region51: #{tpu_custom_call.1} parent=47 // pred_region
          %p284 = scmp.lt.s32.totalorder %s18, 1
          %s285 = scalar_select %p284, %s18, 1
          %s286 = smul.addr %s285, 8
          %s287 = scalar_lea.vmem %s0, %s286
        $region52: #{tpu_custom_call.1} parent=47 // pred_fallthru
          _
      $region48: #{tpu_custom_call.1} parent=5 // pred_fallthru
        _
      %p288 = scmp.le.s32.totalorder 1, %s18
      %p289 = scmp.lt.s32.totalorder %s18, 3
      %p290 = pnand %p288, %p289
      %p291 = pneg %p290
      // Predicated region
      $region53: #{tpu_custom_call.1} parent=5 // pred_check
        _
      $region54: #{tpu_custom_call.1} parent=5 // pred_check_branch
        %293 = sbr.rel (%p290) target = $region56
      $region55: #{tpu_custom_call.1} parent=5 // pred_region
        %s294 = ssub.s32 %s18, 1
        %p295 = scmp.lt.s32.totalorder %s23, 1
        %s296 = scalar_select %p295, %s23, 1
        %s297 = smul.addr %s296, 8
        %s298 = scalar_lea.vmem %s0, %s297
        %p299 = pneg %p44
        %p300 = pneg %p41
        %p301 = pneg %p65
        %p302 = pneg %p62
        %p303 = pneg %p86
        %p304 = pneg %p83
        %p305 = pneg %p107
        %p306 = pneg %p104
        %p307 = pneg %p128
        %p308 = pneg %p125
        %p309 = pneg %p149
        %p310 = pneg %p146
        %p311 = pneg %p170
        %p312 = pneg %p167
        %p313 = pneg %p191
        %p314 = pneg %p188
        %p315 = pneg %p212
        %p316 = pneg %p209
        %p317 = pneg %p238
        %p318 = pneg %p235
        %s319 = sand.u32 %s225, 1
        %s320 = scalar_lea.sflag [#allocation3], %s319
        %s321 = sand.u32 %s225, 1
        %s322 = smul.addr %s321, 8
        %s323 = scalar_lea.vmem [#allocation2], %s322
        %p324 = scmp.lt.s32.totalorder %s23, 1
        %s325 = scalar_select %p324, %s23, 1
        %s326 = smul.addr %s325, 8
        %s327 = scalar_lea.vmem %s0, %s326
        %v329 = vld [vmem:[%s327] sm:$0xff]
        %vm330 = vcmask 261120
        %v331 = vsel %vm330, %v329, 0.0
        %332 = vadd.xlane.f32.xlu0 %v331
        %v333 = vpop.xlane.xlu0 %332
        %v334 = vrcp.pop 32.0
        %v335 = vmul.f32 %v333, %v334
        %v336 = vsub.f32 %v329, %v335
        %v337 = vmul.f32 %v336, %v336
        %v338 = vsel %vm330, %v337, 0.0
        %339 = vadd.xlane.f32.xlu0 %v338
        %v340 = vpop.xlane.xlu0 %339
        %v341 = vmul.f32 %v340, 0.032258064
        %v342 = vrsqrt.pop %v341
        %v343 = vmul.f32 %v341, %v342
        %vm344 = vcmp.eq.f32.partialorder %v341, inf
        %v345 = vsel %vm344, %v341, %v343
        %vm346 = vcmp.eq.f32.partialorder %v341, 0.0
        %v347 = vand.u32 %v341, 2147483648
        %v348 = vsel %vm346, %v347, %v345
        %v349 = vadd.f32 %v348, 1e-06
        %v350 = vrcp.pop %v349
        %v351 = vmul.f32 %v336, %v350
        %v352 = vpack.c.bf16 %v351, %v351
        %v353 = vld [vmem:[%s1] sm:$0xf]
        %v354 = vld [vmem:[%s1 + $0x4] sm:$0xf]
        %v355 = vld [vmem:[%s1 + $0x8] sm:$0xf]
        %v356 = vld [vmem:[%s1 + $0xc] sm:$0xf]
        %v357 = vld [vmem:[%s2] sm:$0x1]
        %v359 = vlaneseq
        %v360 = vshrl.u32 %v359, 7
        %v361 = vsub.s32 0, %v360
        %v362 = vrot.slane %v357, %v361
        %v368 = vunpack.c.l.b16 %v353
        %v369 = vunpack.c.l.b16 %v354
        %v370 = vunpack.c.l.b16 %v355
        %v371 = vunpack.c.l.b16 %v356
        %v372 = vpack.c.b16 %v369, %v368
        %v373 = vpack.c.b16 %v371, %v370
        %v377 = vsel %vm330, %v352, 0
        %379 = vmatprep.subr.bf16.mxu0 0
        %380 = vmatpush1.bf16.msra.mxu0 0
        %381 = vmatprep.subr.bf16.mxu0 0
        %382 = vmatpush1.bf16.msra.mxu0 0
        %383 = vmatprep.subr.bf16.mxu0 0
        %384 = vmatpush1.bf16.msra.mxu0 0
        %385 = vmatprep.subr.bf16.mxu0 0
        %386 = vmatpush1.bf16.msra.mxu0 0
        %387 = vmatprep.subr.bf16.mxu0 0
        %388 = vmatpush1.bf16.msra.mxu0 0
        %389 = vmatprep.subr.bf16.mxu0 0
        %390 = vmatpush1.bf16.msra.mxu0 0
        %391 = vmatprep.subr.bf16.mxu0 0
        %392 = vmatpush1.bf16.msra.mxu0 %v373
        %393 = vmatprep.subr.bf16.mxu0 0
        %394 = vmatpush1.bf16.msra.mxu0 %v372
        %395 = vmatprep.subr.bf16.mxu0 0
        %396 = vmatpush2.bf16.msra.mxu0 0
        %397 = vmatprep.subr.bf16.mxu0 0
        %398 = vmatpush2.bf16.msra.mxu0 0
        %399 = vmatprep.subr.bf16.mxu0 0
        %400 = vmatpush2.bf16.msra.mxu0 0
        %401 = vmatprep.subr.bf16.mxu0 0
        %402 = vmatpush2.bf16.msra.mxu0 0
        %403 = vmatprep.subr.bf16.mxu0 0
        %404 = vmatpush2.bf16.msra.mxu0 0
        %405 = vmatprep.subr.bf16.mxu0 0
        %406 = vmatpush2.bf16.msra.mxu0 0
        %407 = vmatprep.subr.bf16.mxu0 0
        %408 = vmatpush2.bf16.msra.mxu0 0
        %409 = vmatprep.subr.bf16.mxu0 0
        %410 = vmatpush2.bf16.msra.mxu0 0
        %411 = vmatprep.mubr.bf16.mxu0 0
        %412 = vmatmul.mubr.bf16.gmra.mxu0 %v377
        %v413 = vpop.f32.mrf.mxu0
        %v414 = vadd.f32 %v362, %v413
        %v415 = vpop.f32.mrf.mxu0
        %v416 = vpop.f32.mrf.mxu0
        %v417 = vpop.f32.mrf.mxu0
        %418 = vdwg.mxu0
        %v419 = vpack.c.bf16 %v414, %v414
        %421 = vrot.lane.b32.xlu0 %v419, 120
        %v422 = vpop.permute.xlu0 %421
        %vm423 = vcmask 64512
        %v425 = vsel %vm423, %v419, 0
        %v428 = vsel %vm423, %v422, 0
        %430 = vmatprep.subr.bf16.mxu0 0
        %431 = vmatpush1.bf16.xpose.msra.mxu0 0
        %432 = vmatprep.subr.bf16.mxu0 0
        %433 = vmatpush1.bf16.xpose.msra.mxu0 0
        %434 = vmatprep.subr.bf16.mxu0 0
        %435 = vmatpush1.bf16.xpose.msra.mxu0 0
        %436 = vmatprep.subr.bf16.mxu0 0
        %437 = vmatpush1.bf16.xpose.msra.mxu0 0
        %438 = vmatprep.subr.bf16.mxu0 0
        %439 = vmatpush1.bf16.xpose.msra.mxu0 0
        %440 = vmatprep.subr.bf16.mxu0 0
        %441 = vmatpush1.bf16.xpose.msra.mxu0 0
        %442 = vmatprep.subr.bf16.mxu0 0
        %443 = vmatpush1.bf16.xpose.msra.mxu0 0
        %444 = vmatprep.subr.bf16.mxu0 0
        %445 = vmatpush1.bf16.xpose.msra.mxu0 %v428
        %446 = vmatprep.subr.bf16.mxu0 0
        %447 = vmatpush2.bf16.xpose.msra.mxu0 0
        %448 = vmatprep.subr.bf16.mxu0 0
        %449 = vmatpush2.bf16.xpose.msra.mxu0 0
        %450 = vmatprep.subr.bf16.mxu0 0
        %451 = vmatpush2.bf16.xpose.msra.mxu0 0
        %452 = vmatprep.subr.bf16.mxu0 0
        %453 = vmatpush2.bf16.xpose.msra.mxu0 0
        %454 = vmatprep.subr.bf16.mxu0 0
        %455 = vmatpush2.bf16.xpose.msra.mxu0 0
        %456 = vmatprep.subr.bf16.mxu0 0
        %457 = vmatpush2.bf16.xpose.msra.mxu0 0
        %458 = vmatprep.subr.bf16.mxu0 0
        %459 = vmatpush2.bf16.xpose.msra.mxu0 0
        %460 = vmatprep.subr.bf16.mxu0 0
        %461 = vmatpush2.bf16.xpose.msra.mxu0 0
        %462 = vmatprep.mubr.bf16.mxu0 0
        %463 = vmatmul.mubr.bf16.gmra.mxu0 %v425
        %v464 = vpop.f32.mrf.mxu0
        %v465 = vadd.f32 0.0, %v464
        %v466 = vpop.f32.mrf.mxu0
        %v467 = vpop.f32.mrf.mxu0
        %v468 = vpop.f32.mrf.mxu0
        %469 = vdwg.mxu0
        %v470 = vmul.f32 %v465, 0.35355338
        %v471 = vfloor.f32 %v470
        %v472 = vsel %vm423, %v471, -inf
        %473 = vmax.xlane.f32.xlu0 %v472
        %v474 = vpop.xlane.xlu0 %473
        %v475 = vsub.f32 %v471, %v474
        %v476 = vmul.f32 %v475, 1.442695
        %v477 = vpow.pop %v476
        %v478 = vsel %vm423, %v477, 0.0
        %479 = vadd.xlane.f32.xlu0 %v478
        %v480 = vpop.xlane.xlu0 %479
        %v481 = vrcp.pop %v480
        %v482 = vmul.f32 %v477, %v481
        %v483 = vpack.c.bf16 %v482, %v482
        %484 = vrot.lane.b32.xlu0 %v419, 112
        %v485 = vpop.permute.xlu0 %484
        %v487 = vsel %vm423, %v483, 0
        %vm489 = vcmask 1043456
        %v491 = vsel %vm489, %v485, 0
        %493 = vmatprep.subr.bf16.mxu0 0
        %494 = vmatpush1.bf16.msra.mxu0 0
        %495 = vmatprep.subr.bf16.mxu0 0
        %496 = vmatpush1.bf16.msra.mxu0 0
        %497 = vmatprep.subr.bf16.mxu0 0
        %498 = vmatpush1.bf16.msra.mxu0 0
        %499 = vmatprep.subr.bf16.mxu0 0
        %500 = vmatpush1.bf16.msra.mxu0 0
        %501 = vmatprep.subr.bf16.mxu0 0
        %502 = vmatpush1.bf16.msra.mxu0 0
        %503 = vmatprep.subr.bf16.mxu0 0
        %504 = vmatpush1.bf16.msra.mxu0 0
        %505 = vmatprep.subr.bf16.mxu0 0
        %506 = vmatpush1.bf16.msra.mxu0 0
        %507 = vmatprep.subr.bf16.mxu0 0
        %508 = vmatpush1.bf16.msra.mxu0 %v491
        %509 = vmatprep.subr.bf16.mxu0 0
        %510 = vmatpush2.bf16.msra.mxu0 0
        %511 = vmatprep.subr.bf16.mxu0 0
        %512 = vmatpush2.bf16.msra.mxu0 0
        %513 = vmatprep.subr.bf16.mxu0 0
        %514 = vmatpush2.bf16.msra.mxu0 0
        %515 = vmatprep.subr.bf16.mxu0 0
        %516 = vmatpush2.bf16.msra.mxu0 0
        %517 = vmatprep.subr.bf16.mxu0 0
        %518 = vmatpush2.bf16.msra.mxu0 0
        %519 = vmatprep.subr.bf16.mxu0 0
        %520 = vmatpush2.bf16.msra.mxu0 0
        %521 = vmatprep.subr.bf16.mxu0 0
        %522 = vmatpush2.bf16.msra.mxu0 0
        %523 = vmatprep.subr.bf16.mxu0 0
        %524 = vmatpush2.bf16.msra.mxu0 0
        %525 = vmatprep.mubr.bf16.mxu0 0
        %526 = vmatmul.mubr.bf16.gmra.mxu0 %v487
        %v527 = vpop.f32.mrf.mxu0
        %v528 = vadd.f32 0.0, %v527
        %v529 = vpop.f32.mrf.mxu0
        %v530 = vpop.f32.mrf.mxu0
        %v531 = vpop.f32.mrf.mxu0
        %532 = vdwg.mxu0
        %v533 = vpack.c.bf16 %v528, %v528
        %s534 = scalar_lea.vmem %s1, 16
        %v535 = vld [vmem:[%s534] sm:$0xf]
        %v536 = vld [vmem:[%s534 + $0x4] sm:$0xf]
        %v537 = vld [vmem:[%s534 + $0x8] sm:$0xf]
        %v538 = vld [vmem:[%s534 + $0xc] sm:$0xf]
        %s539 = scalar_lea.vmem %s2, 1
        %v540 = vld [vmem:[%s539] sm:$0x1]
        %v542 = vlaneseq
        %v543 = vshrl.u32 %v542, 7
        %v544 = vsub.s32 0, %v543
        %v545 = vrot.slane %v540, %v544
        %v551 = vunpack.c.l.b16 %v535
        %v552 = vunpack.c.l.b16 %v536
        %v553 = vunpack.c.l.b16 %v537
        %v554 = vunpack.c.l.b16 %v538
        %v555 = vpack.c.b16 %v552, %v551
        %v556 = vpack.c.b16 %v554, %v553
        %559 = vmatprep.subr.bf16.mxu0 0
        %560 = vmatpush1.bf16.msra.mxu0 0
        %561 = vmatprep.subr.bf16.mxu0 0
        %562 = vmatpush1.bf16.msra.mxu0 0
        %563 = vmatprep.subr.bf16.mxu0 0
        %564 = vmatpush1.bf16.msra.mxu0 0
        %565 = vmatprep.subr.bf16.mxu0 0
        %566 = vmatpush1.bf16.msra.mxu0 0
        %567 = vmatprep.subr.bf16.mxu0 0
        %568 = vmatpush1.bf16.msra.mxu0 0
        %569 = vmatprep.subr.bf16.mxu0 0
        %570 = vmatpush1.bf16.msra.mxu0 0
        %571 = vmatprep.subr.bf16.mxu0 0
        %572 = vmatpush1.bf16.msra.mxu0 %v556
        %573 = vmatprep.subr.bf16.mxu0 0
        %574 = vmatpush1.bf16.msra.mxu0 %v555
        %575 = vmatprep.subr.bf16.mxu0 0
        %576 = vmatpush2.bf16.msra.mxu0 0
        %577 = vmatprep.subr.bf16.mxu0 0
        %578 = vmatpush2.bf16.msra.mxu0 0
        %579 = vmatprep.subr.bf16.mxu0 0
        %580 = vmatpush2.bf16.msra.mxu0 0
        %581 = vmatprep.subr.bf16.mxu0 0
        %582 = vmatpush2.bf16.msra.mxu0 0
        %583 = vmatprep.subr.bf16.mxu0 0
        %584 = vmatpush2.bf16.msra.mxu0 0
        %585 = vmatprep.subr.bf16.mxu0 0
        %586 = vmatpush2.bf16.msra.mxu0 0
        %587 = vmatprep.subr.bf16.mxu0 0
        %588 = vmatpush2.bf16.msra.mxu0 0
        %589 = vmatprep.subr.bf16.mxu0 0
        %590 = vmatpush2.bf16.msra.mxu0 0
        %591 = vmatprep.mubr.bf16.mxu0 0
        %592 = vmatmul.mubr.bf16.gmra.mxu0 %v377
        %v593 = vpop.f32.mrf.mxu0
        %v594 = vadd.f32 %v545, %v593
        %v595 = vpop.f32.mrf.mxu0
        %v596 = vpop.f32.mrf.mxu0
        %v597 = vpop.f32.mrf.mxu0
        %598 = vdwg.mxu0
        %v599 = vpack.c.bf16 %v594, %v594
        %601 = vrot.lane.b32.xlu0 %v599, 120
        %v602 = vpop.permute.xlu0 %601
        %v604 = vsel %vm423, %v599, 0
        %v607 = vsel %vm423, %v602, 0
        %609 = vmatprep.subr.bf16.mxu0 0
        %610 = vmatpush1.bf16.xpose.msra.mxu0 0
        %611 = vmatprep.subr.bf16.mxu0 0
        %612 = vmatpush1.bf16.xpose.msra.mxu0 0
        %613 = vmatprep.subr.bf16.mxu0 0
        %614 = vmatpush1.bf16.xpose.msra.mxu0 0
        %615 = vmatprep.subr.bf16.mxu0 0
        %616 = vmatpush1.bf16.xpose.msra.mxu0 0
        %617 = vmatprep.subr.bf16.mxu0 0
        %618 = vmatpush1.bf16.xpose.msra.mxu0 0
        %619 = vmatprep.subr.bf16.mxu0 0
        %620 = vmatpush1.bf16.xpose.msra.mxu0 0
        %621 = vmatprep.subr.bf16.mxu0 0
        %622 = vmatpush1.bf16.xpose.msra.mxu0 0
        %623 = vmatprep.subr.bf16.mxu0 0
        %624 = vmatpush1.bf16.xpose.msra.mxu0 %v607
        %625 = vmatprep.subr.bf16.mxu0 0
        %626 = vmatpush2.bf16.xpose.msra.mxu0 0
        %627 = vmatprep.subr.bf16.mxu0 0
        %628 = vmatpush2.bf16.xpose.msra.mxu0 0
        %629 = vmatprep.subr.bf16.mxu0 0
        %630 = vmatpush2.bf16.xpose.msra.mxu0 0
        %631 = vmatprep.subr.bf16.mxu0 0
        %632 = vmatpush2.bf16.xpose.msra.mxu0 0
        %633 = vmatprep.subr.bf16.mxu0 0
        %634 = vmatpush2.bf16.xpose.msra.mxu0 0
        %635 = vmatprep.subr.bf16.mxu0 0
        %636 = vmatpush2.bf16.xpose.msra.mxu0 0
        %637 = vmatprep.subr.bf16.mxu0 0
        %638 = vmatpush2.bf16.xpose.msra.mxu0 0
        %639 = vmatprep.subr.bf16.mxu0 0
        %640 = vmatpush2.bf16.xpose.msra.mxu0 0
        %641 = vmatprep.mubr.bf16.mxu0 0
        %642 = vmatmul.mubr.bf16.gmra.mxu0 %v604
        %v643 = vpop.f32.mrf.mxu0
        %v644 = vadd.f32 0.0, %v643
        %v645 = vpop.f32.mrf.mxu0
        %v646 = vpop.f32.mrf.mxu0
        %v647 = vpop.f32.mrf.mxu0
        %648 = vdwg.mxu0
        %v649 = vmul.f32 %v644, 0.35355338
        %v650 = vfloor.f32 %v649
        %v651 = vsel %vm423, %v650, -inf
        %652 = vmax.xlane.f32.xlu0 %v651
        %v653 = vpop.xlane.xlu0 %652
        %v654 = vsub.f32 %v650, %v653
        %v655 = vmul.f32 %v654, 1.442695
        %v656 = vpow.pop %v655
        %v657 = vsel %vm423, %v656, 0.0
        %658 = vadd.xlane.f32.xlu0 %v657
        %v659 = vpop.xlane.xlu0 %658
        %v660 = vrcp.pop %v659
        %v661 = vmul.f32 %v656, %v660
        %v662 = vpack.c.bf16 %v661, %v661
        %663 = vrot.lane.b32.xlu0 %v599, 112
        %v664 = vpop.permute.xlu0 %663
        %v666 = vsel %vm423, %v662, 0
        %v669 = vsel %vm489, %v664, 0
        %671 = vmatprep.subr.bf16.mxu0 0
        %672 = vmatpush1.bf16.msra.mxu0 0
        %673 = vmatprep.subr.bf16.mxu0 0
        %674 = vmatpush1.bf16.msra.mxu0 0
        %675 = vmatprep.subr.bf16.mxu0 0
        %676 = vmatpush1.bf16.msra.mxu0 0
        %677 = vmatprep.subr.bf16.mxu0 0
        %678 = vmatpush1.bf16.msra.mxu0 0
        %679 = vmatprep.subr.bf16.mxu0 0
        %680 = vmatpush1.bf16.msra.mxu0 0
        %681 = vmatprep.subr.bf16.mxu0 0
        %682 = vmatpush1.bf16.msra.mxu0 0
        %683 = vmatprep.subr.bf16.mxu0 0
        %684 = vmatpush1.bf16.msra.mxu0 0
        %685 = vmatprep.subr.bf16.mxu0 0
        %686 = vmatpush1.bf16.msra.mxu0 %v669
        %687 = vmatprep.subr.bf16.mxu0 0
        %688 = vmatpush2.bf16.msra.mxu0 0
        %689 = vmatprep.subr.bf16.mxu0 0
        %690 = vmatpush2.bf16.msra.mxu0 0
        %691 = vmatprep.subr.bf16.mxu0 0
        %692 = vmatpush2.bf16.msra.mxu0 0
        %693 = vmatprep.subr.bf16.mxu0 0
        %694 = vmatpush2.bf16.msra.mxu0 0
        %695 = vmatprep.subr.bf16.mxu0 0
        %696 = vmatpush2.bf16.msra.mxu0 0
        %697 = vmatprep.subr.bf16.mxu0 0
        %698 = vmatpush2.bf16.msra.mxu0 0
        %699 = vmatprep.subr.bf16.mxu0 0
        %700 = vmatpush2.bf16.msra.mxu0 0
        %701 = vmatprep.subr.bf16.mxu0 0
        %702 = vmatpush2.bf16.msra.mxu0 0
        %703 = vmatprep.mubr.bf16.mxu0 0
        %704 = vmatmul.mubr.bf16.gmra.mxu0 %v666
        %v705 = vpop.f32.mrf.mxu0
        %v706 = vadd.f32 0.0, %v705
        %v707 = vpop.f32.mrf.mxu0
        %v708 = vpop.f32.mrf.mxu0
        %v709 = vpop.f32.mrf.mxu0
        %710 = vdwg.mxu0
        %v711 = vpack.c.bf16 %v706, %v706
        %s712 = scalar_lea.vmem %s1, 32
        %v713 = vld [vmem:[%s712] sm:$0xf]
        %v714 = vld [vmem:[%s712 + $0x4] sm:$0xf]
        %v715 = vld [vmem:[%s712 + $0x8] sm:$0xf]
        %v716 = vld [vmem:[%s712 + $0xc] sm:$0xf]
        %s717 = scalar_lea.vmem %s2, 2
        %v718 = vld [vmem:[%s717] sm:$0x1]
        %v720 = vlaneseq
        %v721 = vshrl.u32 %v720, 7
        %v722 = vsub.s32 0, %v721
        %v723 = vrot.slane %v718, %v722
        %v729 = vunpack.c.l.b16 %v713
        %v730 = vunpack.c.l.b16 %v714
        %v731 = vunpack.c.l.b16 %v715
        %v732 = vunpack.c.l.b16 %v716
        %v733 = vpack.c.b16 %v730, %v729
        %v734 = vpack.c.b16 %v732, %v731
        %737 = vmatprep.subr.bf16.mxu0 0
        %738 = vmatpush1.bf16.msra.mxu0 0
        %739 = vmatprep.subr.bf16.mxu0 0
        %740 = vmatpush1.bf16.msra.mxu0 0
        %741 = vmatprep.subr.bf16.mxu0 0
        %742 = vmatpush1.bf16.msra.mxu0 0
        %743 = vmatprep.subr.bf16.mxu0 0
        %744 = vmatpush1.bf16.msra.mxu0 0
        %745 = vmatprep.subr.bf16.mxu0 0
        %746 = vmatpush1.bf16.msra.mxu0 0
        %747 = vmatprep.subr.bf16.mxu0 0
        %748 = vmatpush1.bf16.msra.mxu0 0
        %749 = vmatprep.subr.bf16.mxu0 0
        %750 = vmatpush1.bf16.msra.mxu0 %v734
        %751 = vmatprep.subr.bf16.mxu0 0
        %752 = vmatpush1.bf16.msra.mxu0 %v733
        %753 = vmatprep.subr.bf16.mxu0 0
        %754 = vmatpush2.bf16.msra.mxu0 0
        %755 = vmatprep.subr.bf16.mxu0 0
        %756 = vmatpush2.bf16.msra.mxu0 0
        %757 = vmatprep.subr.bf16.mxu0 0
        %758 = vmatpush2.bf16.msra.mxu0 0
        %759 = vmatprep.subr.bf16.mxu0 0
        %760 = vmatpush2.bf16.msra.mxu0 0
        %761 = vmatprep.subr.bf16.mxu0 0
        %762 = vmatpush2.bf16.msra.mxu0 0
        %763 = vmatprep.subr.bf16.mxu0 0
        %764 = vmatpush2.bf16.msra.mxu0 0
        %765 = vmatprep.subr.bf16.mxu0 0
        %766 = vmatpush2.bf16.msra.mxu0 0
        %767 = vmatprep.subr.bf16.mxu0 0
        %768 = vmatpush2.bf16.msra.mxu0 0
        %769 = vmatprep.mubr.bf16.mxu0 0
        %770 = vmatmul.mubr.bf16.gmra.mxu0 %v377
        %v771 = vpop.f32.mrf.mxu0
        %v772 = vadd.f32 %v723, %v771
        %v773 = vpop.f32.mrf.mxu0
        %v774 = vpop.f32.mrf.mxu0
        %v775 = vpop.f32.mrf.mxu0
        %776 = vdwg.mxu0
        %v777 = vpack.c.bf16 %v772, %v772
        %779 = vrot.lane.b32.xlu0 %v777, 120
        %v780 = vpop.permute.xlu0 %779
        %v782 = vsel %vm423, %v777, 0
        %v785 = vsel %vm423, %v780, 0
        %787 = vmatprep.subr.bf16.mxu0 0
        %788 = vmatpush1.bf16.xpose.msra.mxu0 0
        %789 = vmatprep.subr.bf16.mxu0 0
        %790 = vmatpush1.bf16.xpose.msra.mxu0 0
        %791 = vmatprep.subr.bf16.mxu0 0
        %792 = vmatpush1.bf16.xpose.msra.mxu0 0
        %793 = vmatprep.subr.bf16.mxu0 0
        %794 = vmatpush1.bf16.xpose.msra.mxu0 0
        %795 = vmatprep.subr.bf16.mxu0 0
        %796 = vmatpush1.bf16.xpose.msra.mxu0 0
        %797 = vmatprep.subr.bf16.mxu0 0
        %798 = vmatpush1.bf16.xpose.msra.mxu0 0
        %799 = vmatprep.subr.bf16.mxu0 0
        %800 = vmatpush1.bf16.xpose.msra.mxu0 0
        %801 = vmatprep.subr.bf16.mxu0 0
        %802 = vmatpush1.bf16.xpose.msra.mxu0 %v785
        %803 = vmatprep.subr.bf16.mxu0 0
        %804 = vmatpush2.bf16.xpose.msra.mxu0 0
        %805 = vmatprep.subr.bf16.mxu0 0
        %806 = vmatpush2.bf16.xpose.msra.mxu0 0
        %807 = vmatprep.subr.bf16.mxu0 0
        %808 = vmatpush2.bf16.xpose.msra.mxu0 0
        %809 = vmatprep.subr.bf16.mxu0 0
        %810 = vmatpush2.bf16.xpose.msra.mxu0 0
        %811 = vmatprep.subr.bf16.mxu0 0
        %812 = vmatpush2.bf16.xpose.msra.mxu0 0
        %813 = vmatprep.subr.bf16.mxu0 0
        %814 = vmatpush2.bf16.xpose.msra.mxu0 0
        %815 = vmatprep.subr.bf16.mxu0 0
        %816 = vmatpush2.bf16.xpose.msra.mxu0 0
        %817 = vmatprep.subr.bf16.mxu0 0
        %818 = vmatpush2.bf16.xpose.msra.mxu0 0
        %819 = vmatprep.mubr.bf16.mxu0 0
        %820 = vmatmul.mubr.bf16.gmra.mxu0 %v782
        %v821 = vpop.f32.mrf.mxu0
        %v822 = vadd.f32 0.0, %v821
        %v823 = vpop.f32.mrf.mxu0
        %v824 = vpop.f32.mrf.mxu0
        %v825 = vpop.f32.mrf.mxu0
        %826 = vdwg.mxu0
        %v827 = vmul.f32 %v822, 0.35355338
        %v828 = vfloor.f32 %v827
        %v829 = vsel %vm423, %v828, -inf
        %830 = vmax.xlane.f32.xlu0 %v829
        %v831 = vpop.xlane.xlu0 %830
        %v832 = vsub.f32 %v828, %v831
        %v833 = vmul.f32 %v832, 1.442695
        %v834 = vpow.pop %v833
        %v835 = vsel %vm423, %v834, 0.0
        %836 = vadd.xlane.f32.xlu0 %v835
        %v837 = vpop.xlane.xlu0 %836
        %v838 = vrcp.pop %v837
        %v839 = vmul.f32 %v834, %v838
        %v840 = vpack.c.bf16 %v839, %v839
        %841 = vrot.lane.b32.xlu0 %v777, 112
        %v842 = vpop.permute.xlu0 %841
        %v844 = vsel %vm423, %v840, 0
        %v847 = vsel %vm489, %v842, 0
        %849 = vmatprep.subr.bf16.mxu0 0
        %850 = vmatpush1.bf16.msra.mxu0 0
        %851 = vmatprep.subr.bf16.mxu0 0
        %852 = vmatpush1.bf16.msra.mxu0 0
        %853 = vmatprep.subr.bf16.mxu0 0
        %854 = vmatpush1.bf16.msra.mxu0 0
        %855 = vmatprep.subr.bf16.mxu0 0
        %856 = vmatpush1.bf16.msra.mxu0 0
        %857 = vmatprep.subr.bf16.mxu0 0
        %858 = vmatpush1.bf16.msra.mxu0 0
        %859 = vmatprep.subr.bf16.mxu0 0
        %860 = vmatpush1.bf16.msra.mxu0 0
        %861 = vmatprep.subr.bf16.mxu0 0
        %862 = vmatpush1.bf16.msra.mxu0 0
        %863 = vmatprep.subr.bf16.mxu0 0
        %864 = vmatpush1.bf16.msra.mxu0 %v847
        %865 = vmatprep.subr.bf16.mxu0 0
        %866 = vmatpush2.bf16.msra.mxu0 0
        %867 = vmatprep.subr.bf16.mxu0 0
        %868 = vmatpush2.bf16.msra.mxu0 0
        %869 = vmatprep.subr.bf16.mxu0 0
        %870 = vmatpush2.bf16.msra.mxu0 0
        %871 = vmatprep.subr.bf16.mxu0 0
        %872 = vmatpush2.bf16.msra.mxu0 0
        %873 = vmatprep.subr.bf16.mxu0 0
        %874 = vmatpush2.bf16.msra.mxu0 0
        %875 = vmatprep.subr.bf16.mxu0 0
        %876 = vmatpush2.bf16.msra.mxu0 0
        %877 = vmatprep.subr.bf16.mxu0 0
        %878 = vmatpush2.bf16.msra.mxu0 0
        %879 = vmatprep.subr.bf16.mxu0 0
        %880 = vmatpush2.bf16.msra.mxu0 0
        %881 = vmatprep.mubr.bf16.mxu0 0
        %882 = vmatmul.mubr.bf16.gmra.mxu0 %v844
        %v883 = vpop.f32.mrf.mxu0
        %v884 = vadd.f32 0.0, %v883
        %v885 = vpop.f32.mrf.mxu0
        %v886 = vpop.f32.mrf.mxu0
        %v887 = vpop.f32.mrf.mxu0
        %888 = vdwg.mxu0
        %v889 = vpack.c.bf16 %v884, %v884
        %s890 = scalar_lea.vmem %s1, 48
        %v891 = vld [vmem:[%s890] sm:$0xf]
        %v892 = vld [vmem:[%s890 + $0x4] sm:$0xf]
        %v893 = vld [vmem:[%s890 + $0x8] sm:$0xf]
        %v894 = vld [vmem:[%s890 + $0xc] sm:$0xf]
        %s895 = scalar_lea.vmem %s2, 3
        %v896 = vld [vmem:[%s895] sm:$0x1]
        %v898 = vlaneseq
        %v899 = vshrl.u32 %v898, 7
        %v900 = vsub.s32 0, %v899
        %v901 = vrot.slane %v896, %v900
        %v907 = vunpack.c.l.b16 %v891
        %v908 = vunpack.c.l.b16 %v892
        %v909 = vunpack.c.l.b16 %v893
        %v910 = vunpack.c.l.b16 %v894
        %v911 = vpack.c.b16 %v908, %v907
        %v912 = vpack.c.b16 %v910, %v909
        %915 = vmatprep.subr.bf16.mxu0 0
        %916 = vmatpush1.bf16.msra.mxu0 0
        %917 = vmatprep.subr.bf16.mxu0 0
        %918 = vmatpush1.bf16.msra.mxu0 0
        %919 = vmatprep.subr.bf16.mxu0 0
        %920 = vmatpush1.bf16.msra.mxu0 0
        %921 = vmatprep.subr.bf16.mxu0 0
        %922 = vmatpush1.bf16.msra.mxu0 0
        %923 = vmatprep.subr.bf16.mxu0 0
        %924 = vmatpush1.bf16.msra.mxu0 0
        %925 = vmatprep.subr.bf16.mxu0 0
        %926 = vmatpush1.bf16.msra.mxu0 0
        %927 = vmatprep.subr.bf16.mxu0 0
        %928 = vmatpush1.bf16.msra.mxu0 %v912
        %929 = vmatprep.subr.bf16.mxu0 0
        %930 = vmatpush1.bf16.msra.mxu0 %v911
        %931 = vmatprep.subr.bf16.mxu0 0
        %932 = vmatpush2.bf16.msra.mxu0 0
        %933 = vmatprep.subr.bf16.mxu0 0
        %934 = vmatpush2.bf16.msra.mxu0 0
        %935 = vmatprep.subr.bf16.mxu0 0
        %936 = vmatpush2.bf16.msra.mxu0 0
        %937 = vmatprep.subr.bf16.mxu0 0
        %938 = vmatpush2.bf16.msra.mxu0 0
        %939 = vmatprep.subr.bf16.mxu0 0
        %940 = vmatpush2.bf16.msra.mxu0 0
        %941 = vmatprep.subr.bf16.mxu0 0
        %942 = vmatpush2.bf16.msra.mxu0 0
        %943 = vmatprep.subr.bf16.mxu0 0
        %944 = vmatpush2.bf16.msra.mxu0 0
        %945 = vmatprep.subr.bf16.mxu0 0
        %946 = vmatpush2.bf16.msra.mxu0 0
        %947 = vmatprep.mubr.bf16.mxu0 0
        %948 = vmatmul.mubr.bf16.gmra.mxu0 %v377
        %v949 = vpop.f32.mrf.mxu0
        %v950 = vadd.f32 %v901, %v949
        %v951 = vpop.f32.mrf.mxu0
        %v952 = vpop.f32.mrf.mxu0
        %v953 = vpop.f32.mrf.mxu0
        %954 = vdwg.mxu0
        %v955 = vpack.c.bf16 %v950, %v950
        %957 = vrot.lane.b32.xlu0 %v955, 120
        %v958 = vpop.permute.xlu0 %957
        %v960 = vsel %vm423, %v955, 0
        %v963 = vsel %vm423, %v958, 0
        %965 = vmatprep.subr.bf16.mxu0 0
        %966 = vmatpush1.bf16.xpose.msra.mxu0 0
        %967 = vmatprep.subr.bf16.mxu0 0
        %968 = vmatpush1.bf16.xpose.msra.mxu0 0
        %969 = vmatprep.subr.bf16.mxu0 0
        %970 = vmatpush1.bf16.xpose.msra.mxu0 0
        %971 = vmatprep.subr.bf16.mxu0 0
        %972 = vmatpush1.bf16.xpose.msra.mxu0 0
        %973 = vmatprep.subr.bf16.mxu0 0
        %974 = vmatpush1.bf16.xpose.msra.mxu0 0
        %975 = vmatprep.subr.bf16.mxu0 0
        %976 = vmatpush1.bf16.xpose.msra.mxu0 0
        %977 = vmatprep.subr.bf16.mxu0 0
        %978 = vmatpush1.bf16.xpose.msra.mxu0 0
        %979 = vmatprep.subr.bf16.mxu0 0
        %980 = vmatpush1.bf16.xpose.msra.mxu0 %v963
        %981 = vmatprep.subr.bf16.mxu0 0
        %982 = vmatpush2.bf16.xpose.msra.mxu0 0
        %983 = vmatprep.subr.bf16.mxu0 0
        %984 = vmatpush2.bf16.xpose.msra.mxu0 0
        %985 = vmatprep.subr.bf16.mxu0 0
        %986 = vmatpush2.bf16.xpose.msra.mxu0 0
        %987 = vmatprep.subr.bf16.mxu0 0
        %988 = vmatpush2.bf16.xpose.msra.mxu0 0
        %989 = vmatprep.subr.bf16.mxu0 0
        %990 = vmatpush2.bf16.xpose.msra.mxu0 0
        %991 = vmatprep.subr.bf16.mxu0 0
        %992 = vmatpush2.bf16.xpose.msra.mxu0 0
        %993 = vmatprep.subr.bf16.mxu0 0
        %994 = vmatpush2.bf16.xpose.msra.mxu0 0
        %995 = vmatprep.subr.bf16.mxu0 0
        %996 = vmatpush2.bf16.xpose.msra.mxu0 0
        %997 = vmatprep.mubr.bf16.mxu0 0
        %998 = vmatmul.mubr.bf16.gmra.mxu0 %v960
        %v999 = vpop.f32.mrf.mxu0
        %v1000 = vadd.f32 0.0, %v999
        %v1001 = vpop.f32.mrf.mxu0
        %v1002 = vpop.f32.mrf.mxu0
        %v1003 = vpop.f32.mrf.mxu0
        %1004 = vdwg.mxu0
        %v1005 = vmul.f32 %v1000, 0.35355338
        %v1006 = vfloor.f32 %v1005
        %v1007 = vsel %vm423, %v1006, -inf
        %1008 = vmax.xlane.f32.xlu0 %v1007
        %v1009 = vpop.xlane.xlu0 %1008
        %v1010 = vsub.f32 %v1006, %v1009
        %v1011 = vmul.f32 %v1010, 1.442695
        %v1012 = vpow.pop %v1011
        %v1013 = vsel %vm423, %v1012, 0.0
        %1014 = vadd.xlane.f32.xlu0 %v1013
        %v1015 = vpop.xlane.xlu0 %1014
        %v1016 = vrcp.pop %v1015
        %v1017 = vmul.f32 %v1012, %v1016
        %v1018 = vpack.c.bf16 %v1017, %v1017
        %1019 = vrot.lane.b32.xlu0 %v955, 112
        %v1020 = vpop.permute.xlu0 %1019
        %v1022 = vsel %vm423, %v1018, 0
        %v1025 = vsel %vm489, %v1020, 0
        %1027 = vmatprep.subr.bf16.mxu0 0
        %1028 = vmatpush1.bf16.msra.mxu0 0
        %1029 = vmatprep.subr.bf16.mxu0 0
        %1030 = vmatpush1.bf16.msra.mxu0 0
        %1031 = vmatprep.subr.bf16.mxu0 0
        %1032 = vmatpush1.bf16.msra.mxu0 0
        %1033 = vmatprep.subr.bf16.mxu0 0
        %1034 = vmatpush1.bf16.msra.mxu0 0
        %1035 = vmatprep.subr.bf16.mxu0 0
        %1036 = vmatpush1.bf16.msra.mxu0 0
        %1037 = vmatprep.subr.bf16.mxu0 0
        %1038 = vmatpush1.bf16.msra.mxu0 0
        %1039 = vmatprep.subr.bf16.mxu0 0
        %1040 = vmatpush1.bf16.msra.mxu0 0
        %1041 = vmatprep.subr.bf16.mxu0 0
        %1042 = vmatpush1.bf16.msra.mxu0 %v1025
        %1043 = vmatprep.subr.bf16.mxu0 0
        %1044 = vmatpush2.bf16.msra.mxu0 0
        %1045 = vmatprep.subr.bf16.mxu0 0
        %1046 = vmatpush2.bf16.msra.mxu0 0
        %1047 = vmatprep.subr.bf16.mxu0 0
        %1048 = vmatpush2.bf16.msra.mxu0 0
        %1049 = vmatprep.subr.bf16.mxu0 0
        %1050 = vmatpush2.bf16.msra.mxu0 0
        %1051 = vmatprep.subr.bf16.mxu0 0
        %1052 = vmatpush2.bf16.msra.mxu0 0
        %1053 = vmatprep.subr.bf16.mxu0 0
        %1054 = vmatpush2.bf16.msra.mxu0 0
        %1055 = vmatprep.subr.bf16.mxu0 0
        %1056 = vmatpush2.bf16.msra.mxu0 0
        %1057 = vmatprep.subr.bf16.mxu0 0
        %1058 = vmatpush2.bf16.msra.mxu0 0
        %1059 = vmatprep.mubr.bf16.mxu0 0
        %1060 = vmatmul.mubr.bf16.gmra.mxu0 %v1022
        %v1061 = vpop.f32.mrf.mxu0
        %v1062 = vadd.f32 0.0, %v1061
        %v1063 = vpop.f32.mrf.mxu0
        %v1064 = vpop.f32.mrf.mxu0
        %v1065 = vpop.f32.mrf.mxu0
        %1066 = vdwg.mxu0
        %v1067 = vpack.c.bf16 %v1062, %v1062
        %1069 = vrot.lane.b32.xlu0 %v711, 8
        %v1070 = vpop.permute.xlu0 %1069
        %1072 = vrot.lane.b32.xlu0 %v889, 16
        %v1073 = vpop.permute.xlu0 %1072
        %1075 = vrot.lane.b32.xlu0 %v1067, 24
        %v1076 = vpop.permute.xlu0 %1075
        %v1079 = vsel %vm423, %v533, %v1070
        %vm1080 = vcmask 130048
        %v1082 = vsel %vm1080, %v1079, %v1073
        %vm1083 = vcmask 195584
        %v1085 = vsel %vm1083, %v1082, %v1076
        %v1086 = vld [vmem:[%s3] sm:$0xf]
        %v1087 = vld [vmem:[%s3 + $0x4] sm:$0xf]
        %v1088 = vld [vmem:[%s3 + $0x8] sm:$0xf]
        %v1089 = vld [vmem:[%s3 + $0xc] sm:$0xf]
        %v1094 = vunpack.c.l.b16 %v1086
        %v1095 = vunpack.c.l.b16 %v1087
        %v1096 = vunpack.c.l.b16 %v1088
        %v1097 = vunpack.c.l.b16 %v1089
        %v1098 = vpack.c.b16 %v1095, %v1094
        %v1099 = vpack.c.b16 %v1097, %v1096
        %v1102 = vsel %vm330, %v1085, 0
        %1104 = vmatprep.subr.bf16.mxu0 0
        %1105 = vmatpush1.bf16.msra.mxu0 0
        %1106 = vmatprep.subr.bf16.mxu0 0
        %1107 = vmatpush1.bf16.msra.mxu0 0
        %1108 = vmatprep.subr.bf16.mxu0 0
        %1109 = vmatpush1.bf16.msra.mxu0 0
        %1110 = vmatprep.subr.bf16.mxu0 0
        %1111 = vmatpush1.bf16.msra.mxu0 0
        %1112 = vmatprep.subr.bf16.mxu0 0
        %1113 = vmatpush1.bf16.msra.mxu0 0
        %1114 = vmatprep.subr.bf16.mxu0 0
        %1115 = vmatpush1.bf16.msra.mxu0 0
        %1116 = vmatprep.subr.bf16.mxu0 0
        %1117 = vmatpush1.bf16.msra.mxu0 %v1099
        %1118 = vmatprep.subr.bf16.mxu0 0
        %1119 = vmatpush1.bf16.msra.mxu0 %v1098
        %1120 = vmatprep.subr.bf16.mxu0 0
        %1121 = vmatpush2.bf16.msra.mxu0 0
        %1122 = vmatprep.subr.bf16.mxu0 0
        %1123 = vmatpush2.bf16.msra.mxu0 0
        %1124 = vmatprep.subr.bf16.mxu0 0
        %1125 = vmatpush2.bf16.msra.mxu0 0
        %1126 = vmatprep.subr.bf16.mxu0 0
        %1127 = vmatpush2.bf16.msra.mxu0 0
        %1128 = vmatprep.subr.bf16.mxu0 0
        %1129 = vmatpush2.bf16.msra.mxu0 0
        %1130 = vmatprep.subr.bf16.mxu0 0
        %1131 = vmatpush2.bf16.msra.mxu0 0
        %1132 = vmatprep.subr.bf16.mxu0 0
        %1133 = vmatpush2.bf16.msra.mxu0 0
        %1134 = vmatprep.subr.bf16.mxu0 0
        %1135 = vmatpush2.bf16.msra.mxu0 0
        %1136 = vmatprep.mubr.bf16.mxu0 0
        %1137 = vmatmul.mubr.bf16.gmra.mxu0 %v1102
        %v1138 = vpop.f32.mrf.mxu0
        %v1139 = vadd.f32 0.0, %v1138
        %v1140 = vpop.f32.mrf.mxu0
        %v1141 = vpop.f32.mrf.mxu0
        %v1142 = vpop.f32.mrf.mxu0
        %1143 = vdwg.mxu0
        %v1144 = vadd.f32 %v329, %v1139
        %v1145 = vld [vmem:[%s4] sm:$0x1]
        %v1147 = vlaneseq
        %v1148 = vshrl.u32 %v1147, 7
        %v1149 = vsub.s32 0, %v1148
        %v1150 = vrot.slane %v1145, %v1149
        %v1152 = vadd.f32 %v1144, %v1150
        %v1153 = vsel %vm330, %v1152, 0.0
        %1154 = vadd.xlane.f32.xlu0 %v1153
        %v1155 = vpop.xlane.xlu0 %1154
        %v1156 = vmul.f32 %v1155, %v334
        %v1157 = vsub.f32 %v1152, %v1156
        %v1158 = vmul.f32 %v1157, %v1157
        %v1159 = vsel %vm330, %v1158, 0.0
        %1160 = vadd.xlane.f32.xlu0 %v1159
        %v1161 = vpop.xlane.xlu0 %1160
        %v1162 = vmul.f32 %v1161, 0.032258064
        %v1163 = vrsqrt.pop %v1162
        %v1164 = vmul.f32 %v1162, %v1163
        %vm1165 = vcmp.eq.f32.partialorder %v1162, inf
        %v1166 = vsel %vm1165, %v1162, %v1164
        %vm1167 = vcmp.eq.f32.partialorder %v1162, 0.0
        %v1168 = vand.u32 %v1162, 2147483648
        %v1169 = vsel %vm1167, %v1168, %v1166
        %v1170 = vadd.f32 %v1169, 1e-06
        %v1171 = vrcp.pop %v1170
        %v1172 = vmul.f32 %v1157, %v1171
        %v1173 = vpack.c.bf16 %v1172, %v1172
        %v1174 = vld [vmem:[%s5] sm:$0xf]
        %v1175 = vld [vmem:[%s5 + $0x4] sm:$0xf]
        %v1176 = vld [vmem:[%s5 + $0x8] sm:$0xf]
        %v1177 = vld [vmem:[%s5 + $0xc] sm:$0xf]
        %v1178 = vld [vmem:[%s6] sm:$0x1]
        %v1180 = vlaneseq
        %v1181 = vshrl.u32 %v1180, 7
        %v1182 = vsub.s32 0, %v1181
        %v1183 = vrot.slane %v1178, %v1182
        %v1189 = vunpack.c.l.b16 %v1174
        %v1190 = vunpack.c.l.b16 %v1175
        %v1191 = vunpack.c.l.b16 %v1176
        %v1192 = vunpack.c.l.b16 %v1177
        %v1193 = vpack.c.b16 %v1190, %v1189
        %v1194 = vpack.c.b16 %v1192, %v1191
        %v1198 = vsel %vm330, %v1173, 0
        %1200 = vmatprep.subr.bf16.mxu0 0
        %1201 = vmatpush1.bf16.msra.mxu0 0
        %1202 = vmatprep.subr.bf16.mxu0 0
        %1203 = vmatpush1.bf16.msra.mxu0 0
        %1204 = vmatprep.subr.bf16.mxu0 0
        %1205 = vmatpush1.bf16.msra.mxu0 0
        %1206 = vmatprep.subr.bf16.mxu0 0
        %1207 = vmatpush1.bf16.msra.mxu0 0
        %1208 = vmatprep.subr.bf16.mxu0 0
        %1209 = vmatpush1.bf16.msra.mxu0 0
        %1210 = vmatprep.subr.bf16.mxu0 0
        %1211 = vmatpush1.bf16.msra.mxu0 0
        %1212 = vmatprep.subr.bf16.mxu0 0
        %1213 = vmatpush1.bf16.msra.mxu0 %v1194
        %1214 = vmatprep.subr.bf16.mxu0 0
        %1215 = vmatpush1.bf16.msra.mxu0 %v1193
        %1216 = vmatprep.subr.bf16.mxu0 0
        %1217 = vmatpush2.bf16.msra.mxu0 0
        %1218 = vmatprep.subr.bf16.mxu0 0
        %1219 = vmatpush2.bf16.msra.mxu0 0
        %1220 = vmatprep.subr.bf16.mxu0 0
        %1221 = vmatpush2.bf16.msra.mxu0 0
        %1222 = vmatprep.subr.bf16.mxu0 0
        %1223 = vmatpush2.bf16.msra.mxu0 0
        %1224 = vmatprep.subr.bf16.mxu0 0
        %1225 = vmatpush2.bf16.msra.mxu0 0
        %1226 = vmatprep.subr.bf16.mxu0 0
        %1227 = vmatpush2.bf16.msra.mxu0 0
        %1228 = vmatprep.subr.bf16.mxu0 0
        %1229 = vmatpush2.bf16.msra.mxu0 0
        %1230 = vmatprep.subr.bf16.mxu0 0
        %1231 = vmatpush2.bf16.msra.mxu0 0
        %1232 = vmatprep.mubr.bf16.mxu0 0
        %1233 = vmatmul.mubr.bf16.gmra.mxu0 %v1198
        %v1234 = vpop.f32.mrf.mxu0
        %v1235 = vadd.f32 %v1183, %v1234
        %v1236 = vpop.f32.mrf.mxu0
        %v1237 = vpop.f32.mrf.mxu0
        %v1238 = vpop.f32.mrf.mxu0
        %1239 = vdwg.mxu0
        %v1240 = vmax.f32 %v1235, 0.0
        %v1241 = vpack.c.bf16 %v1240, %v1240
        %v1242 = vld [vmem:[%s7] sm:$0xf]
        %v1243 = vld [vmem:[%s7 + $0x4] sm:$0xf]
        %v1244 = vld [vmem:[%s7 + $0x8] sm:$0xf]
        %v1245 = vld [vmem:[%s7 + $0xc] sm:$0xf]
        %v1246 = vld [vmem:[%s7 + $0x10] sm:$0xf]
        %v1247 = vld [vmem:[%s7 + $0x14] sm:$0xf]
        %v1248 = vld [vmem:[%s7 + $0x18] sm:$0xf]
        %v1249 = vld [vmem:[%s7 + $0x1c] sm:$0xf]
        %v1250 = vld [vmem:[%s8] sm:$0x1]
        %v1252 = vlaneseq
        %v1253 = vshrl.u32 %v1252, 7
        %v1254 = vsub.s32 0, %v1253
        %v1255 = vrot.slane %v1250, %v1254
        %v1265 = vunpack.c.l.b16 %v1242
        %v1266 = vunpack.c.l.b16 %v1243
        %v1267 = vunpack.c.l.b16 %v1244
        %v1268 = vunpack.c.l.b16 %v1245
        %v1269 = vunpack.c.l.b16 %v1246
        %v1270 = vunpack.c.l.b16 %v1247
        %v1271 = vunpack.c.l.b16 %v1248
        %v1272 = vunpack.c.l.b16 %v1249
        %v1273 = vpack.c.b16 %v1266, %v1265
        %v1274 = vpack.c.b16 %v1268, %v1267
        %v1275 = vpack.c.b16 %v1270, %v1269
        %v1276 = vpack.c.b16 %v1272, %v1271
        %vm1281 = vcmask 523264
        %v1283 = vsel %vm1281, %v1241, 0
        %1285 = vmatprep.subr.bf16.mxu0 0
        %1286 = vmatpush1.bf16.msra.mxu0 0
        %1287 = vmatprep.subr.bf16.mxu0 0
        %1288 = vmatpush1.bf16.msra.mxu0 0
        %1289 = vmatprep.subr.bf16.mxu0 0
        %1290 = vmatpush1.bf16.msra.mxu0 0
        %1291 = vmatprep.subr.bf16.mxu0 0
        %1292 = vmatpush1.bf16.msra.mxu0 0
        %1293 = vmatprep.subr.bf16.mxu0 0
        %1294 = vmatpush1.bf16.msra.mxu0 %v1276
        %1295 = vmatprep.subr.bf16.mxu0 0
        %1296 = vmatpush1.bf16.msra.mxu0 %v1275
        %1297 = vmatprep.subr.bf16.mxu0 0
        %1298 = vmatpush1.bf16.msra.mxu0 %v1274
        %1299 = vmatprep.subr.bf16.mxu0 0
        %1300 = vmatpush1.bf16.msra.mxu0 %v1273
        %1301 = vmatprep.subr.bf16.mxu0 0
        %1302 = vmatpush2.bf16.msra.mxu0 0
        %1303 = vmatprep.subr.bf16.mxu0 0
        %1304 = vmatpush2.bf16.msra.mxu0 0
        %1305 = vmatprep.subr.bf16.mxu0 0
        %1306 = vmatpush2.bf16.msra.mxu0 0
        %1307 = vmatprep.subr.bf16.mxu0 0
        %1308 = vmatpush2.bf16.msra.mxu0 0
        %1309 = vmatprep.subr.bf16.mxu0 0
        %1310 = vmatpush2.bf16.msra.mxu0 0
        %1311 = vmatprep.subr.bf16.mxu0 0
        %1312 = vmatpush2.bf16.msra.mxu0 0
        %1313 = vmatprep.subr.bf16.mxu0 0
        %1314 = vmatpush2.bf16.msra.mxu0 0
        %1315 = vmatprep.subr.bf16.mxu0 0
        %1316 = vmatpush2.bf16.msra.mxu0 0
        %1317 = vmatprep.mubr.bf16.mxu0 0
        %1318 = vmatmul.mubr.bf16.gmra.mxu0 %v1283
        %v1319 = vpop.f32.mrf.mxu0
        %v1320 = vadd.f32 %v1255, %v1319
        %v1321 = vpop.f32.mrf.mxu0
        %v1322 = vpop.f32.mrf.mxu0
        %v1323 = vpop.f32.mrf.mxu0
        %1324 = vdwg.mxu0
        %v1325 = vadd.f32 %v1152, %v1320
        %1326 = vst.msk [vmem:[%s323] sm:$0xff] %vm330, %v1325
        %s1327 = sand.u32 %s225, 1
        %s1328 = scalar_lea.sflag [#allocation3], %s1327
        %s1329 = sand.u32 %s225, 1
        %s1330 = smul.addr %s1329, 8
        %s1331 = scalar_lea.vmem [#allocation2], %s1330
        // Predicated region
        $region57: #{tpu_custom_call.1} parent=55 // pred_check
          %p1332 = pneg %p235
        $region58: #{tpu_custom_call.1} parent=55 // pred_check_branch
          %1334 = sbr.rel (%p1332) target = $region60
        $region59: #{tpu_custom_call.1} parent=55 // pred_region
          %s1336 = ssub.s32 128, 128
          %1337 = vsyncadd %s1328, %s1336
          %s1338 = smul.addr %s23, 128
          %s1339 = scalar_lea.hbm %s9, %s1338
          %s1341 = sshll.u32 %s1331, 4
          %s1342 = int_to_ptr.vmem [resolvable:$true] %s1341
          %1344 = dma.vmem_to_hbm [thread:$0]  %s1342, 128, %s1339, %s1328
        $region60: #{tpu_custom_call.1} parent=55 // pred_fallthru
          _
      $region56: #{tpu_custom_call.1} parent=5 // pred_fallthru
        _
      %p1345 = scmp.le.s32.totalorder 2, %s18
      // Predicated region
      $region61: #{tpu_custom_call.1} parent=5 // pred_check
        %p1346 = pneg %p1345
      $region62: #{tpu_custom_call.1} parent=5 // pred_check_branch
        %1348 = sbr.rel (%p1346) target = $region64
      $region63: #{tpu_custom_call.1} parent=5 // pred_region
        %s1349 = ssub.s32 %s18, 2
        // Predicated region
        $region65: #{tpu_custom_call.1} parent=63 // pred_check
          %p1350 = pneg %p241
        $region66: #{tpu_custom_call.1} parent=63 // pred_check_branch
          %1352 = sbr.rel (%p1350) target = $region68
        $region67: #{tpu_custom_call.1} parent=63 // pred_region
          %s1353 = sand.u32 %s226, 1
          %s1354 = scalar_lea.sflag [#allocation3], %s1353
          %s1355 = sand.u32 %s226, 1
          %s1356 = smul.addr %s1355, 8
          %s1357 = scalar_lea.vmem [#allocation2], %s1356
          %1358 = dma.done %s1354, 128
        $region68: #{tpu_custom_call.1} parent=63 // pred_fallthru
          _
      $region64: #{tpu_custom_call.1} parent=5 // pred_fallthru
        _
    $region6: #{tpu_custom_call.1} parent=1 // loop_footer
      %s22 = sadd.s32 1, %s18
    $region7: #{tpu_custom_call.1} parent=1 // loop_footer_branch
      %17 = sbr.rel target = $region3
    $region8: #{tpu_custom_call.1} parent=1 // loop_exit
      _
    %1359 = vsyncpa [#allocation3], 1
    %s1360 = scalar_lea.sflag [#allocation3], 1
    %1361 = vsyncpa %s1360, 1

</llo_original>
